<compile_context>
chip_gen: v7x
topology: tpu7x:2x2x1
jax: 0.10.0
libtpu: 0.0.40
codegen_flags: <defaults>
</compile_context>

<pallas_src>
import jax
import jax.numpy as jnp
from jax.experimental import pallas as pl
from jax.experimental.pallas import tpu as pltpu

# ---- hyperparameters (module defaults, scaled small where allowed) ----
NUM_LAYERS = 3
HIDDEN = 16
HIDDEN_LINEAR = 64
ROIS = 90            # hard-coded to 90 inside the module's linear dims
H0 = 3               # num_features == prob_dim
NUM_CLASSES = 2
NUM_REGR = 4
D_LIN = ROIS * NUM_LAYERS * HIDDEN   # flattened GCN features (img_out / out_lin)
D_IMGFEAT = ROIS * H0                # prob-weighted raw features (270)
OUT_W = 128                          # packed heads output width (lane dense)


def _batch_block(B, cap):
    """Largest batch block <= cap; when B > cap the grid is >= 2, which lets
    dimension_semantics=('parallel',) shard grid steps across both v7x TCs."""
    return B if B <= cap else cap


# -------------------- kernel 1: GCN norm + stacked GCNConv layers --------------------
def _gcn_stack_kernel(a_ref, xt_ref, w1t_ref, b1t_ref, wlt_ref, blt_ref, out_ref):
    # ---- fused GCN normalization: D^-1/2 (A + I) D^-1/2 ----
    # Assumes A (and therefore the normalized adjacency) is symmetric, as for
    # an undirected graph -- the same assumption GCNConv normalization makes.
    a = a_ref[...]                                              # [TB, N, N] raw A
    row = jax.lax.broadcasted_iota(jnp.int32, (ROIS, ROIS), 0)
    col = jax.lax.broadcasted_iota(jnp.int32, (ROIS, ROIS), 1)
    eye = (row == col).astype(jnp.float32)
    a_hat = a + eye
    deg_c = jnp.sum(a_hat, axis=2, keepdims=True)               # [TB, N, 1] (lane reduce)
    deg_r = jnp.sum(a_hat, axis=1, keepdims=True)               # [TB, 1, N] (sublane reduce)
    dinv_c = jnp.where(deg_c > 0, jax.lax.rsqrt(deg_c), 0.0)
    dinv_r = jnp.where(deg_r > 0, jax.lax.rsqrt(deg_r), 0.0)
    adj = a_hat * dinv_c * dinv_r                               # symmetric

    x_t = xt_ref[...]                                           # [TB, H0, N]
    w1t = w1t_ref[...]                                          # [HIDDEN, H0] == W1^T

    # conv1 projection (x @ W1)^T on the VPU: H0=3 broadcast-FMAs,
    # output already in the transposed [TB, HIDDEN, N] layout.
    xw = x_t[:, 0:1, :] * w1t[:, 0:1]
    for k in range(1, H0):
        xw = xw + x_t[:, k:k + 1, :] * w1t[:, k:k + 1]

    # h^T = relu((x W1)^T @ adj + b1^T): MXU matmul with ROIS=90 on the lanes.
    h = jnp.einsum("bhj,bji->bhi", xw, adj, preferred_element_type=jnp.float32)
    h = jnp.maximum(h + b1t_ref[...], 0.0)                      # [TB, HIDDEN, N]
    out_ref[:, 0:HIDDEN, :] = h                                 # aligned sublane slice

    for l in range(NUM_LAYERS - 1):                             # self.convs
        wlt = wlt_ref[l]                                        # [HIDDEN, HIDDEN] == W_l^T
        # (h @ W_l)^T via HIDDEN=16 VPU broadcast-FMAs (no transpose / relayout).
        hw = h[:, 0:1, :] * wlt[:, 0:1]
        for k in range(1, HIDDEN):
            hw = hw + h[:, k:k + 1, :] * wlt[:, k:k + 1]
        h = jnp.einsum("bhj,bji->bhi", hw, adj, preferred_element_type=jnp.float32)
        h = jnp.maximum(h + blt_ref[l], 0.0)
        out_ref[:, (l + 1) * HIDDEN:(l + 2) * HIDDEN, :] = h


def gcn_stack(A, x_t, w1t, b1t, wlt, blt):
    """A: raw symmetric adjacency [B, N, N] (no self loops); x_t: [B, H0, N].
    Returns the stacked layer outputs in transposed layout [B, NL*HIDDEN, N]."""
    B = A.shape[0]
    tb = _batch_block(B, 32)
    grid = (pl.cdiv(B, tb),)

    flops = B * (4 * ROIS * ROIS                                     # fused norm
                 + 2 * ROIS * H0 * HIDDEN                            # conv1 projection
                 + NUM_LAYERS * 2 * HIDDEN * ROIS * ROIS             # adj matmuls
                 + (NUM_LAYERS - 1) * 2 * ROIS * HIDDEN * HIDDEN)    # W projections
    bytes_accessed = 4 * (B * ROIS * ROIS + B * ROIS * H0
                          + HIDDEN * (H0 + 1)
                          + (NUM_LAYERS - 1) * HIDDEN * (HIDDEN + 1)
                          + B * ROIS * NUM_LAYERS * HIDDEN)

    return pl.pallas_call(
        _gcn_stack_kernel,
        out_shape=jax.ShapeDtypeStruct((B, NUM_LAYERS * HIDDEN, ROIS), jnp.float32),
        grid=grid,
        in_specs=[
            pl.BlockSpec((tb, ROIS, ROIS), lambda b: (b, 0, 0)),
            pl.BlockSpec((tb, H0, ROIS), lambda b: (b, 0, 0)),
            pl.BlockSpec((HIDDEN, H0), lambda b: (0, 0)),
            pl.BlockSpec((HIDDEN, 1), lambda b: (0, 0)),
            pl.BlockSpec((NUM_LAYERS - 1, HIDDEN, HIDDEN), lambda b: (0, 0, 0)),
            pl.BlockSpec((NUM_LAYERS - 1, HIDDEN, 1), lambda b: (0, 0, 0)),
        ],
        out_specs=pl.BlockSpec((tb, NUM_LAYERS * HIDDEN, ROIS), lambda b: (b, 0, 0)),
        compiler_params=pltpu.CompilerParams(dimension_semantics=("parallel",)),
        cost_estimate=pl.CostEstimate(flops=flops, transcendentals=2 * B * ROIS,
                                      bytes_accessed=bytes_accessed),
    )(A, x_t, w1t, b1t, wlt, blt)


# ------------- kernel 2: classification + regression heads -------------
def _heads_kernel(feat_ref, ximg_ref, probf_ref,
                  w1m_ref, b1m_ref, w2_ref, b2_ref,
                  wr1b_ref, wr2_ref, br2_ref, out_ref):
    feat = feat_ref[...]                                          # [TB, D_LIN] (perm order)
    # ONE lane-dense K=4320 matmul: cols [0:64] -> lin1, cols [64:128] -> lin1_regr(out_lin part)
    merged = jnp.dot(feat, w1m_ref[...], preferred_element_type=jnp.float32) + b1m_ref[...]

    # linear_outf = relu(lin1(out_lin))
    linf = jnp.maximum(merged[:, :HIDDEN_LINEAR], 0.0)
    out_ref[:, 0:HIDDEN_LINEAR] = linf

    # x = lin2(dropout(linear_outf))  (eval -> dropout identity); log_softmax
    logits = jnp.dot(linf, w2_ref[...], preferred_element_type=jnp.float32) + b2_ref[...]
    m = jnp.max(logits, axis=-1, keepdims=True)
    lse = m + jnp.log(jnp.sum(jnp.exp(logits - m), axis=-1, keepdims=True))
    out_ref[:, HIDDEN_LINEAR:HIDDEN_LINEAR + NUM_CLASSES] = logits - lse

    # regression: feat4regr = cat(out_lin, (batch_x * prob).view(B,-1))
    img_feat = ximg_ref[...] * probf_ref[...]                     # [TB, 270] (perm order)
    regh = merged[:, HIDDEN_LINEAR:] + jnp.dot(
        img_feat, wr1b_ref[...], preferred_element_type=jnp.float32)
    regh = jnp.maximum(regh, 0.0)                                 # relu(lin1_regr)
    out_ref[:, HIDDEN_LINEAR + NUM_CLASSES:HIDDEN_LINEAR + NUM_CLASSES + NUM_REGR] = (
        jnp.dot(regh, wr2_ref[...], preferred_element_type=jnp.float32) + br2_ref[...])


def heads(feat, ximg_flat, prob_flat, pp):
    B = feat.shape[0]
    tb = _batch_block(B, 128)
    grid = (pl.cdiv(B, tb),)
    const2 = lambda i: (0, 0)                       # weights: VMEM-resident across steps

    flops = B * (2 * D_LIN * 2 * HIDDEN_LINEAR + 2 * D_IMGFEAT * HIDDEN_LINEAR
                 + 2 * HIDDEN_LINEAR * (NUM_CLASSES + NUM_REGR) + D_IMGFEAT)
    bytes_accessed = 4 * (B * (D_LIN + D_IMGFEAT + OUT_W)
                          + D_IMGFEAT * (1 + HIDDEN_LINEAR)
                          + D_LIN * 2 * HIDDEN_LINEAR + 2 * HIDDEN_LINEAR
                          + HIDDEN_LINEAR * (NUM_CLASSES + NUM_REGR)
                          + NUM_CLASSES + NUM_REGR)

    return pl.pallas_call(
        _heads_kernel,
        out_shape=jax.ShapeDtypeStruct((B, OUT_W), jnp.float32),
        grid=grid,
        in_specs=[
            pl.BlockSpec((tb, D_LIN), lambda i: (i, 0)),
            pl.BlockSpec((tb, D_IMGFEAT), lambda i: (i, 0)),
            pl.BlockSpec((1, D_IMGFEAT), const2),
            pl.BlockSpec((D_LIN, 2 * HIDDEN_LINEAR), const2),
            pl.BlockSpec((1, 2 * HIDDEN_LINEAR), const2),
            pl.BlockSpec((HIDDEN_LINEAR, NUM_CLASSES), const2),
            pl.BlockSpec((1, NUM_CLASSES), const2),
            pl.BlockSpec((D_IMGFEAT, HIDDEN_LINEAR), const2),
            pl.BlockSpec((HIDDEN_LINEAR, NUM_REGR), const2),
            pl.BlockSpec((1, NUM_REGR), const2),
        ],
        out_specs=pl.BlockSpec((tb, OUT_W), lambda i: (i, 0)),
        compiler_params=pltpu.CompilerParams(dimension_semantics=("parallel",)),
        cost_estimate=pl.CostEstimate(flops=flops,
                                      transcendentals=B * (NUM_CLASSES + 1),
                                      bytes_accessed=bytes_accessed),
    )(feat, ximg_flat, prob_flat, pp["w1m"], pp["b1m"],
      pp["lin2_w"], pp["lin2_b"], pp["lin1r_wb"], pp["lin2r_w"], pp["lin2r_b"])


# ----------------------------- glue -----------------------------
def prepare_params(p):
    """One-time (outside jit) weight re-layout:
       * transposed GCN weights/biases for the ROIS-on-lanes layout,
       * head-weight row permutation to the transposed flatten order,
       * lin1 + lin1_regr(out_lin half) merged into one lane-dense [D_LIN,128] weight."""
    def perm_lin(w):   # old row i*(NL*H)+c  ->  new row c*ROIS+i
        return w.reshape(ROIS, NUM_LAYERS * HIDDEN, -1).transpose(1, 0, 2).reshape(D_LIN, -1)

    def perm_img(w):   # old row i*H0+k  ->  new row k*ROIS+i
        return w.reshape(ROIS, H0, -1).transpose(1, 0, 2).reshape(D_IMGFEAT, -1)

    return {
        # GCN stack (transposed layout)
        "w1t": jnp.transpose(p["w1"]),                       # [HIDDEN, H0]
        "b1t": jnp.transpose(p["b1"]),                       # [HIDDEN, 1]
        "wlt": jnp.transpose(p["wl"], (0, 2, 1)),            # [NL-1, HIDDEN, HIDDEN]
        "blt": jnp.transpose(p["bl"], (0, 2, 1)),            # [NL-1, HIDDEN, 1]
        # heads (merged + permuted)
        "w1m": jnp.concatenate([perm_lin(p["lin1_w"]), perm_lin(p["lin1r_wa"])], axis=1),
        "b1m": jnp.concatenate([p["lin1_b"], p["lin1r_b"]], axis=1),
        "lin2_w": p["lin2_w"], "lin2_b": p["lin2_b"],
        "lin1r_wb": perm_img(p["lin1r_wb"]),
        "lin2r_w": p["lin2r_w"], "lin2r_b": p["lin2r_b"],
        "prob_t_flat": jnp.transpose(p["prob"]).reshape(1, D_IMGFEAT),
    }


def forward(A, x, pp):
    """A: raw symmetric adjacency [B,N,N]; x: [B,N,H0]; pp: prepare_params(...).
    Returns (log_softmax(x), out_z, out_lin, linear_outf, our_reg)."""
    B = x.shape[0]
    x_t = jnp.transpose(x, (0, 2, 1))                         # [B, H0, N] (tiny)
    xs_t = gcn_stack(A, x_t, pp["w1t"], pp["b1t"], pp["wlt"], pp["blt"])   # [B, 48, 90]
    feat_t = xs_t.reshape(B, D_LIN)                           # transposed flatten order
    out_lin = jnp.transpose(xs_t, (0, 2, 1)).reshape(B, D_LIN)  # original (node-major) order
    ximg_t_flat = x_t.reshape(B, D_IMGFEAT)
    packed = heads(feat_t, ximg_t_flat, pp["prob_t_flat"], pp)
    linear_outf = packed[:, :HIDDEN_LINEAR]
    log_probs = packed[:, HIDDEN_LINEAR:HIDDEN_LINEAR + NUM_CLASSES]
    our_reg = packed[:, HIDDEN_LINEAR + NUM_CLASSES:HIDDEN_LINEAR + NUM_CLASSES + NUM_REGR]
    # isImageOnly=True: out_z == out_lin == img_out
    return log_probs, out_lin, out_lin, linear_outf, our_reg


def gcn_norm_dense(A):
    """PyG-style GCN normalization on a dense non-negative adjacency (reference only)."""
    N = A.shape[-1]
    A_hat = A + jnp.eye(N, dtype=A.dtype)[None]
    deg = jnp.sum(A_hat, axis=-1)
    dinv = jnp.where(deg > 0, 1.0 / jnp.sqrt(deg), 0.0)
    return A_hat * dinv[:, :, None] * dinv[:, None, :]


def reference(A, x, p):
    adj = gcn_norm_dense(A)
    h = jax.nn.relu(jnp.matmul(adj, jnp.matmul(x, p["w1"])) + p["b1"])
    hs = [h]
    for l in range(NUM_LAYERS - 1):
        h = jax.nn.relu(jnp.matmul(adj, jnp.matmul(h, p["wl"][l])) + p["bl"][l])
        hs.append(h)
    xs_cat = jnp.concatenate(hs, axis=-1)
    B = x.shape[0]
    out_lin = xs_cat.reshape(B, -1)
    linf = jax.nn.relu(out_lin @ p["lin1_w"] + p["lin1_b"])
    logits = linf @ p["lin2_w"] + p["lin2_b"]
    logp = jax.nn.log_softmax(logits, axis=-1)
    img_feat = (x * p["prob"][None]).reshape(B, -1)
    w_regr = jnp.concatenate([p["lin1r_wa"], p["lin1r_wb"]], axis=0)
    feat4regr = jnp.concatenate([out_lin, img_feat], axis=-1)
    regh = jax.nn.relu(feat4regr @ w_regr + p["lin1r_b"])
    reg = regh @ p["lin2r_w"] + p["lin2r_b"]
    return logp, out_lin, out_lin, linf, reg


def make_params(key):
    ks = iter(jax.random.split(key, 16))
    n = lambda shape, s=0.1: (s * jax.random.normal(next(ks), shape)).astype(jnp.float32)
    return {
        "w1": n((H0, HIDDEN)), "b1": n((1, HIDDEN)),
        "wl": n((NUM_LAYERS - 1, HIDDEN, HIDDEN)), "bl": n((NUM_LAYERS - 1, 1, HIDDEN)),
        "lin1_w": n((D_LIN, HIDDEN_LINEAR), 0.02), "lin1_b": n((1, HIDDEN_LINEAR)),
        "lin2_w": n((HIDDEN_LINEAR, NUM_CLASSES)), "lin2_b": n((1, NUM_CLASSES)),
        # lin1_regr weight split: [:D_LIN] acts on out_lin, [D_LIN:] on prob-weighted feats
        "lin1r_wa": n((D_LIN, HIDDEN_LINEAR), 0.02),
        "lin1r_wb": n((D_IMGFEAT, HIDDEN_LINEAR), 0.02),
        "lin1r_b": n((1, HIDDEN_LINEAR)),
        "lin2r_w": n((HIDDEN_LINEAR, NUM_REGR)), "lin2r_b": n((1, NUM_REGR)),
        "prob": n((ROIS, H0)),
    }


if __name__ == "__main__":
    key = jax.random.PRNGKey(0)
    k_x, k_a, k_p = jax.random.split(key, 3)

    B = 2
    # dense-batched node features (data.x, all graphs have exactly ROIS nodes)
    x = jax.random.normal(k_x, (B, ROIS, H0), dtype=jnp.float32)
    # dense symmetric non-negative edge weights (data.edge_index / edge_attr), no self loops
    A = jax.random.uniform(k_a, (B, ROIS, ROIS), dtype=jnp.float32)
    A = 0.5 * (A + jnp.swapaxes(A, -1, -2)) * (1.0 - jnp.eye(ROIS, dtype=jnp.float32)[None])

    params = make_params(k_p)
    pp = prepare_params(params)            # one-time weight re-layout, outside jit

    fwd = jax.jit(forward)
    outs = fwd(A, x, pp)
    outs = jax.block_until_ready(outs)

    refs = reference(A, x, params)
    for o, r in zip(outs, refs):
        assert o.shape == r.shape, (o.shape, r.shape)
        assert jnp.allclose(o, r, rtol=1e-4, atol=1e-4), float(jnp.max(jnp.abs(o - r)))

    print("KERNEL_OK")
</pallas_src>

<mosaic_0001>
module attributes {stable_mosaic.version = 11 : i64} {
  func.func @_gcn_stack_kernel(%arg0: i32, %arg1: memref<2x90x90xf32, #tpu.memory_space<vmem>>, %arg2: memref<2x3x90xf32, #tpu.memory_space<vmem>>, %arg3: memref<16x3xf32, #tpu.memory_space<vmem>>, %arg4: memref<16x1xf32, #tpu.memory_space<vmem>>, %arg5: memref<2x16x16xf32, #tpu.memory_space<vmem>>, %arg6: memref<2x16x1xf32, #tpu.memory_space<vmem>>, %arg7: memref<2x48x90xf32, #tpu.memory_space<vmem>>) attributes {dimension_semantics = [#tpu.dimension_semantics<parallel>], iteration_bounds = array<i64: 1>, scalar_prefetch = 0 : i64, scratch_operands = 0 : i64, tpu.core_type = #tpu.core_type<tc>, window_params = [{transform_indices = @transform_0, window_bounds = array<i64: 2, 90, 90>}, {transform_indices = @transform_1, window_bounds = array<i64: 2, 3, 90>}, {pipeline_mode = #tpu.pipeline_mode<synchronous>, transform_indices = @transform_2, window_bounds = array<i64: 16, 3>}, {pipeline_mode = #tpu.pipeline_mode<synchronous>, transform_indices = @transform_3, window_bounds = array<i64: 16, 1>}, {pipeline_mode = #tpu.pipeline_mode<synchronous>, transform_indices = @transform_4, window_bounds = array<i64: 2, 16, 16>}, {pipeline_mode = #tpu.pipeline_mode<synchronous>, transform_indices = @transform_5, window_bounds = array<i64: 2, 16, 1>}, {transform_indices = @transform_6, window_bounds = array<i64: 2, 48, 90>}]} {
    %c0 = arith.constant 0 : index
    %c0_0 = arith.constant 0 : index
    %c0_1 = arith.constant 0 : index
    %0 = vector.load %arg1[%c0, %c0_0, %c0_1] : memref<2x90x90xf32, #tpu.memory_space<vmem>>, vector<2x90x90xf32>
    %1 = tpu.iota {dimensions = array<i32: 0>} : vector<90x90xi32>
    %2 = tpu.iota {dimensions = array<i32: 1>} : vector<90x90xi32>
    %3 = arith.cmpi eq, %1, %2 : vector<90x90xi32>
    %4 = arith.extui %3 : vector<90x90xi1> to vector<90x90xi32>
    %5 = arith.sitofp %4 : vector<90x90xi32> to vector<90x90xf32>
    %6 = vector.shape_cast %5 : vector<90x90xf32> to vector<1x90x90xf32>
    %7 = vector.broadcast %6 : vector<1x90x90xf32> to vector<2x90x90xf32>
    %8 = arith.addf %0, %7 : vector<2x90x90xf32>
    %cst = arith.constant dense<0.000000e+00> : vector<2x90xf32>
    %9 = vector.multi_reduction <add>, %8, %cst [2] : vector<2x90x90xf32> to vector<2x90xf32>
    %10 = vector.shape_cast %9 : vector<2x90xf32> to vector<2x90x1xf32>
    %cst_2 = arith.constant dense<0.000000e+00> : vector<2x90xf32>
    %11 = vector.multi_reduction <add>, %8, %cst_2 [1] : vector<2x90x90xf32> to vector<2x90xf32>
    %12 = vector.shape_cast %11 : vector<2x90xf32> to vector<2x1x90xf32>
    %cst_3 = arith.constant 0.000000e+00 : f32
    %13 = vector.broadcast %cst_3 : f32 to vector<2x90x1xf32>
    %14 = arith.cmpf ogt, %10, %13 : vector<2x90x1xf32>
    %15 = math.rsqrt %10 : vector<2x90x1xf32>
    %cst_4 = arith.constant 0.000000e+00 : f32
    %16 = vector.broadcast %cst_4 : f32 to vector<2x90x1xf32>
    %17 = arith.select %14, %15, %16 : vector<2x90x1xi1>, vector<2x90x1xf32>
    %cst_5 = arith.constant 0.000000e+00 : f32
    %18 = vector.broadcast %cst_5 : f32 to vector<2x1x90xf32>
    %19 = arith.cmpf ogt, %12, %18 : vector<2x1x90xf32>
    %20 = math.rsqrt %12 : vector<2x1x90xf32>
    %cst_6 = arith.constant 0.000000e+00 : f32
    %21 = vector.broadcast %cst_6 : f32 to vector<2x1x90xf32>
    %22 = arith.select %19, %20, %21 : vector<2x1x90xi1>, vector<2x1x90xf32>
    %23 = vector.broadcast %17 : vector<2x90x1xf32> to vector<2x90x90xf32>
    %24 = arith.mulf %8, %23 : vector<2x90x90xf32>
    %25 = vector.broadcast %22 : vector<2x1x90xf32> to vector<2x90x90xf32>
    %26 = arith.mulf %24, %25 : vector<2x90x90xf32>
    %c0_7 = arith.constant 0 : index
    %c0_8 = arith.constant 0 : index
    %c0_9 = arith.constant 0 : index
    %27 = vector.load %arg2[%c0_7, %c0_8, %c0_9] : memref<2x3x90xf32, #tpu.memory_space<vmem>>, vector<2x3x90xf32>
    %c0_10 = arith.constant 0 : index
    %c0_11 = arith.constant 0 : index
    %28 = vector.load %arg3[%c0_10, %c0_11] : memref<16x3xf32, #tpu.memory_space<vmem>>, vector<16x3xf32>
    %29 = vector.extract_strided_slice %27 {offsets = [0, 0, 0], sizes = [2, 1, 90], strides = [1, 1, 1]} : vector<2x3x90xf32> to vector<2x1x90xf32>
    %30 = vector.extract_strided_slice %28 {offsets = [0, 0], sizes = [16, 1], strides = [1, 1]} : vector<16x3xf32> to vector<16x1xf32>
    %31 = vector.shape_cast %30 : vector<16x1xf32> to vector<1x16x1xf32>
    %32 = vector.broadcast %29 : vector<2x1x90xf32> to vector<2x16x90xf32>
    %33 = vector.broadcast %31 : vector<1x16x1xf32> to vector<2x16x90xf32>
    %34 = arith.mulf %32, %33 : vector<2x16x90xf32>
    %35 = vector.extract_strided_slice %27 {offsets = [0, 1, 0], sizes = [2, 1, 90], strides = [1, 1, 1]} : vector<2x3x90xf32> to vector<2x1x90xf32>
    %36 = vector.extract_strided_slice %28 {offsets = [0, 1], sizes = [16, 1], strides = [1, 1]} : vector<16x3xf32> to vector<16x1xf32>
    %37 = vector.shape_cast %36 : vector<16x1xf32> to vector<1x16x1xf32>
    %38 = vector.broadcast %35 : vector<2x1x90xf32> to vector<2x16x90xf32>
    %39 = vector.broadcast %37 : vector<1x16x1xf32> to vector<2x16x90xf32>
    %40 = arith.mulf %38, %39 : vector<2x16x90xf32>
    %41 = arith.addf %34, %40 : vector<2x16x90xf32>
    %42 = vector.extract_strided_slice %27 {offsets = [0, 2, 0], sizes = [2, 1, 90], strides = [1, 1, 1]} : vector<2x3x90xf32> to vector<2x1x90xf32>
    %43 = vector.extract_strided_slice %28 {offsets = [0, 2], sizes = [16, 1], strides = [1, 1]} : vector<16x3xf32> to vector<16x1xf32>
    %44 = vector.shape_cast %43 : vector<16x1xf32> to vector<1x16x1xf32>
    %45 = vector.broadcast %42 : vector<2x1x90xf32> to vector<2x16x90xf32>
    %46 = vector.broadcast %44 : vector<1x16x1xf32> to vector<2x16x90xf32>
    %47 = arith.mulf %45, %46 : vector<2x16x90xf32>
    %48 = arith.addf %41, %47 : vector<2x16x90xf32>
    "tpu.trace_start"() <{level = 10 : i32, message = "bhj,bji->bhi"}> : () -> ()
    %cst_12 = arith.constant dense<0.000000e+00> : vector<2x16x90xf32>
    %49 = tpu.matmul %48, %26, %cst_12 {dimension_numbers = #tpu.dot_dimension_numbers<[2], [1], [1], [2], [0, 0, 0, 1, 1, 2], [0], [0]>} : vector<2x16x90xf32>, vector<2x90x90xf32>, vector<2x16x90xf32> -> vector<2x16x90xf32>
    "tpu.trace_stop"() : () -> ()
    %c0_13 = arith.constant 0 : index
    %c0_14 = arith.constant 0 : index
    %50 = vector.load %arg4[%c0_13, %c0_14] : memref<16x1xf32, #tpu.memory_space<vmem>>, vector<16x1xf32>
    %51 = vector.shape_cast %50 : vector<16x1xf32> to vector<1x16x1xf32>
    %52 = vector.broadcast %51 : vector<1x16x1xf32> to vector<2x16x90xf32>
    %53 = arith.addf %49, %52 : vector<2x16x90xf32>
    %cst_15 = arith.constant 0.000000e+00 : f32
    %54 = vector.broadcast %cst_15 : f32 to vector<2x16x90xf32>
    %55 = arith.maximumf %53, %54 : vector<2x16x90xf32>
    %c0_16 = arith.constant 0 : index
    %c0_17 = arith.constant 0 : index
    %c0_18 = arith.constant 0 : index
    %56 = vector.load %arg7[%c0_16, %c0_17, %c0_18] : memref<2x48x90xf32, #tpu.memory_space<vmem>>, vector<2x16x90xf32>
    tpu.vector_store %arg7[%c0_16, %c0_17, %c0_18], %55 {strides = array<i32>} : memref<2x48x90xf32, #tpu.memory_space<vmem>>, vector<2x16x90xf32>,
    %c0_19 = arith.constant 0 : index
    %c0_20 = arith.constant 0 : index
    %c0_21 = arith.constant 0 : index
    %57 = vector.load %arg5[%c0_19, %c0_20, %c0_21] : memref<2x16x16xf32, #tpu.memory_space<vmem>>, vector<1x16x16xf32>
    %58 = vector.shape_cast %57 : vector<1x16x16xf32> to vector<16x16xf32>
    %59 = vector.extract_strided_slice %55 {offsets = [0, 0, 0], sizes = [2, 1, 90], strides = [1, 1, 1]} : vector<2x16x90xf32> to vector<2x1x90xf32>
    %60 = vector.extract_strided_slice %58 {offsets = [0, 0], sizes = [16, 1], strides = [1, 1]} : vector<16x16xf32> to vector<16x1xf32>
    %61 = vector.shape_cast %60 : vector<16x1xf32> to vector<1x16x1xf32>
    %62 = vector.broadcast %59 : vector<2x1x90xf32> to vector<2x16x90xf32>
    %63 = vector.broadcast %61 : vector<1x16x1xf32> to vector<2x16x90xf32>
    %64 = arith.mulf %62, %63 : vector<2x16x90xf32>
    %65 = vector.extract_strided_slice %55 {offsets = [0, 1, 0], sizes = [2, 1, 90], strides = [1, 1, 1]} : vector<2x16x90xf32> to vector<2x1x90xf32>
    %66 = vector.extract_strided_slice %58 {offsets = [0, 1], sizes = [16, 1], strides = [1, 1]} : vector<16x16xf32> to vector<16x1xf32>
    %67 = vector.shape_cast %66 : vector<16x1xf32> to vector<1x16x1xf32>
    %68 = vector.broadcast %65 : vector<2x1x90xf32> to vector<2x16x90xf32>
    %69 = vector.broadcast %67 : vector<1x16x1xf32> to vector<2x16x90xf32>
    %70 = arith.mulf %68, %69 : vector<2x16x90xf32>
    %71 = arith.addf %64, %70 : vector<2x16x90xf32>
    %72 = vector.extract_strided_slice %55 {offsets = [0, 2, 0], sizes = [2, 1, 90], strides = [1, 1, 1]} : vector<2x16x90xf32> to vector<2x1x90xf32>
    %73 = vector.extract_strided_slice %58 {offsets = [0, 2], sizes = [16, 1], strides = [1, 1]} : vector<16x16xf32> to vector<16x1xf32>
    %74 = vector.shape_cast %73 : vector<16x1xf32> to vector<1x16x1xf32>
    %75 = vector.broadcast %72 : vector<2x1x90xf32> to vector<2x16x90xf32>
    %76 = vector.broadcast %74 : vector<1x16x1xf32> to vector<2x16x90xf32>
    %77 = arith.mulf %75, %76 : vector<2x16x90xf32>
    %78 = arith.addf %71, %77 : vector<2x16x90xf32>
    %79 = vector.extract_strided_slice %55 {offsets = [0, 3, 0], sizes = [2, 1, 90], strides = [1, 1, 1]} : vector<2x16x90xf32> to vector<2x1x90xf32>
    %80 = vector.extract_strided_slice %58 {offsets = [0, 3], sizes = [16, 1], strides = [1, 1]} : vector<16x16xf32> to vector<16x1xf32>
    %81 = vector.shape_cast %80 : vector<16x1xf32> to vector<1x16x1xf32>
    %82 = vector.broadcast %79 : vector<2x1x90xf32> to vector<2x16x90xf32>
    %83 = vector.broadcast %81 : vector<1x16x1xf32> to vector<2x16x90xf32>
    %84 = arith.mulf %82, %83 : vector<2x16x90xf32>
    %85 = arith.addf %78, %84 : vector<2x16x90xf32>
    %86 = vector.extract_strided_slice %55 {offsets = [0, 4, 0], sizes = [2, 1, 90], strides = [1, 1, 1]} : vector<2x16x90xf32> to vector<2x1x90xf32>
    %87 = vector.extract_strided_slice %58 {offsets = [0, 4], sizes = [16, 1], strides = [1, 1]} : vector<16x16xf32> to vector<16x1xf32>
    %88 = vector.shape_cast %87 : vector<16x1xf32> to vector<1x16x1xf32>
    %89 = vector.broadcast %86 : vector<2x1x90xf32> to vector<2x16x90xf32>
    %90 = vector.broadcast %88 : vector<1x16x1xf32> to vector<2x16x90xf32>
    %91 = arith.mulf %89, %90 : vector<2x16x90xf32>
    %92 = arith.addf %85, %91 : vector<2x16x90xf32>
    %93 = vector.extract_strided_slice %55 {offsets = [0, 5, 0], sizes = [2, 1, 90], strides = [1, 1, 1]} : vector<2x16x90xf32> to vector<2x1x90xf32>
    %94 = vector.extract_strided_slice %58 {offsets = [0, 5], sizes = [16, 1], strides = [1, 1]} : vector<16x16xf32> to vector<16x1xf32>
    %95 = vector.shape_cast %94 : vector<16x1xf32> to vector<1x16x1xf32>
    %96 = vector.broadcast %93 : vector<2x1x90xf32> to vector<2x16x90xf32>
    %97 = vector.broadcast %95 : vector<1x16x1xf32> to vector<2x16x90xf32>
    %98 = arith.mulf %96, %97 : vector<2x16x90xf32>
    %99 = arith.addf %92, %98 : vector<2x16x90xf32>
    %100 = vector.extract_strided_slice %55 {offsets = [0, 6, 0], sizes = [2, 1, 90], strides = [1, 1, 1]} : vector<2x16x90xf32> to vector<2x1x90xf32>
    %101 = vector.extract_strided_slice %58 {offsets = [0, 6], sizes = [16, 1], strides = [1, 1]} : vector<16x16xf32> to vector<16x1xf32>
    %102 = vector.shape_cast %101 : vector<16x1xf32> to vector<1x16x1xf32>
    %103 = vector.broadcast %100 : vector<2x1x90xf32> to vector<2x16x90xf32>
    %104 = vector.broadcast %102 : vector<1x16x1xf32> to vector<2x16x90xf32>
    %105 = arith.mulf %103, %104 : vector<2x16x90xf32>
    %106 = arith.addf %99, %105 : vector<2x16x90xf32>
    %107 = vector.extract_strided_slice %55 {offsets = [0, 7, 0], sizes = [2, 1, 90], strides = [1, 1, 1]} : vector<2x16x90xf32> to vector<2x1x90xf32>
    %108 = vector.extract_strided_slice %58 {offsets = [0, 7], sizes = [16, 1], strides = [1, 1]} : vector<16x16xf32> to vector<16x1xf32>
    %109 = vector.shape_cast %108 : vector<16x1xf32> to vector<1x16x1xf32>
    %110 = vector.broadcast %107 : vector<2x1x90xf32> to vector<2x16x90xf32>
    %111 = vector.broadcast %109 : vector<1x16x1xf32> to vector<2x16x90xf32>
    %112 = arith.mulf %110, %111 : vector<2x16x90xf32>
    %113 = arith.addf %106, %112 : vector<2x16x90xf32>
    %114 = vector.extract_strided_slice %55 {offsets = [0, 8, 0], sizes = [2, 1, 90], strides = [1, 1, 1]} : vector<2x16x90xf32> to vector<2x1x90xf32>
    %115 = vector.extract_strided_slice %58 {offsets = [0, 8], sizes = [16, 1], strides = [1, 1]} : vector<16x16xf32> to vector<16x1xf32>
    %116 = vector.shape_cast %115 : vector<16x1xf32> to vector<1x16x1xf32>
    %117 = vector.broadcast %114 : vector<2x1x90xf32> to vector<2x16x90xf32>
    %118 = vector.broadcast %116 : vector<1x16x1xf32> to vector<2x16x90xf32>
    %119 = arith.mulf %117, %118 : vector<2x16x90xf32>
    %120 = arith.addf %113, %119 : vector<2x16x90xf32>
    %121 = vector.extract_strided_slice %55 {offsets = [0, 9, 0], sizes = [2, 1, 90], strides = [1, 1, 1]} : vector<2x16x90xf32> to vector<2x1x90xf32>
    %122 = vector.extract_strided_slice %58 {offsets = [0, 9], sizes = [16, 1], strides = [1, 1]} : vector<16x16xf32> to vector<16x1xf32>
    %123 = vector.shape_cast %122 : vector<16x1xf32> to vector<1x16x1xf32>
    %124 = vector.broadcast %121 : vector<2x1x90xf32> to vector<2x16x90xf32>
    %125 = vector.broadcast %123 : vector<1x16x1xf32> to vector<2x16x90xf32>
    %126 = arith.mulf %124, %125 : vector<2x16x90xf32>
    %127 = arith.addf %120, %126 : vector<2x16x90xf32>
    %128 = vector.extract_strided_slice %55 {offsets = [0, 10, 0], sizes = [2, 1, 90], strides = [1, 1, 1]} : vector<2x16x90xf32> to vector<2x1x90xf32>
    %129 = vector.extract_strided_slice %58 {offsets = [0, 10], sizes = [16, 1], strides = [1, 1]} : vector<16x16xf32> to vector<16x1xf32>
    %130 = vector.shape_cast %129 : vector<16x1xf32> to vector<1x16x1xf32>
    %131 = vector.broadcast %128 : vector<2x1x90xf32> to vector<2x16x90xf32>
    %132 = vector.broadcast %130 : vector<1x16x1xf32> to vector<2x16x90xf32>
    %133 = arith.mulf %131, %132 : vector<2x16x90xf32>
    %134 = arith.addf %127, %133 : vector<2x16x90xf32>
    %135 = vector.extract_strided_slice %55 {offsets = [0, 11, 0], sizes = [2, 1, 90], strides = [1, 1, 1]} : vector<2x16x90xf32> to vector<2x1x90xf32>
    %136 = vector.extract_strided_slice %58 {offsets = [0, 11], sizes = [16, 1], strides = [1, 1]} : vector<16x16xf32> to vector<16x1xf32>
    %137 = vector.shape_cast %136 : vector<16x1xf32> to vector<1x16x1xf32>
    %138 = vector.broadcast %135 : vector<2x1x90xf32> to vector<2x16x90xf32>
    %139 = vector.broadcast %137 : vector<1x16x1xf32> to vector<2x16x90xf32>
    %140 = arith.mulf %138, %139 : vector<2x16x90xf32>
    %141 = arith.addf %134, %140 : vector<2x16x90xf32>
    %142 = vector.extract_strided_slice %55 {offsets = [0, 12, 0], sizes = [2, 1, 90], strides = [1, 1, 1]} : vector<2x16x90xf32> to vector<2x1x90xf32>
    %143 = vector.extract_strided_slice %58 {offsets = [0, 12], sizes = [16, 1], strides = [1, 1]} : vector<16x16xf32> to vector<16x1xf32>
    %144 = vector.shape_cast %143 : vector<16x1xf32> to vector<1x16x1xf32>
    %145 = vector.broadcast %142 : vector<2x1x90xf32> to vector<2x16x90xf32>
    %146 = vector.broadcast %144 : vector<1x16x1xf32> to vector<2x16x90xf32>
    %147 = arith.mulf %145, %146 : vector<2x16x90xf32>
    %148 = arith.addf %141, %147 : vector<2x16x90xf32>
    %149 = vector.extract_strided_slice %55 {offsets = [0, 13, 0], sizes = [2, 1, 90], strides = [1, 1, 1]} : vector<2x16x90xf32> to vector<2x1x90xf32>
    %150 = vector.extract_strided_slice %58 {offsets = [0, 13], sizes = [16, 1], strides = [1, 1]} : vector<16x16xf32> to vector<16x1xf32>
    %151 = vector.shape_cast %150 : vector<16x1xf32> to vector<1x16x1xf32>
    %152 = vector.broadcast %149 : vector<2x1x90xf32> to vector<2x16x90xf32>
    %153 = vector.broadcast %151 : vector<1x16x1xf32> to vector<2x16x90xf32>
    %154 = arith.mulf %152, %153 : vector<2x16x90xf32>
    %155 = arith.addf %148, %154 : vector<2x16x90xf32>
    %156 = vector.extract_strided_slice %55 {offsets = [0, 14, 0], sizes = [2, 1, 90], strides = [1, 1, 1]} : vector<2x16x90xf32> to vector<2x1x90xf32>
    %157 = vector.extract_strided_slice %58 {offsets = [0, 14], sizes = [16, 1], strides = [1, 1]} : vector<16x16xf32> to vector<16x1xf32>
    %158 = vector.shape_cast %157 : vector<16x1xf32> to vector<1x16x1xf32>
    %159 = vector.broadcast %156 : vector<2x1x90xf32> to vector<2x16x90xf32>
    %160 = vector.broadcast %158 : vector<1x16x1xf32> to vector<2x16x90xf32>
    %161 = arith.mulf %159, %160 : vector<2x16x90xf32>
    %162 = arith.addf %155, %161 : vector<2x16x90xf32>
    %163 = vector.extract_strided_slice %55 {offsets = [0, 15, 0], sizes = [2, 1, 90], strides = [1, 1, 1]} : vector<2x16x90xf32> to vector<2x1x90xf32>
    %164 = vector.extract_strided_slice %58 {offsets = [0, 15], sizes = [16, 1], strides = [1, 1]} : vector<16x16xf32> to vector<16x1xf32>
    %165 = vector.shape_cast %164 : vector<16x1xf32> to vector<1x16x1xf32>
    %166 = vector.broadcast %163 : vector<2x1x90xf32> to vector<2x16x90xf32>
    %167 = vector.broadcast %165 : vector<1x16x1xf32> to vector<2x16x90xf32>
    %168 = arith.mulf %166, %167 : vector<2x16x90xf32>
    %169 = arith.addf %162, %168 : vector<2x16x90xf32>
    "tpu.trace_start"() <{level = 10 : i32, message = "bhj,bji->bhi"}> : () -> ()
    %cst_22 = arith.constant dense<0.000000e+00> : vector<2x16x90xf32>
    %170 = tpu.matmul %169, %26, %cst_22 {dimension_numbers = #tpu.dot_dimension_numbers<[2], [1], [1], [2], [0, 0, 0, 1, 1, 2], [0], [0]>} : vector<2x16x90xf32>, vector<2x90x90xf32>, vector<2x16x90xf32> -> vector<2x16x90xf32>
    "tpu.trace_stop"() : () -> ()
    %c0_23 = arith.constant 0 : index
    %c0_24 = arith.constant 0 : index
    %c0_25 = arith.constant 0 : index
    %171 = vector.load %arg6[%c0_23, %c0_24, %c0_25] : memref<2x16x1xf32, #tpu.memory_space<vmem>>, vector<1x16x1xf32>
    %172 = vector.shape_cast %171 : vector<1x16x1xf32> to vector<16x1xf32>
    %173 = vector.shape_cast %172 : vector<16x1xf32> to vector<1x16x1xf32>
    %174 = vector.broadcast %173 : vector<1x16x1xf32> to vector<2x16x90xf32>
    %175 = arith.addf %170, %174 : vector<2x16x90xf32>
    %cst_26 = arith.constant 0.000000e+00 : f32
    %176 = vector.broadcast %cst_26 : f32 to vector<2x16x90xf32>
    %177 = arith.maximumf %175, %176 : vector<2x16x90xf32>
    %c0_27 = arith.constant 0 : index
    %c16 = arith.constant 16 : index
    %c0_28 = arith.constant 0 : index
    %178 = vector.load %arg7[%c0_27, %c16, %c0_28] : memref<2x48x90xf32, #tpu.memory_space<vmem>>, vector<2x16x90xf32>
    tpu.vector_store %arg7[%c0_27, %c16, %c0_28], %177 {strides = array<i32>} : memref<2x48x90xf32, #tpu.memory_space<vmem>>, vector<2x16x90xf32>,
    %c1 = arith.constant 1 : index
    %c0_29 = arith.constant 0 : index
    %c0_30 = arith.constant 0 : index
    %179 = vector.load %arg5[%c1, %c0_29, %c0_30] : memref<2x16x16xf32, #tpu.memory_space<vmem>>, vector<1x16x16xf32>
    %180 = vector.shape_cast %179 : vector<1x16x16xf32> to vector<16x16xf32>
    %181 = vector.extract_strided_slice %177 {offsets = [0, 0, 0], sizes = [2, 1, 90], strides = [1, 1, 1]} : vector<2x16x90xf32> to vector<2x1x90xf32>
    %182 = vector.extract_strided_slice %180 {offsets = [0, 0], sizes = [16, 1], strides = [1, 1]} : vector<16x16xf32> to vector<16x1xf32>
    %183 = vector.shape_cast %182 : vector<16x1xf32> to vector<1x16x1xf32>
    %184 = vector.broadcast %181 : vector<2x1x90xf32> to vector<2x16x90xf32>
    %185 = vector.broadcast %183 : vector<1x16x1xf32> to vector<2x16x90xf32>
    %186 = arith.mulf %184, %185 : vector<2x16x90xf32>
    %187 = vector.extract_strided_slice %177 {offsets = [0, 1, 0], sizes = [2, 1, 90], strides = [1, 1, 1]} : vector<2x16x90xf32> to vector<2x1x90xf32>
    %188 = vector.extract_strided_slice %180 {offsets = [0, 1], sizes = [16, 1], strides = [1, 1]} : vector<16x16xf32> to vector<16x1xf32>
    %189 = vector.shape_cast %188 : vector<16x1xf32> to vector<1x16x1xf32>
    %190 = vector.broadcast %187 : vector<2x1x90xf32> to vector<2x16x90xf32>
    %191 = vector.broadcast %189 : vector<1x16x1xf32> to vector<2x16x90xf32>
    %192 = arith.mulf %190, %191 : vector<2x16x90xf32>
    %193 = arith.addf %186, %192 : vector<2x16x90xf32>
    %194 = vector.extract_strided_slice %177 {offsets = [0, 2, 0], sizes = [2, 1, 90], strides = [1, 1, 1]} : vector<2x16x90xf32> to vector<2x1x90xf32>
    %195 = vector.extract_strided_slice %180 {offsets = [0, 2], sizes = [16, 1], strides = [1, 1]} : vector<16x16xf32> to vector<16x1xf32>
    %196 = vector.shape_cast %195 : vector<16x1xf32> to vector<1x16x1xf32>
    %197 = vector.broadcast %194 : vector<2x1x90xf32> to vector<2x16x90xf32>
    %198 = vector.broadcast %196 : vector<1x16x1xf32> to vector<2x16x90xf32>
    %199 = arith.mulf %197, %198 : vector<2x16x90xf32>
    %200 = arith.addf %193, %199 : vector<2x16x90xf32>
    %201 = vector.extract_strided_slice %177 {offsets = [0, 3, 0], sizes = [2, 1, 90], strides = [1, 1, 1]} : vector<2x16x90xf32> to vector<2x1x90xf32>
    %202 = vector.extract_strided_slice %180 {offsets = [0, 3], sizes = [16, 1], strides = [1, 1]} : vector<16x16xf32> to vector<16x1xf32>
    %203 = vector.shape_cast %202 : vector<16x1xf32> to vector<1x16x1xf32>
    %204 = vector.broadcast %201 : vector<2x1x90xf32> to vector<2x16x90xf32>
    %205 = vector.broadcast %203 : vector<1x16x1xf32> to vector<2x16x90xf32>
    %206 = arith.mulf %204, %205 : vector<2x16x90xf32>
    %207 = arith.addf %200, %206 : vector<2x16x90xf32>
    %208 = vector.extract_strided_slice %177 {offsets = [0, 4, 0], sizes = [2, 1, 90], strides = [1, 1, 1]} : vector<2x16x90xf32> to vector<2x1x90xf32>
    %209 = vector.extract_strided_slice %180 {offsets = [0, 4], sizes = [16, 1], strides = [1, 1]} : vector<16x16xf32> to vector<16x1xf32>
    %210 = vector.shape_cast %209 : vector<16x1xf32> to vector<1x16x1xf32>
    %211 = vector.broadcast %208 : vector<2x1x90xf32> to vector<2x16x90xf32>
    %212 = vector.broadcast %210 : vector<1x16x1xf32> to vector<2x16x90xf32>
    %213 = arith.mulf %211, %212 : vector<2x16x90xf32>
    %214 = arith.addf %207, %213 : vector<2x16x90xf32>
    %215 = vector.extract_strided_slice %177 {offsets = [0, 5, 0], sizes = [2, 1, 90], strides = [1, 1, 1]} : vector<2x16x90xf32> to vector<2x1x90xf32>
    %216 = vector.extract_strided_slice %180 {offsets = [0, 5], sizes = [16, 1], strides = [1, 1]} : vector<16x16xf32> to vector<16x1xf32>
    %217 = vector.shape_cast %216 : vector<16x1xf32> to vector<1x16x1xf32>
    %218 = vector.broadcast %215 : vector<2x1x90xf32> to vector<2x16x90xf32>
    %219 = vector.broadcast %217 : vector<1x16x1xf32> to vector<2x16x90xf32>
    %220 = arith.mulf %218, %219 : vector<2x16x90xf32>
    %221 = arith.addf %214, %220 : vector<2x16x90xf32>
    %222 = vector.extract_strided_slice %177 {offsets = [0, 6, 0], sizes = [2, 1, 90], strides = [1, 1, 1]} : vector<2x16x90xf32> to vector<2x1x90xf32>
    %223 = vector.extract_strided_slice %180 {offsets = [0, 6], sizes = [16, 1], strides = [1, 1]} : vector<16x16xf32> to vector<16x1xf32>
    %224 = vector.shape_cast %223 : vector<16x1xf32> to vector<1x16x1xf32>
    %225 = vector.broadcast %222 : vector<2x1x90xf32> to vector<2x16x90xf32>
    %226 = vector.broadcast %224 : vector<1x16x1xf32> to vector<2x16x90xf32>
    %227 = arith.mulf %225, %226 : vector<2x16x90xf32>
    %228 = arith.addf %221, %227 : vector<2x16x90xf32>
    %229 = vector.extract_strided_slice %177 {offsets = [0, 7, 0], sizes = [2, 1, 90], strides = [1, 1, 1]} : vector<2x16x90xf32> to vector<2x1x90xf32>
    %230 = vector.extract_strided_slice %180 {offsets = [0, 7], sizes = [16, 1], strides = [1, 1]} : vector<16x16xf32> to vector<16x1xf32>
    %231 = vector.shape_cast %230 : vector<16x1xf32> to vector<1x16x1xf32>
    %232 = vector.broadcast %229 : vector<2x1x90xf32> to vector<2x16x90xf32>
    %233 = vector.broadcast %231 : vector<1x16x1xf32> to vector<2x16x90xf32>
    %234 = arith.mulf %232, %233 : vector<2x16x90xf32>
    %235 = arith.addf %228, %234 : vector<2x16x90xf32>
    %236 = vector.extract_strided_slice %177 {offsets = [0, 8, 0], sizes = [2, 1, 90], strides = [1, 1, 1]} : vector<2x16x90xf32> to vector<2x1x90xf32>
    %237 = vector.extract_strided_slice %180 {offsets = [0, 8], sizes = [16, 1], strides = [1, 1]} : vector<16x16xf32> to vector<16x1xf32>
    %238 = vector.shape_cast %237 : vector<16x1xf32> to vector<1x16x1xf32>
    %239 = vector.broadcast %236 : vector<2x1x90xf32> to vector<2x16x90xf32>
    %240 = vector.broadcast %238 : vector<1x16x1xf32> to vector<2x16x90xf32>
    %241 = arith.mulf %239, %240 : vector<2x16x90xf32>
    %242 = arith.addf %235, %241 : vector<2x16x90xf32>
    %243 = vector.extract_strided_slice %177 {offsets = [0, 9, 0], sizes = [2, 1, 90], strides = [1, 1, 1]} : vector<2x16x90xf32> to vector<2x1x90xf32>
    %244 = vector.extract_strided_slice %180 {offsets = [0, 9], sizes = [16, 1], strides = [1, 1]} : vector<16x16xf32> to vector<16x1xf32>
    %245 = vector.shape_cast %244 : vector<16x1xf32> to vector<1x16x1xf32>
    %246 = vector.broadcast %243 : vector<2x1x90xf32> to vector<2x16x90xf32>
    %247 = vector.broadcast %245 : vector<1x16x1xf32> to vector<2x16x90xf32>
    %248 = arith.mulf %246, %247 : vector<2x16x90xf32>
    %249 = arith.addf %242, %248 : vector<2x16x90xf32>
    %250 = vector.extract_strided_slice %177 {offsets = [0, 10, 0], sizes = [2, 1, 90], strides = [1, 1, 1]} : vector<2x16x90xf32> to vector<2x1x90xf32>
    %251 = vector.extract_strided_slice %180 {offsets = [0, 10], sizes = [16, 1], strides = [1, 1]} : vector<16x16xf32> to vector<16x1xf32>
    %252 = vector.shape_cast %251 : vector<16x1xf32> to vector<1x16x1xf32>
    %253 = vector.broadcast %250 : vector<2x1x90xf32> to vector<2x16x90xf32>
    %254 = vector.broadcast %252 : vector<1x16x1xf32> to vector<2x16x90xf32>
    %255 = arith.mulf %253, %254 : vector<2x16x90xf32>
    %256 = arith.addf %249, %255 : vector<2x16x90xf32>
    %257 = vector.extract_strided_slice %177 {offsets = [0, 11, 0], sizes = [2, 1, 90], strides = [1, 1, 1]} : vector<2x16x90xf32> to vector<2x1x90xf32>
    %258 = vector.extract_strided_slice %180 {offsets = [0, 11], sizes = [16, 1], strides = [1, 1]} : vector<16x16xf32> to vector<16x1xf32>
    %259 = vector.shape_cast %258 : vector<16x1xf32> to vector<1x16x1xf32>
    %260 = vector.broadcast %257 : vector<2x1x90xf32> to vector<2x16x90xf32>
    %261 = vector.broadcast %259 : vector<1x16x1xf32> to vector<2x16x90xf32>
    %262 = arith.mulf %260, %261 : vector<2x16x90xf32>
    %263 = arith.addf %256, %262 : vector<2x16x90xf32>
    %264 = vector.extract_strided_slice %177 {offsets = [0, 12, 0], sizes = [2, 1, 90], strides = [1, 1, 1]} : vector<2x16x90xf32> to vector<2x1x90xf32>
    %265 = vector.extract_strided_slice %180 {offsets = [0, 12], sizes = [16, 1], strides = [1, 1]} : vector<16x16xf32> to vector<16x1xf32>
    %266 = vector.shape_cast %265 : vector<16x1xf32> to vector<1x16x1xf32>
    %267 = vector.broadcast %264 : vector<2x1x90xf32> to vector<2x16x90xf32>
    %268 = vector.broadcast %266 : vector<1x16x1xf32> to vector<2x16x90xf32>
    %269 = arith.mulf %267, %268 : vector<2x16x90xf32>
    %270 = arith.addf %263, %269 : vector<2x16x90xf32>
    %271 = vector.extract_strided_slice %177 {offsets = [0, 13, 0], sizes = [2, 1, 90], strides = [1, 1, 1]} : vector<2x16x90xf32> to vector<2x1x90xf32>
    %272 = vector.extract_strided_slice %180 {offsets = [0, 13], sizes = [16, 1], strides = [1, 1]} : vector<16x16xf32> to vector<16x1xf32>
    %273 = vector.shape_cast %272 : vector<16x1xf32> to vector<1x16x1xf32>
    %274 = vector.broadcast %271 : vector<2x1x90xf32> to vector<2x16x90xf32>
    %275 = vector.broadcast %273 : vector<1x16x1xf32> to vector<2x16x90xf32>
    %276 = arith.mulf %274, %275 : vector<2x16x90xf32>
    %277 = arith.addf %270, %276 : vector<2x16x90xf32>
    %278 = vector.extract_strided_slice %177 {offsets = [0, 14, 0], sizes = [2, 1, 90], strides = [1, 1, 1]} : vector<2x16x90xf32> to vector<2x1x90xf32>
    %279 = vector.extract_strided_slice %180 {offsets = [0, 14], sizes = [16, 1], strides = [1, 1]} : vector<16x16xf32> to vector<16x1xf32>
    %280 = vector.shape_cast %279 : vector<16x1xf32> to vector<1x16x1xf32>
    %281 = vector.broadcast %278 : vector<2x1x90xf32> to vector<2x16x90xf32>
    %282 = vector.broadcast %280 : vector<1x16x1xf32> to vector<2x16x90xf32>
    %283 = arith.mulf %281, %282 : vector<2x16x90xf32>
    %284 = arith.addf %277, %283 : vector<2x16x90xf32>
    %285 = vector.extract_strided_slice %177 {offsets = [0, 15, 0], sizes = [2, 1, 90], strides = [1, 1, 1]} : vector<2x16x90xf32> to vector<2x1x90xf32>
    %286 = vector.extract_strided_slice %180 {offsets = [0, 15], sizes = [16, 1], strides = [1, 1]} : vector<16x16xf32> to vector<16x1xf32>
    %287 = vector.shape_cast %286 : vector<16x1xf32> to vector<1x16x1xf32>
    %288 = vector.broadcast %285 : vector<2x1x90xf32> to vector<2x16x90xf32>
    %289 = vector.broadcast %287 : vector<1x16x1xf32> to vector<2x16x90xf32>
    %290 = arith.mulf %288, %289 : vector<2x16x90xf32>
    %291 = arith.addf %284, %290 : vector<2x16x90xf32>
    "tpu.trace_start"() <{level = 10 : i32, message = "bhj,bji->bhi"}> : () -> ()
    %cst_31 = arith.constant dense<0.000000e+00> : vector<2x16x90xf32>
    %292 = tpu.matmul %291, %26, %cst_31 {dimension_numbers = #tpu.dot_dimension_numbers<[2], [1], [1], [2], [0, 0, 0, 1, 1, 2], [0], [0]>} : vector<2x16x90xf32>, vector<2x90x90xf32>, vector<2x16x90xf32> -> vector<2x16x90xf32>
    "tpu.trace_stop"() : () -> ()
    %c1_32 = arith.constant 1 : index
    %c0_33 = arith.constant 0 : index
    %c0_34 = arith.constant 0 : index
    %293 = vector.load %arg6[%c1_32, %c0_33, %c0_34] : memref<2x16x1xf32, #tpu.memory_space<vmem>>, vector<1x16x1xf32>
    %294 = vector.shape_cast %293 : vector<1x16x1xf32> to vector<16x1xf32>
    %295 = vector.shape_cast %294 : vector<16x1xf32> to vector<1x16x1xf32>
    %296 = vector.broadcast %295 : vector<1x16x1xf32> to vector<2x16x90xf32>
    %297 = arith.addf %292, %296 : vector<2x16x90xf32>
    %cst_35 = arith.constant 0.000000e+00 : f32
    %298 = vector.broadcast %cst_35 : f32 to vector<2x16x90xf32>
    %299 = arith.maximumf %297, %298 : vector<2x16x90xf32>
    %c0_36 = arith.constant 0 : index
    %c32 = arith.constant 32 : index
    %c0_37 = arith.constant 0 : index
    %300 = vector.load %arg7[%c0_36, %c32, %c0_37] : memref<2x48x90xf32, #tpu.memory_space<vmem>>, vector<2x16x90xf32>
    tpu.vector_store %arg7[%c0_36, %c32, %c0_37], %299 {strides = array<i32>} : memref<2x48x90xf32, #tpu.memory_space<vmem>>, vector<2x16x90xf32>,
    return
  }
  func.func @transform_0(%arg0: i32) -> (i32, i32, i32) {
    %c0_i32 = arith.constant 0 : i32
    %c0_i32_0 = arith.constant 0 : i32
    %c0_i32_1 = arith.constant 0 : i32
    return %arg0, %c0_i32, %c0_i32_0 : i32, i32, i32
  }
  func.func @transform_1(%arg0: i32) -> (i32, i32, i32) {
    %c0_i32 = arith.constant 0 : i32
    %c0_i32_0 = arith.constant 0 : i32
    %c0_i32_1 = arith.constant 0 : i32
    return %arg0, %c0_i32, %c0_i32_0 : i32, i32, i32
  }
  func.func @transform_2(%arg0: i32) -> (i32, i32) {
    %c0_i32 = arith.constant 0 : i32
    %c0_i32_0 = arith.constant 0 : i32
    %c0_i32_1 = arith.constant 0 : i32
    return %c0_i32, %c0_i32_0 : i32, i32
  }
  func.func @transform_3(%arg0: i32) -> (i32, i32) {
    %c0_i32 = arith.constant 0 : i32
    %c0_i32_0 = arith.constant 0 : i32
    %c0_i32_1 = arith.constant 0 : i32
    return %c0_i32, %c0_i32_0 : i32, i32
  }
  func.func @transform_4(%arg0: i32) -> (i32, i32, i32) {
    %c0_i32 = arith.constant 0 : i32
    %c0_i32_0 = arith.constant 0 : i32
    %c0_i32_1 = arith.constant 0 : i32
    %c0_i32_2 = arith.constant 0 : i32
    return %c0_i32, %c0_i32_0, %c0_i32_1 : i32, i32, i32
  }
  func.func @transform_5(%arg0: i32) -> (i32, i32, i32) {
    %c0_i32 = arith.constant 0 : i32
    %c0_i32_0 = arith.constant 0 : i32
    %c0_i32_1 = arith.constant 0 : i32
    %c0_i32_2 = arith.constant 0 : i32
    return %c0_i32, %c0_i32_0, %c0_i32_1 : i32, i32, i32
  }
  func.func @transform_6(%arg0: i32) -> (i32, i32, i32) {
    %c0_i32 = arith.constant 0 : i32
    %c0_i32_0 = arith.constant 0 : i32
    %c0_i32_1 = arith.constant 0 : i32
    return %arg0, %c0_i32, %c0_i32_0 : i32, i32, i32
  }
}

module attributes {stable_mosaic.version = 11 : i64} {
  func.func @_heads_kernel(%arg0: i32, %arg1: memref<2x4320xf32, #tpu.memory_space<vmem>>, %arg2: memref<2x270xf32, #tpu.memory_space<vmem>>, %arg3: memref<1x270xf32, #tpu.memory_space<vmem>>, %arg4: memref<4320x128xf32, #tpu.memory_space<vmem>>, %arg5: memref<1x128xf32, #tpu.memory_space<vmem>>, %arg6: memref<64x2xf32, #tpu.memory_space<vmem>>, %arg7: memref<1x2xf32, #tpu.memory_space<vmem>>, %arg8: memref<270x64xf32, #tpu.memory_space<vmem>>, %arg9: memref<64x4xf32, #tpu.memory_space<vmem>>, %arg10: memref<1x4xf32, #tpu.memory_space<vmem>>, %arg11: memref<2x128xf32, #tpu.memory_space<vmem>>) attributes {dimension_semantics = [#tpu.dimension_semantics<parallel>], iteration_bounds = array<i64: 1>, scalar_prefetch = 0 : i64, scratch_operands = 0 : i64, tpu.core_type = #tpu.core_type<tc>, window_params = [{transform_indices = @transform_0, window_bounds = array<i64: 2, 4320>}, {transform_indices = @transform_1, window_bounds = array<i64: 2, 270>}, {pipeline_mode = #tpu.pipeline_mode<synchronous>, transform_indices = @transform_2, window_bounds = array<i64: 1, 270>}, {pipeline_mode = #tpu.pipeline_mode<synchronous>, transform_indices = @transform_3, window_bounds = array<i64: 4320, 128>}, {pipeline_mode = #tpu.pipeline_mode<synchronous>, transform_indices = @transform_4, window_bounds = array<i64: 1, 128>}, {pipeline_mode = #tpu.pipeline_mode<synchronous>, transform_indices = @transform_5, window_bounds = array<i64: 64, 2>}, {pipeline_mode = #tpu.pipeline_mode<synchronous>, transform_indices = @transform_6, window_bounds = array<i64: 1, 2>}, {pipeline_mode = #tpu.pipeline_mode<synchronous>, transform_indices = @transform_7, window_bounds = array<i64: 270, 64>}, {pipeline_mode = #tpu.pipeline_mode<synchronous>, transform_indices = @transform_8, window_bounds = array<i64: 64, 4>}, {pipeline_mode = #tpu.pipeline_mode<synchronous>, transform_indices = @transform_9, window_bounds = array<i64: 1, 4>}, {transform_indices = @transform_10, window_bounds = array<i64: 2, 128>}]} {
    %c0 = arith.constant 0 : index
    %c0_0 = arith.constant 0 : index
    %0 = vector.load %arg1[%c0, %c0_0] : memref<2x4320xf32, #tpu.memory_space<vmem>>, vector<2x4320xf32>
    %c0_1 = arith.constant 0 : index
    %c0_2 = arith.constant 0 : index
    %1 = vector.load %arg4[%c0_1, %c0_2] : memref<4320x128xf32, #tpu.memory_space<vmem>>, vector<4320x128xf32>
    %cst = arith.constant dense<0.000000e+00> : vector<2x128xf32>
    %2 = tpu.matmul %0, %1, %cst {dimension_numbers = #tpu.dot_dimension_numbers<[1], [0], [0], [1], [0, 0, 1, 1], [], []>} : vector<2x4320xf32>, vector<4320x128xf32>, vector<2x128xf32> -> vector<2x128xf32>
    %c0_3 = arith.constant 0 : index
    %c0_4 = arith.constant 0 : index
    %3 = vector.load %arg5[%c0_3, %c0_4] : memref<1x128xf32, #tpu.memory_space<vmem>>, vector<1x128xf32>
    %4 = vector.broadcast %3 : vector<1x128xf32> to vector<2x128xf32>
    %5 = arith.addf %2, %4 : vector<2x128xf32>
    %6 = vector.extract_strided_slice %5 {offsets = [0, 0], sizes = [2, 64], strides = [1, 1]} : vector<2x128xf32> to vector<2x64xf32>
    %cst_5 = arith.constant 0.000000e+00 : f32
    %7 = vector.broadcast %cst_5 : f32 to vector<2x64xf32>
    %8 = arith.maximumf %6, %7 : vector<2x64xf32>
    %c0_6 = arith.constant 0 : index
    %c0_7 = arith.constant 0 : index
    %9 = vector.load %arg11[%c0_6, %c0_7] : memref<2x128xf32, #tpu.memory_space<vmem>>, vector<2x64xf32>
    tpu.vector_store %arg11[%c0_6, %c0_7], %8 {strides = array<i32>} : memref<2x128xf32, #tpu.memory_space<vmem>>, vector<2x64xf32>,
    %c0_8 = arith.constant 0 : index
    %c0_9 = arith.constant 0 : index
    %10 = vector.load %arg6[%c0_8, %c0_9] : memref<64x2xf32, #tpu.memory_space<vmem>>, vector<64x2xf32>
    %cst_10 = arith.constant dense<0.000000e+00> : vector<2x2xf32>
    %11 = tpu.matmul %8, %10, %cst_10 {dimension_numbers = #tpu.dot_dimension_numbers<[1], [0], [0], [1], [0, 0, 1, 1], [], []>} : vector<2x64xf32>, vector<64x2xf32>, vector<2x2xf32> -> vector<2x2xf32>
    %c0_11 = arith.constant 0 : index
    %c0_12 = arith.constant 0 : index
    %12 = vector.load %arg7[%c0_11, %c0_12] : memref<1x2xf32, #tpu.memory_space<vmem>>, vector<1x2xf32>
    %13 = vector.broadcast %12 : vector<1x2xf32> to vector<2x2xf32>
    %14 = arith.addf %11, %13 : vector<2x2xf32>
    %cst_13 = arith.constant dense<0xFF800000> : vector<2xf32>
    %15 = vector.multi_reduction <maximumf>, %14, %cst_13 [1] : vector<2x2xf32> to vector<2xf32>
    %16 = vector.shape_cast %15 : vector<2xf32> to vector<2x1xf32>
    %17 = vector.broadcast %16 : vector<2x1xf32> to vector<2x2xf32>
    %18 = arith.subf %14, %17 : vector<2x2xf32>
    %19 = math.exp %18 : vector<2x2xf32>
    %cst_14 = arith.constant dense<0.000000e+00> : vector<2xf32>
    %20 = vector.multi_reduction <add>, %19, %cst_14 [1] : vector<2x2xf32> to vector<2xf32>
    %21 = vector.shape_cast %20 : vector<2xf32> to vector<2x1xf32>
    %22 = math.log %21 : vector<2x1xf32>
    %23 = arith.addf %16, %22 : vector<2x1xf32>
    %24 = vector.broadcast %23 : vector<2x1xf32> to vector<2x2xf32>
    %25 = arith.subf %14, %24 : vector<2x2xf32>
    %c0_15 = arith.constant 0 : index
    %c64 = arith.constant 64 : index
    %26 = vector.load %arg11[%c0_15, %c64] : memref<2x128xf32, #tpu.memory_space<vmem>>, vector<2x2xf32>
    tpu.vector_store %arg11[%c0_15, %c64], %25 {strides = array<i32>} : memref<2x128xf32, #tpu.memory_space<vmem>>, vector<2x2xf32>,
    %c0_16 = arith.constant 0 : index
    %c0_17 = arith.constant 0 : index
    %27 = vector.load %arg2[%c0_16, %c0_17] : memref<2x270xf32, #tpu.memory_space<vmem>>, vector<2x270xf32>
    %c0_18 = arith.constant 0 : index
    %c0_19 = arith.constant 0 : index
    %28 = vector.load %arg3[%c0_18, %c0_19] : memref<1x270xf32, #tpu.memory_space<vmem>>, vector<1x270xf32>
    %29 = vector.broadcast %28 : vector<1x270xf32> to vector<2x270xf32>
    %30 = arith.mulf %27, %29 : vector<2x270xf32>
    %31 = vector.extract_strided_slice %5 {offsets = [0, 64], sizes = [2, 64], strides = [1, 1]} : vector<2x128xf32> to vector<2x64xf32>
    %c0_20 = arith.constant 0 : index
    %c0_21 = arith.constant 0 : index
    %32 = vector.load %arg8[%c0_20, %c0_21] : memref<270x64xf32, #tpu.memory_space<vmem>>, vector<270x64xf32>
    %cst_22 = arith.constant dense<0.000000e+00> : vector<2x64xf32>
    %33 = tpu.matmul %30, %32, %cst_22 {dimension_numbers = #tpu.dot_dimension_numbers<[1], [0], [0], [1], [0, 0, 1, 1], [], []>} : vector<2x270xf32>, vector<270x64xf32>, vector<2x64xf32> -> vector<2x64xf32>
    %34 = arith.addf %31, %33 : vector<2x64xf32>
    %cst_23 = arith.constant 0.000000e+00 : f32
    %35 = vector.broadcast %cst_23 : f32 to vector<2x64xf32>
    %36 = arith.maximumf %34, %35 : vector<2x64xf32>
    %c0_24 = arith.constant 0 : index
    %c0_25 = arith.constant 0 : index
    %37 = vector.load %arg9[%c0_24, %c0_25] : memref<64x4xf32, #tpu.memory_space<vmem>>, vector<64x4xf32>
    %cst_26 = arith.constant dense<0.000000e+00> : vector<2x4xf32>
    %38 = tpu.matmul %36, %37, %cst_26 {dimension_numbers = #tpu.dot_dimension_numbers<[1], [0], [0], [1], [0, 0, 1, 1], [], []>} : vector<2x64xf32>, vector<64x4xf32>, vector<2x4xf32> -> vector<2x4xf32>
    %c0_27 = arith.constant 0 : index
    %c0_28 = arith.constant 0 : index
    %39 = vector.load %arg10[%c0_27, %c0_28] : memref<1x4xf32, #tpu.memory_space<vmem>>, vector<1x4xf32>
    %40 = vector.broadcast %39 : vector<1x4xf32> to vector<2x4xf32>
    %41 = arith.addf %38, %40 : vector<2x4xf32>
    %c0_29 = arith.constant 0 : index
    %c66 = arith.constant 66 : index
    %42 = vector.load %arg11[%c0_29, %c66] : memref<2x128xf32, #tpu.memory_space<vmem>>, vector<2x4xf32>
    tpu.vector_store %arg11[%c0_29, %c66], %41 {strides = array<i32>} : memref<2x128xf32, #tpu.memory_space<vmem>>, vector<2x4xf32>,
    return
  }
  func.func @transform_0(%arg0: i32) -> (i32, i32) {
    %c0_i32 = arith.constant 0 : i32
    %c0_i32_0 = arith.constant 0 : i32
    return %arg0, %c0_i32 : i32, i32
  }
  func.func @transform_1(%arg0: i32) -> (i32, i32) {
    %c0_i32 = arith.constant 0 : i32
    %c0_i32_0 = arith.constant 0 : i32
    return %arg0, %c0_i32 : i32, i32
  }
  func.func @transform_2(%arg0: i32) -> (i32, i32) {
    %c0_i32 = arith.constant 0 : i32
    %c0_i32_0 = arith.constant 0 : i32
    %c0_i32_1 = arith.constant 0 : i32
    return %c0_i32, %c0_i32_0 : i32, i32
  }
  func.func @transform_3(%arg0: i32) -> (i32, i32) {
    %c0_i32 = arith.constant 0 : i32
    %c0_i32_0 = arith.constant 0 : i32
    %c0_i32_1 = arith.constant 0 : i32
    return %c0_i32, %c0_i32_0 : i32, i32
  }
  func.func @transform_4(%arg0: i32) -> (i32, i32) {
    %c0_i32 = arith.constant 0 : i32
    %c0_i32_0 = arith.constant 0 : i32
    %c0_i32_1 = arith.constant 0 : i32
    return %c0_i32, %c0_i32_0 : i32, i32
  }
  func.func @transform_5(%arg0: i32) -> (i32, i32) {
    %c0_i32 = arith.constant 0 : i32
    %c0_i32_0 = arith.constant 0 : i32
    %c0_i32_1 = arith.constant 0 : i32
    return %c0_i32, %c0_i32_0 : i32, i32
  }
  func.func @transform_6(%arg0: i32) -> (i32, i32) {
    %c0_i32 = arith.constant 0 : i32
    %c0_i32_0 = arith.constant 0 : i32
    %c0_i32_1 = arith.constant 0 : i32
    return %c0_i32, %c0_i32_0 : i32, i32
  }
  func.func @transform_7(%arg0: i32) -> (i32, i32) {
    %c0_i32 = arith.constant 0 : i32
    %c0_i32_0 = arith.constant 0 : i32
    %c0_i32_1 = arith.constant 0 : i32
    return %c0_i32, %c0_i32_0 : i32, i32
  }
  func.func @transform_8(%arg0: i32) -> (i32, i32) {
    %c0_i32 = arith.constant 0 : i32
    %c0_i32_0 = arith.constant 0 : i32
    %c0_i32_1 = arith.constant 0 : i32
    return %c0_i32, %c0_i32_0 : i32, i32
  }
  func.func @transform_9(%arg0: i32) -> (i32, i32) {
    %c0_i32 = arith.constant 0 : i32
    %c0_i32_0 = arith.constant 0 : i32
    %c0_i32_1 = arith.constant 0 : i32
    return %c0_i32, %c0_i32_0 : i32, i32
  }
  func.func @transform_10(%arg0: i32) -> (i32, i32) {
    %c0_i32 = arith.constant 0 : i32
    %c0_i32_0 = arith.constant 0 : i32
    return %arg0, %c0_i32 : i32, i32
  }
}

</mosaic_0001>

<llo_original>
// kernel: forward.2
$region0: #{forward.2}
  #allocation0 [shape = 'u32[]', space=smem, size = 0x4, offset = 0x4, fixed_abs, tag = 'smem constant byte address 0x4 - core index']
  #allocation1 [shape = 'u32[144,128]{1,0:T(1,128)}', space=vmem, size = 0x12000, scoped, tag = 'internal scratch']
  %s0 = inlined_call_operand.vmem [shape: f32[2,90,90], index: 0, kind: input, shape index: {}]
  %s1 = inlined_call_operand.vmem [shape: f32[2,3,90], index: 1, kind: input, shape index: {}]
  %s2 = inlined_call_operand.vmem [shape: f32[16,3], index: 2, kind: input, shape index: {}]
  %s3 = inlined_call_operand.vmem [shape: f32[16,1], index: 3, kind: input, shape index: {}]
  %s4 = inlined_call_operand.hbm [shape: f32[2,16,16], index: 4, kind: input, shape index: {}]
  %s5 = inlined_call_operand.vmem [shape: f32[2,16,1], index: 5, kind: input, shape index: {}]
  %s6 = inlined_call_operand.vmem [shape: f32[2,48,90], index: 6, kind: output, shape index: {}]
  %s7 = sld [smem:[#allocation0]]
  $region38: #{forward.2} parent=0
    _
  %s9 = ssub.s32 1, %s7
  %s10 = scalar_select 0, %s9, %s7
  $region1: #{forward.2} parent=0
    #allocation2 [shape = 'u8[16384]{0}', space=vmem, size = 0x4000, scoped, tag = 'input window, operand 4, single buffered']
    #allocation3 [shape = 's32[1]{0}', space=sflag, size = 0x4, scoped, tag = 'scoped memory for forward.2']
    %11 = vsyncpa [#allocation3], 0
    // Predicated region
    $region2: #{forward.2} parent=1 // pred_check
      _
    $region3: #{forward.2} parent=1 // pred_check_branch
      %13 = sbr.rel (0) target = $region5
    $region4: #{forward.2} parent=1 // pred_region
      _
    $region5: #{forward.2} parent=1 // pred_fallthru
      _
    // Predicated region
    $region6: #{forward.2} parent=1 // pred_check
      _
    $region7: #{forward.2} parent=1 // pred_check_branch
      %15 = sbr.rel (0) target = $region9
    $region8: #{forward.2} parent=1 // pred_region
      _
    $region9: #{forward.2} parent=1 // pred_fallthru
      _
    // Predicated region
    $region10: #{forward.2} parent=1 // pred_check
      _
    $region11: #{forward.2} parent=1 // pred_check_branch
      %17 = sbr.rel (0) target = $region13
    $region12: #{forward.2} parent=1 // pred_region
      _
    $region13: #{forward.2} parent=1 // pred_fallthru
      _
    // Predicated region
    $region14: #{forward.2} parent=1 // pred_check
      _
    $region15: #{forward.2} parent=1 // pred_check_branch
      %19 = sbr.rel (0) target = $region17
    $region16: #{forward.2} parent=1 // pred_region
      _
    $region17: #{forward.2} parent=1 // pred_fallthru
      _
    // Predicated region
    $region18: #{forward.2} parent=1 // pred_check
      _
    $region19: #{forward.2} parent=1 // pred_check_branch
      %21 = sbr.rel (0) target = $region21
    $region20: #{forward.2} parent=1 // pred_region
      %s23 = ssub.s32 512, 512
      %24 = vsyncadd [#allocation3], %s23
      %s25 = sshll.u32 [#allocation2], 4
      %s26 = int_to_ptr.vmem [resolvable:$true] %s25
      %31 = dma.hbm_to_vmem [thread:$0]  %s4, 512, %s26, [#allocation3], 128, 128, 8
    $region21: #{forward.2} parent=1 // pred_fallthru
      _
    // Predicated region
    $region22: #{forward.2} parent=1 // pred_check
      _
    $region23: #{forward.2} parent=1 // pred_check_branch
      %33 = sbr.rel (0) target = $region25
    $region24: #{forward.2} parent=1 // pred_region
      _
    $region25: #{forward.2} parent=1 // pred_fallthru
      _
    // Predicated region
    $region26: #{forward.2} parent=1 // pred_check
      _
    $region27: #{forward.2} parent=1 // pred_check_branch
      %35 = sbr.rel (0) target = $region29
    $region28: #{forward.2} parent=1 // pred_region
      %36 = dma.done [#allocation3], 512
    $region29: #{forward.2} parent=1 // pred_fallthru
      _
    %v37 = vld [vmem:[%s0] sm:$0xff]
    %v38 = vld [vmem:[%s0 + $0x8] sm:$0xff]
    %v39 = vld [vmem:[%s0 + $0x10] sm:$0xff]
    %v40 = vld [vmem:[%s0 + $0x18] sm:$0xff]
    %v41 = vld [vmem:[%s0 + $0x20] sm:$0xff]
    %v42 = vld [vmem:[%s0 + $0x28] sm:$0xff]
    %v43 = vld [vmem:[%s0 + $0x30] sm:$0xff]
    %v44 = vld [vmem:[%s0 + $0x38] sm:$0xff]
    %v45 = vld [vmem:[%s0 + $0x40] sm:$0xff]
    %v46 = vld [vmem:[%s0 + $0x48] sm:$0xff]
    %v47 = vld [vmem:[%s0 + $0x50] sm:$0xff]
    %v48 = vld [vmem:[%s0 + $0x58] sm:$0x3]
    %v49 = vld [vmem:[%s0 + $0x60] sm:$0xff]
    %v50 = vld [vmem:[%s0 + $0x68] sm:$0xff]
    %v51 = vld [vmem:[%s0 + $0x70] sm:$0xff]
    %v52 = vld [vmem:[%s0 + $0x78] sm:$0xff]
    %v53 = vld [vmem:[%s0 + $0x80] sm:$0xff]
    %v54 = vld [vmem:[%s0 + $0x88] sm:$0xff]
    %v55 = vld [vmem:[%s0 + $0x90] sm:$0xff]
    %v56 = vld [vmem:[%s0 + $0x98] sm:$0xff]
    %v57 = vld [vmem:[%s0 + $0xa0] sm:$0xff]
    %v58 = vld [vmem:[%s0 + $0xa8] sm:$0xff]
    %v59 = vld [vmem:[%s0 + $0xb0] sm:$0xff]
    %v60 = vld [vmem:[%s0 + $0xb8] sm:$0x3]
    %v61 = vlaneseq
    %v62 = vshrl.u32 %v61, 7
    %v63 = vadd.s32 %v62, 8
    %v64 = vadd.s32 %v62, 16
    %v65 = vadd.s32 %v62, 24
    %v66 = vadd.s32 %v62, 32
    %v67 = vadd.s32 %v62, 40
    %v68 = vadd.s32 %v62, 48
    %v69 = vadd.s32 %v62, 56
    %v70 = vadd.s32 %v62, 64
    %v71 = vadd.s32 %v62, 72
    %v72 = vadd.s32 %v62, 80
    %v73 = vadd.s32 %v62, 88
    %v74 = vlaneseq
    %v75 = vand.u32 %v74, 127
    %vm76 = vcmp.eq.s32.totalorder %v62, %v75
    %vm77 = vcmp.eq.s32.totalorder %v63, %v75
    %vm78 = vcmp.eq.s32.totalorder %v64, %v75
    %vm79 = vcmp.eq.s32.totalorder %v65, %v75
    %vm80 = vcmp.eq.s32.totalorder %v66, %v75
    %vm81 = vcmp.eq.s32.totalorder %v67, %v75
    %vm82 = vcmp.eq.s32.totalorder %v68, %v75
    %vm83 = vcmp.eq.s32.totalorder %v69, %v75
    %vm84 = vcmp.eq.s32.totalorder %v70, %v75
    %vm85 = vcmp.eq.s32.totalorder %v71, %v75
    %vm86 = vcmp.eq.s32.totalorder %v72, %v75
    %vm87 = vcmp.eq.s32.totalorder %v73, %v75
    %v88 = vsel %vm76, 1, 0
    %v89 = vsel %vm77, 1, 0
    %v90 = vsel %vm78, 1, 0
    %v91 = vsel %vm79, 1, 0
    %v92 = vsel %vm80, 1, 0
    %v93 = vsel %vm81, 1, 0
    %v94 = vsel %vm82, 1, 0
    %v95 = vsel %vm83, 1, 0
    %v96 = vsel %vm84, 1, 0
    %v97 = vsel %vm85, 1, 0
    %v98 = vsel %vm86, 1, 0
    %v99 = vsel %vm87, 1, 0
    %v100 = vcvt.s32.f32 %v88
    %v101 = vcvt.s32.f32 %v89
    %v102 = vcvt.s32.f32 %v90
    %v103 = vcvt.s32.f32 %v91
    %v104 = vcvt.s32.f32 %v92
    %v105 = vcvt.s32.f32 %v93
    %v106 = vcvt.s32.f32 %v94
    %v107 = vcvt.s32.f32 %v95
    %v108 = vcvt.s32.f32 %v96
    %v109 = vcvt.s32.f32 %v97
    %v110 = vcvt.s32.f32 %v98
    %v111 = vcvt.s32.f32 %v99
    %v112 = vadd.f32 %v37, %v100
    %v113 = vadd.f32 %v38, %v101
    %v114 = vadd.f32 %v39, %v102
    %v115 = vadd.f32 %v40, %v103
    %v116 = vadd.f32 %v41, %v104
    %v117 = vadd.f32 %v42, %v105
    %v118 = vadd.f32 %v43, %v106
    %v119 = vadd.f32 %v44, %v107
    %v120 = vadd.f32 %v45, %v108
    %v121 = vadd.f32 %v46, %v109
    %v122 = vadd.f32 %v47, %v110
    %v123 = vadd.f32 %v48, %v111
    %v124 = vadd.f32 %v49, %v100
    %v125 = vadd.f32 %v50, %v101
    %v126 = vadd.f32 %v51, %v102
    %v127 = vadd.f32 %v52, %v103
    %v128 = vadd.f32 %v53, %v104
    %v129 = vadd.f32 %v54, %v105
    %v130 = vadd.f32 %v55, %v106
    %v131 = vadd.f32 %v56, %v107
    %v132 = vadd.f32 %v57, %v108
    %v133 = vadd.f32 %v58, %v109
    %v134 = vadd.f32 %v59, %v110
    %v135 = vadd.f32 %v60, %v111
    %vm136 = vcmask 736256
    %v137 = vsel %vm136, %v112, 0.0
    %138 = vadd.xlane.f32.xlu0 %v137
    %v139 = vpop.xlane.xlu0 %138
    %v140 = vsel %vm136, %v113, 0.0
    %141 = vadd.xlane.f32.xlu0 %v140
    %v142 = vpop.xlane.xlu0 %141
    %v143 = vsel %vm136, %v114, 0.0
    %144 = vadd.xlane.f32.xlu0 %v143
    %v145 = vpop.xlane.xlu0 %144
    %v146 = vsel %vm136, %v115, 0.0
    %147 = vadd.xlane.f32.xlu0 %v146
    %v148 = vpop.xlane.xlu0 %147
    %v149 = vsel %vm136, %v116, 0.0
    %150 = vadd.xlane.f32.xlu0 %v149
    %v151 = vpop.xlane.xlu0 %150
    %v152 = vsel %vm136, %v117, 0.0
    %153 = vadd.xlane.f32.xlu0 %v152
    %v154 = vpop.xlane.xlu0 %153
    %v155 = vsel %vm136, %v118, 0.0
    %156 = vadd.xlane.f32.xlu0 %v155
    %v157 = vpop.xlane.xlu0 %156
    %v158 = vsel %vm136, %v119, 0.0
    %159 = vadd.xlane.f32.xlu0 %v158
    %v160 = vpop.xlane.xlu0 %159
    %v161 = vsel %vm136, %v120, 0.0
    %162 = vadd.xlane.f32.xlu0 %v161
    %v163 = vpop.xlane.xlu0 %162
    %v164 = vsel %vm136, %v121, 0.0
    %165 = vadd.xlane.f32.xlu0 %v164
    %v166 = vpop.xlane.xlu0 %165
    %v167 = vsel %vm136, %v122, 0.0
    %168 = vadd.xlane.f32.xlu0 %v167
    %v169 = vpop.xlane.xlu0 %168
    %vm170 = vcmask 730112
    %v171 = vsel %vm170, %v123, 0.0
    %172 = vadd.xlane.f32.xlu0 %v171
    %v173 = vpop.xlane.xlu0 %172
    %v174 = vsel %vm136, %v124, 0.0
    %175 = vadd.xlane.f32.xlu0 %v174
    %v176 = vpop.xlane.xlu0 %175
    %v177 = vsel %vm136, %v125, 0.0
    %178 = vadd.xlane.f32.xlu0 %v177
    %v179 = vpop.xlane.xlu0 %178
    %v180 = vsel %vm136, %v126, 0.0
    %181 = vadd.xlane.f32.xlu0 %v180
    %v182 = vpop.xlane.xlu0 %181
    %v183 = vsel %vm136, %v127, 0.0
    %184 = vadd.xlane.f32.xlu0 %v183
    %v185 = vpop.xlane.xlu0 %184
    %v186 = vsel %vm136, %v128, 0.0
    %187 = vadd.xlane.f32.xlu0 %v186
    %v188 = vpop.xlane.xlu0 %187
    %v189 = vsel %vm136, %v129, 0.0
    %190 = vadd.xlane.f32.xlu0 %v189
    %v191 = vpop.xlane.xlu0 %190
    %v192 = vsel %vm136, %v130, 0.0
    %193 = vadd.xlane.f32.xlu0 %v192
    %v194 = vpop.xlane.xlu0 %193
    %v195 = vsel %vm136, %v131, 0.0
    %196 = vadd.xlane.f32.xlu0 %v195
    %v197 = vpop.xlane.xlu0 %196
    %v198 = vsel %vm136, %v132, 0.0
    %199 = vadd.xlane.f32.xlu0 %v198
    %v200 = vpop.xlane.xlu0 %199
    %v201 = vsel %vm136, %v133, 0.0
    %202 = vadd.xlane.f32.xlu0 %v201
    %v203 = vpop.xlane.xlu0 %202
    %v204 = vsel %vm136, %v134, 0.0
    %205 = vadd.xlane.f32.xlu0 %v204
    %v206 = vpop.xlane.xlu0 %205
    %v207 = vsel %vm170, %v135, 0.0
    %208 = vadd.xlane.f32.xlu0 %v207
    %v209 = vpop.xlane.xlu0 %208
    %v210 = vadd.f32 %v137, %v140
    %v211 = vadd.f32 %v210, %v143
    %v212 = vadd.f32 %v211, %v146
    %v213 = vadd.f32 %v212, %v149
    %v214 = vadd.f32 %v213, %v152
    %v215 = vadd.f32 %v214, %v155
    %v216 = vadd.f32 %v215, %v158
    %v217 = vadd.f32 %v216, %v161
    %v218 = vadd.f32 %v217, %v164
    %v219 = vadd.f32 %v218, %v167
    %v220 = vadd.f32 %v219, %v171
    %v221 = vrot.slane %v220, 4
    %v222 = vadd.f32 %v220, %v221
    %v223 = vrot.slane %v222, 2
    %v224 = vadd.f32 %v222, %v223
    %v225 = vrot.slane %v224, 1
    %v226 = vadd.f32 %v224, %v225
    %v227 = vadd.f32 %v174, %v177
    %v228 = vadd.f32 %v227, %v180
    %v229 = vadd.f32 %v228, %v183
    %v230 = vadd.f32 %v229, %v186
    %v231 = vadd.f32 %v230, %v189
    %v232 = vadd.f32 %v231, %v192
    %v233 = vadd.f32 %v232, %v195
    %v234 = vadd.f32 %v233, %v198
    %v235 = vadd.f32 %v234, %v201
    %v236 = vadd.f32 %v235, %v204
    %v237 = vadd.f32 %v236, %v207
    %v238 = vrot.slane %v237, 4
    %v239 = vadd.f32 %v237, %v238
    %v240 = vrot.slane %v239, 2
    %v241 = vadd.f32 %v239, %v240
    %v242 = vrot.slane %v241, 1
    %v243 = vadd.f32 %v241, %v242
    %vm244 = vcmp.gt.f32.partialorder %v139, 0.0
    %vm245 = vcmp.gt.f32.partialorder %v142, 0.0
    %vm246 = vcmp.gt.f32.partialorder %v145, 0.0
    %vm247 = vcmp.gt.f32.partialorder %v148, 0.0
    %vm248 = vcmp.gt.f32.partialorder %v151, 0.0
    %vm249 = vcmp.gt.f32.partialorder %v154, 0.0
    %vm250 = vcmp.gt.f32.partialorder %v157, 0.0
    %vm251 = vcmp.gt.f32.partialorder %v160, 0.0
    %vm252 = vcmp.gt.f32.partialorder %v163, 0.0
    %vm253 = vcmp.gt.f32.partialorder %v166, 0.0
    %vm254 = vcmp.gt.f32.partialorder %v169, 0.0
    %vm255 = vcmp.gt.f32.partialorder %v173, 0.0
    %vm256 = vcmp.gt.f32.partialorder %v176, 0.0
    %vm257 = vcmp.gt.f32.partialorder %v179, 0.0
    %vm258 = vcmp.gt.f32.partialorder %v182, 0.0
    %vm259 = vcmp.gt.f32.partialorder %v185, 0.0
    %vm260 = vcmp.gt.f32.partialorder %v188, 0.0
    %vm261 = vcmp.gt.f32.partialorder %v191, 0.0
    %vm262 = vcmp.gt.f32.partialorder %v194, 0.0
    %vm263 = vcmp.gt.f32.partialorder %v197, 0.0
    %vm264 = vcmp.gt.f32.partialorder %v200, 0.0
    %vm265 = vcmp.gt.f32.partialorder %v203, 0.0
    %vm266 = vcmp.gt.f32.partialorder %v206, 0.0
    %vm267 = vcmp.gt.f32.partialorder %v209, 0.0
    %v268 = vrsqrt.pop %v139
    %v269 = vrsqrt.pop %v142
    %v270 = vrsqrt.pop %v145
    %v271 = vrsqrt.pop %v148
    %v272 = vrsqrt.pop %v151
    %v273 = vrsqrt.pop %v154
    %v274 = vrsqrt.pop %v157
    %v275 = vrsqrt.pop %v160
    %v276 = vrsqrt.pop %v163
    %v277 = vrsqrt.pop %v166
    %v278 = vrsqrt.pop %v169
    %v279 = vrsqrt.pop %v173
    %v280 = vrsqrt.pop %v176
    %v281 = vrsqrt.pop %v179
    %v282 = vrsqrt.pop %v182
    %v283 = vrsqrt.pop %v185
    %v284 = vrsqrt.pop %v188
    %v285 = vrsqrt.pop %v191
    %v286 = vrsqrt.pop %v194
    %v287 = vrsqrt.pop %v197
    %v288 = vrsqrt.pop %v200
    %v289 = vrsqrt.pop %v203
    %v290 = vrsqrt.pop %v206
    %v291 = vrsqrt.pop %v209
    %v292 = vsel %vm244, %v268, 0.0
    %v293 = vsel %vm245, %v269, 0.0
    %v294 = vsel %vm246, %v270, 0.0
    %v295 = vsel %vm247, %v271, 0.0
    %v296 = vsel %vm248, %v272, 0.0
    %v297 = vsel %vm249, %v273, 0.0
    %v298 = vsel %vm250, %v274, 0.0
    %v299 = vsel %vm251, %v275, 0.0
    %v300 = vsel %vm252, %v276, 0.0
    %v301 = vsel %vm253, %v277, 0.0
    %v302 = vsel %vm254, %v278, 0.0
    %v303 = vsel %vm255, %v279, 0.0
    %v304 = vsel %vm256, %v280, 0.0
    %v305 = vsel %vm257, %v281, 0.0
    %v306 = vsel %vm258, %v282, 0.0
    %v307 = vsel %vm259, %v283, 0.0
    %v308 = vsel %vm260, %v284, 0.0
    %v309 = vsel %vm261, %v285, 0.0
    %v310 = vsel %vm262, %v286, 0.0
    %v311 = vsel %vm263, %v287, 0.0
    %v312 = vsel %vm264, %v288, 0.0
    %v313 = vsel %vm265, %v289, 0.0
    %v314 = vsel %vm266, %v290, 0.0
    %v315 = vsel %vm267, %v291, 0.0
    %vm316 = vcmp.gt.f32.partialorder %v226, 0.0
    %vm317 = vcmp.gt.f32.partialorder %v243, 0.0
    %v318 = vrsqrt.pop %v226
    %v319 = vrsqrt.pop %v243
    %v320 = vsel %vm316, %v318, 0.0
    %v321 = vsel %vm317, %v319, 0.0
    %v322 = vmul.f32 %v112, %v292
    %v323 = vmul.f32 %v113, %v293
    %v324 = vmul.f32 %v114, %v294
    %v325 = vmul.f32 %v115, %v295
    %v326 = vmul.f32 %v116, %v296
    %v327 = vmul.f32 %v117, %v297
    %v328 = vmul.f32 %v118, %v298
    %v329 = vmul.f32 %v119, %v299
    %v330 = vmul.f32 %v120, %v300
    %v331 = vmul.f32 %v121, %v301
    %v332 = vmul.f32 %v122, %v302
    %v333 = vmul.f32 %v123, %v303
    %v334 = vmul.f32 %v124, %v304
    %v335 = vmul.f32 %v125, %v305
    %v336 = vmul.f32 %v126, %v306
    %v337 = vmul.f32 %v127, %v307
    %v338 = vmul.f32 %v128, %v308
    %v339 = vmul.f32 %v129, %v309
    %v340 = vmul.f32 %v130, %v310
    %v341 = vmul.f32 %v131, %v311
    %v342 = vmul.f32 %v132, %v312
    %v343 = vmul.f32 %v133, %v313
    %v344 = vmul.f32 %v134, %v314
    %v345 = vmul.f32 %v135, %v315
    %v346 = vmul.f32 %v322, %v320
    %v347 = vmul.f32 %v323, %v320
    %v348 = vmul.f32 %v324, %v320
    %v349 = vmul.f32 %v325, %v320
    %v350 = vmul.f32 %v326, %v320
    %v351 = vmul.f32 %v327, %v320
    %v352 = vmul.f32 %v328, %v320
    %v353 = vmul.f32 %v329, %v320
    %v354 = vmul.f32 %v330, %v320
    %v355 = vmul.f32 %v331, %v320
    %v356 = vmul.f32 %v332, %v320
    %v357 = vmul.f32 %v333, %v320
    %v358 = vmul.f32 %v334, %v321
    %v359 = vmul.f32 %v335, %v321
    %v360 = vmul.f32 %v336, %v321
    %v361 = vmul.f32 %v337, %v321
    %v362 = vmul.f32 %v338, %v321
    %v363 = vmul.f32 %v339, %v321
    %v364 = vmul.f32 %v340, %v321
    %v365 = vmul.f32 %v341, %v321
    %v366 = vmul.f32 %v342, %v321
    %v367 = vmul.f32 %v343, %v321
    %v368 = vmul.f32 %v344, %v321
    %v369 = vmul.f32 %v345, %v321
    %v370 = vld [vmem:[%s1] sm:$0x7]
    %v371 = vld [vmem:[%s1 + $0x4] sm:$0x7]
    %v372 = vld [vmem:[%s2] sm:$0xff]
    %v373 = vld [vmem:[%s2 + $0x8] sm:$0xff]
    %v374 = vlaneseq
    %v375 = vshrl.u32 %v374, 7
    %v376 = vsub.s32 0, %v375
    %v377 = vrot.slane %v370, %v376
    %v378 = vlaneseq
    %v379 = vshrl.u32 %v378, 7
    %v380 = vsub.s32 0, %v379
    %v381 = vrot.slane %v371, %v380
    %383 = vset.pattern.permute.xlu0 0
    %384 = vperm.xlu0 %383, %v372
    %v385 = vpop.permute.xlu0 %384
    %388 = vset.pattern.permute.xlu0 0
    %389 = vperm.xlu0 %388, %v373
    %v390 = vpop.permute.xlu0 %389
    %v392 = vmul.f32 %v377, %v385
    %v393 = vmul.f32 %v377, %v390
    %v394 = vmul.f32 %v381, %v385
    %v395 = vmul.f32 %v381, %v390
    %v396 = vlaneseq
    %v397 = vshrl.u32 %v396, 7
    %v398 = vsub.s32 1, %v397
    %v399 = vrot.slane %v370, %v398
    %v400 = vlaneseq
    %v401 = vshrl.u32 %v400, 7
    %v402 = vsub.s32 1, %v401
    %v403 = vrot.slane %v371, %v402
    %404 = vset.pattern.permute.xlu0 1
    %405 = vperm.xlu0 %404, %v372
    %v406 = vpop.permute.xlu0 %405
    %408 = vset.pattern.permute.xlu0 1
    %409 = vperm.xlu0 %408, %v373
    %v410 = vpop.permute.xlu0 %409
    %v412 = vmul.f32 %v399, %v406
    %v413 = vmul.f32 %v399, %v410
    %v414 = vmul.f32 %v403, %v406
    %v415 = vmul.f32 %v403, %v410
    %v416 = vadd.f32 %v392, %v412
    %v417 = vadd.f32 %v393, %v413
    %v418 = vadd.f32 %v394, %v414
    %v419 = vadd.f32 %v395, %v415
    %v420 = vlaneseq
    %v421 = vshrl.u32 %v420, 7
    %v422 = vsub.s32 2, %v421
    %v423 = vrot.slane %v370, %v422
    %v424 = vlaneseq
    %v425 = vshrl.u32 %v424, 7
    %v426 = vsub.s32 2, %v425
    %v427 = vrot.slane %v371, %v426
    %428 = vset.pattern.permute.xlu0 2
    %429 = vperm.xlu0 %428, %v372
    %v430 = vpop.permute.xlu0 %429
    %432 = vset.pattern.permute.xlu0 2
    %433 = vperm.xlu0 %432, %v373
    %v434 = vpop.permute.xlu0 %433
    %v436 = vmul.f32 %v423, %v430
    %v437 = vmul.f32 %v423, %v434
    %v438 = vmul.f32 %v427, %v430
    %v439 = vmul.f32 %v427, %v434
    %v440 = vadd.f32 %v416, %v436
    %v441 = vadd.f32 %v417, %v437
    %v442 = vadd.f32 %v418, %v438
    %v443 = vadd.f32 %v419, %v439
    %v444 = vld [vmem:[%s3] sm:$0xff]
    %v445 = vld [vmem:[%s3 + $0x8] sm:$0xff]
    %447 = vset.pattern.permute.xlu0 0
    %448 = vperm.xlu0 %447, %v444
    %v449 = vpop.permute.xlu0 %448
    %452 = vset.pattern.permute.xlu0 0
    %453 = vperm.xlu0 %452, %v445
    %v454 = vpop.permute.xlu0 %453
    %v457 = vsel %vm136, %v440, 0
    %v460 = vsel %vm136, %v441, 0
    %vm462 = vcmask 1041408
    %v464 = vsel %vm462, %v357, 0
    %466 = vmatprep.subr.mxu0 0.0
    %467 = vmatpush1.msra.mxu0 %v346
    %468 = vmatprep.subr.mxu0 0.0
    %469 = vmatpush1.msra.mxu0 %v347
    %470 = vmatprep.subr.mxu0 0.0
    %471 = vmatpush1.msra.mxu0 %v348
    %472 = vmatprep.subr.mxu0 0.0
    %473 = vmatpush1.msra.mxu0 %v349
    %474 = vmatprep.subr.mxu0 0.0
    %475 = vmatpush1.msra.mxu0 %v350
    %476 = vmatprep.subr.mxu0 0.0
    %477 = vmatpush1.msra.mxu0 %v351
    %478 = vmatprep.subr.mxu0 0.0
    %479 = vmatpush1.msra.mxu0 %v352
    %480 = vmatprep.subr.mxu0 0.0
    %481 = vmatpush1.msra.mxu0 %v353
    %482 = vmatprep.subr.mxu0 0.0
    %483 = vmatpush1.msra.mxu0 %v354
    %484 = vmatprep.subr.mxu0 0.0
    %485 = vmatpush1.msra.mxu0 %v355
    %486 = vmatprep.subr.mxu0 0.0
    %487 = vmatpush1.msra.mxu0 %v356
    %488 = vmatprep.subr.mxu0 0.0
    %489 = vmatpush1.msra.mxu0 %v464
    %490 = vmatprep.subr.mxu0 0.0
    %491 = vmatpush1.msra.mxu0 0.0
    %492 = vmatprep.subr.mxu0 0.0
    %493 = vmatpush1.msra.mxu0 0.0
    %494 = vmatprep.subr.mxu0 0.0
    %495 = vmatpush1.msra.mxu0 0.0
    %496 = vmatprep.subr.mxu0 0.0
    %497 = vmatpush1.msra.mxu0 0.0
    %498 = vmatprep.subr.mxu0 0.0
    %499 = vmatpush1.msra.mxu0 0.0
    %500 = vmatprep.subr.mxu0 0.0
    %501 = vmatpush1.msra.mxu0 0.0
    %502 = vmatprep.subr.mxu0 0.0
    %503 = vmatpush1.msra.mxu0 0.0
    %504 = vmatprep.subr.mxu0 0.0
    %505 = vmatpush1.msra.mxu0 0.0
    %506 = vmatprep.subr.mxu0 0.0
    %507 = vmatpush1.msra.mxu0 0.0
    %508 = vmatprep.subr.mxu0 0.0
    %509 = vmatpush1.msra.mxu0 0.0
    %510 = vmatprep.subr.mxu0 0.0
    %511 = vmatpush1.msra.mxu0 0.0
    %512 = vmatprep.subr.mxu0 0.0
    %513 = vmatpush1.msra.mxu0 0.0
    %514 = vmatprep.subr.mxu0 0.0
    %515 = vmatpush1.msra.mxu0 0.0
    %516 = vmatprep.subr.mxu0 0.0
    %517 = vmatpush1.msra.mxu0 0.0
    %518 = vmatprep.subr.mxu0 0.0
    %519 = vmatpush1.msra.mxu0 0.0
    %520 = vmatprep.subr.mxu0 0.0
    %521 = vmatpush1.msra.mxu0 0.0
    %522 = vmatprep.subr.mxu0 0.0
    %523 = vmatpush1.msra.mxu0 0.0
    %524 = vmatprep.subr.mxu0 0.0
    %525 = vmatpush1.msra.mxu0 0.0
    %526 = vmatprep.subr.mxu0 0.0
    %527 = vmatpush1.msra.mxu0 0.0
    %528 = vmatprep.subr.mxu0 0.0
    %529 = vmatpush1.msra.mxu0 0.0
    %530 = vmatprep.mubr.f32.mxu0 0.0
    %531 = vmatmul.mubr.f32.gmra.mrb[0].mxu0 %v457
    %v532 = vpop.f32.mrb[0].mxu0
    %v533 = vadd.f32 %v449, %v532
    %v534 = vpop.f32.mrb[0].mxu0
    %535 = vmatprep.mubr.f32.mxu0 0.0
    %536 = vmatmul.mubr.f32.gmra.mrb[0].mxu0 %v460
    %v537 = vpop.f32.mrb[0].mxu0
    %v538 = vadd.f32 %v454, %v537
    %v539 = vpop.f32.mrb[0].mxu0
    %540 = vdwg.mxu0
    %v542 = vsel %vm136, %v442, 0
    %v545 = vsel %vm136, %v443, 0
    %v548 = vsel %vm462, %v369, 0
    %550 = vmatprep.subr.mxu0 0.0
    %551 = vmatpush1.msra.mxu0 %v358
    %552 = vmatprep.subr.mxu0 0.0
    %553 = vmatpush1.msra.mxu0 %v359
    %554 = vmatprep.subr.mxu0 0.0
    %555 = vmatpush1.msra.mxu0 %v360
    %556 = vmatprep.subr.mxu0 0.0
    %557 = vmatpush1.msra.mxu0 %v361
    %558 = vmatprep.subr.mxu0 0.0
    %559 = vmatpush1.msra.mxu0 %v362
    %560 = vmatprep.subr.mxu0 0.0
    %561 = vmatpush1.msra.mxu0 %v363
    %562 = vmatprep.subr.mxu0 0.0
    %563 = vmatpush1.msra.mxu0 %v364
    %564 = vmatprep.subr.mxu0 0.0
    %565 = vmatpush1.msra.mxu0 %v365
    %566 = vmatprep.subr.mxu0 0.0
    %567 = vmatpush1.msra.mxu0 %v366
    %568 = vmatprep.subr.mxu0 0.0
    %569 = vmatpush1.msra.mxu0 %v367
    %570 = vmatprep.subr.mxu0 0.0
    %571 = vmatpush1.msra.mxu0 %v368
    %572 = vmatprep.subr.mxu0 0.0
    %573 = vmatpush1.msra.mxu0 %v548
    %574 = vmatprep.subr.mxu0 0.0
    %575 = vmatpush1.msra.mxu0 0.0
    %576 = vmatprep.subr.mxu0 0.0
    %577 = vmatpush1.msra.mxu0 0.0
    %578 = vmatprep.subr.mxu0 0.0
    %579 = vmatpush1.msra.mxu0 0.0
    %580 = vmatprep.subr.mxu0 0.0
    %581 = vmatpush1.msra.mxu0 0.0
    %582 = vmatprep.subr.mxu0 0.0
    %583 = vmatpush1.msra.mxu0 0.0
    %584 = vmatprep.subr.mxu0 0.0
    %585 = vmatpush1.msra.mxu0 0.0
    %586 = vmatprep.subr.mxu0 0.0
    %587 = vmatpush1.msra.mxu0 0.0
    %588 = vmatprep.subr.mxu0 0.0
    %589 = vmatpush1.msra.mxu0 0.0
    %590 = vmatprep.subr.mxu0 0.0
    %591 = vmatpush1.msra.mxu0 0.0
    %592 = vmatprep.subr.mxu0 0.0
    %593 = vmatpush1.msra.mxu0 0.0
    %594 = vmatprep.subr.mxu0 0.0
    %595 = vmatpush1.msra.mxu0 0.0
    %596 = vmatprep.subr.mxu0 0.0
    %597 = vmatpush1.msra.mxu0 0.0
    %598 = vmatprep.subr.mxu0 0.0
    %599 = vmatpush1.msra.mxu0 0.0
    %600 = vmatprep.subr.mxu0 0.0
    %601 = vmatpush1.msra.mxu0 0.0
    %602 = vmatprep.subr.mxu0 0.0
    %603 = vmatpush1.msra.mxu0 0.0
    %604 = vmatprep.subr.mxu0 0.0
    %605 = vmatpush1.msra.mxu0 0.0
    %606 = vmatprep.subr.mxu0 0.0
    %607 = vmatpush1.msra.mxu0 0.0
    %608 = vmatprep.subr.mxu0 0.0
    %609 = vmatpush1.msra.mxu0 0.0
    %610 = vmatprep.subr.mxu0 0.0
    %611 = vmatpush1.msra.mxu0 0.0
    %612 = vmatprep.subr.mxu0 0.0
    %613 = vmatpush1.msra.mxu0 0.0
    %614 = vmatprep.mubr.f32.mxu0 0.0
    %615 = vmatmul.mubr.f32.gmra.mrb[0].mxu0 %v542
    %v616 = vpop.f32.mrb[0].mxu0
    %v617 = vadd.f32 %v449, %v616
    %v618 = vpop.f32.mrb[0].mxu0
    %619 = vmatprep.mubr.f32.mxu0 0.0
    %620 = vmatmul.mubr.f32.gmra.mrb[0].mxu0 %v545
    %v621 = vpop.f32.mrb[0].mxu0
    %v622 = vadd.f32 %v454, %v621
    %v623 = vpop.f32.mrb[0].mxu0
    %624 = vdwg.mxu0
    %v625 = vmax.f32 %v533, 0.0
    %v626 = vmax.f32 %v538, 0.0
    %v627 = vmax.f32 %v617, 0.0
    %v628 = vmax.f32 %v622, 0.0
    %629 = vst.msk [vmem:[%s6] sm:$0xff] %vm136, %v625
    %630 = vst.msk [vmem:[%s6 + $0x8] sm:$0xff] %vm136, %v626
    %631 = vst.msk [vmem:[%s6 + $0x30] sm:$0xff] %vm136, %v627
    %632 = vst.msk [vmem:[%s6 + $0x38] sm:$0xff] %vm136, %v628
    %v633 = vld [vmem:[#allocation2] sm:$0xff]
    %v634 = vld [vmem:[#allocation2 + $0x8] sm:$0xff]
    %v635 = vlaneseq
    %v636 = vshrl.u32 %v635, 7
    %v637 = vsub.s32 0, %v636
    %v638 = vrot.slane %v625, %v637
    %v639 = vlaneseq
    %v640 = vshrl.u32 %v639, 7
    %v641 = vsub.s32 0, %v640
    %v642 = vrot.slane %v627, %v641
    %644 = vset.pattern.permute.xlu0 0
    %645 = vperm.xlu0 %644, %v633
    %v646 = vpop.permute.xlu0 %645
    %649 = vset.pattern.permute.xlu0 0
    %650 = vperm.xlu0 %649, %v634
    %v651 = vpop.permute.xlu0 %650
    %v653 = vmul.f32 %v638, %v646
    %v654 = vmul.f32 %v638, %v651
    %v655 = vmul.f32 %v642, %v646
    %v656 = vmul.f32 %v642, %v651
    %v657 = vlaneseq
    %v658 = vshrl.u32 %v657, 7
    %v659 = vsub.s32 1, %v658
    %v660 = vrot.slane %v625, %v659
    %v661 = vlaneseq
    %v662 = vshrl.u32 %v661, 7
    %v663 = vsub.s32 1, %v662
    %v664 = vrot.slane %v627, %v663
    %665 = vset.pattern.permute.xlu0 1
    %666 = vperm.xlu0 %665, %v633
    %v667 = vpop.permute.xlu0 %666
    %669 = vset.pattern.permute.xlu0 1
    %670 = vperm.xlu0 %669, %v634
    %v671 = vpop.permute.xlu0 %670
    %v673 = vmul.f32 %v660, %v667
    %v674 = vmul.f32 %v660, %v671
    %v675 = vmul.f32 %v664, %v667
    %v676 = vmul.f32 %v664, %v671
    %v677 = vadd.f32 %v653, %v673
    %v678 = vadd.f32 %v654, %v674
    %v679 = vadd.f32 %v655, %v675
    %v680 = vadd.f32 %v656, %v676
    %v681 = vlaneseq
    %v682 = vshrl.u32 %v681, 7
    %v683 = vsub.s32 2, %v682
    %v684 = vrot.slane %v625, %v683
    %v685 = vlaneseq
    %v686 = vshrl.u32 %v685, 7
    %v687 = vsub.s32 2, %v686
    %v688 = vrot.slane %v627, %v687
    %689 = vset.pattern.permute.xlu0 2
    %690 = vperm.xlu0 %689, %v633
    %v691 = vpop.permute.xlu0 %690
    %693 = vset.pattern.permute.xlu0 2
    %694 = vperm.xlu0 %693, %v634
    %v695 = vpop.permute.xlu0 %694
    %v697 = vmul.f32 %v684, %v691
    %v698 = vmul.f32 %v684, %v695
    %v699 = vmul.f32 %v688, %v691
    %v700 = vmul.f32 %v688, %v695
    %v701 = vadd.f32 %v677, %v697
    %v702 = vadd.f32 %v678, %v698
    %v703 = vadd.f32 %v679, %v699
    %v704 = vadd.f32 %v680, %v700
    %v705 = vlaneseq
    %v706 = vshrl.u32 %v705, 7
    %v707 = vsub.s32 3, %v706
    %v708 = vrot.slane %v625, %v707
    %v709 = vlaneseq
    %v710 = vshrl.u32 %v709, 7
    %v711 = vsub.s32 3, %v710
    %v712 = vrot.slane %v627, %v711
    %713 = vset.pattern.permute.xlu0 3
    %714 = vperm.xlu0 %713, %v633
    %v715 = vpop.permute.xlu0 %714
    %717 = vset.pattern.permute.xlu0 3
    %718 = vperm.xlu0 %717, %v634
    %v719 = vpop.permute.xlu0 %718
    %v721 = vmul.f32 %v708, %v715
    %v722 = vmul.f32 %v708, %v719
    %v723 = vmul.f32 %v712, %v715
    %v724 = vmul.f32 %v712, %v719
    %v725 = vadd.f32 %v701, %v721
    %v726 = vadd.f32 %v702, %v722
    %v727 = vadd.f32 %v703, %v723
    %v728 = vadd.f32 %v704, %v724
    %v729 = vlaneseq
    %v730 = vshrl.u32 %v729, 7
    %v731 = vsub.s32 4, %v730
    %v732 = vrot.slane %v625, %v731
    %v733 = vlaneseq
    %v734 = vshrl.u32 %v733, 7
    %v735 = vsub.s32 4, %v734
    %v736 = vrot.slane %v627, %v735
    %737 = vset.pattern.permute.xlu0 4
    %738 = vperm.xlu0 %737, %v633
    %v739 = vpop.permute.xlu0 %738
    %741 = vset.pattern.permute.xlu0 4
    %742 = vperm.xlu0 %741, %v634
    %v743 = vpop.permute.xlu0 %742
    %v745 = vmul.f32 %v732, %v739
    %v746 = vmul.f32 %v732, %v743
    %v747 = vmul.f32 %v736, %v739
    %v748 = vmul.f32 %v736, %v743
    %v749 = vadd.f32 %v725, %v745
    %v750 = vadd.f32 %v726, %v746
    %v751 = vadd.f32 %v727, %v747
    %v752 = vadd.f32 %v728, %v748
    %v753 = vlaneseq
    %v754 = vshrl.u32 %v753, 7
    %v755 = vsub.s32 5, %v754
    %v756 = vrot.slane %v625, %v755
    %v757 = vlaneseq
    %v758 = vshrl.u32 %v757, 7
    %v759 = vsub.s32 5, %v758
    %v760 = vrot.slane %v627, %v759
    %761 = vset.pattern.permute.xlu0 5
    %762 = vperm.xlu0 %761, %v633
    %v763 = vpop.permute.xlu0 %762
    %765 = vset.pattern.permute.xlu0 5
    %766 = vperm.xlu0 %765, %v634
    %v767 = vpop.permute.xlu0 %766
    %v769 = vmul.f32 %v756, %v763
    %v770 = vmul.f32 %v756, %v767
    %v771 = vmul.f32 %v760, %v763
    %v772 = vmul.f32 %v760, %v767
    %v773 = vadd.f32 %v749, %v769
    %v774 = vadd.f32 %v750, %v770
    %v775 = vadd.f32 %v751, %v771
    %v776 = vadd.f32 %v752, %v772
    %v777 = vlaneseq
    %v778 = vshrl.u32 %v777, 7
    %v779 = vsub.s32 6, %v778
    %v780 = vrot.slane %v625, %v779
    %v781 = vlaneseq
    %v782 = vshrl.u32 %v781, 7
    %v783 = vsub.s32 6, %v782
    %v784 = vrot.slane %v627, %v783
    %785 = vset.pattern.permute.xlu0 6
    %786 = vperm.xlu0 %785, %v633
    %v787 = vpop.permute.xlu0 %786
    %789 = vset.pattern.permute.xlu0 6
    %790 = vperm.xlu0 %789, %v634
    %v791 = vpop.permute.xlu0 %790
    %v793 = vmul.f32 %v780, %v787
    %v794 = vmul.f32 %v780, %v791
    %v795 = vmul.f32 %v784, %v787
    %v796 = vmul.f32 %v784, %v791
    %v797 = vadd.f32 %v773, %v793
    %v798 = vadd.f32 %v774, %v794
    %v799 = vadd.f32 %v775, %v795
    %v800 = vadd.f32 %v776, %v796
    %v801 = vlaneseq
    %v802 = vshrl.u32 %v801, 7
    %v803 = vsub.s32 7, %v802
    %v804 = vrot.slane %v625, %v803
    %v805 = vlaneseq
    %v806 = vshrl.u32 %v805, 7
    %v807 = vsub.s32 7, %v806
    %v808 = vrot.slane %v627, %v807
    %809 = vset.pattern.permute.xlu0 7
    %810 = vperm.xlu0 %809, %v633
    %v811 = vpop.permute.xlu0 %810
    %813 = vset.pattern.permute.xlu0 7
    %814 = vperm.xlu0 %813, %v634
    %v815 = vpop.permute.xlu0 %814
    %v817 = vmul.f32 %v804, %v811
    %v818 = vmul.f32 %v804, %v815
    %v819 = vmul.f32 %v808, %v811
    %v820 = vmul.f32 %v808, %v815
    %v821 = vadd.f32 %v797, %v817
    %v822 = vadd.f32 %v798, %v818
    %v823 = vadd.f32 %v799, %v819
    %v824 = vadd.f32 %v800, %v820
    %v825 = vlaneseq
    %v826 = vshrl.u32 %v825, 7
    %v827 = vsub.s32 0, %v826
    %v828 = vrot.slane %v626, %v827
    %v829 = vlaneseq
    %v830 = vshrl.u32 %v829, 7
    %v831 = vsub.s32 0, %v830
    %v832 = vrot.slane %v628, %v831
    %833 = vset.pattern.permute.xlu0 8
    %834 = vperm.xlu0 %833, %v633
    %v835 = vpop.permute.xlu0 %834
    %837 = vset.pattern.permute.xlu0 8
    %838 = vperm.xlu0 %837, %v634
    %v839 = vpop.permute.xlu0 %838
    %v841 = vmul.f32 %v828, %v835
    %v842 = vmul.f32 %v828, %v839
    %v843 = vmul.f32 %v832, %v835
    %v844 = vmul.f32 %v832, %v839
    %v845 = vadd.f32 %v821, %v841
    %v846 = vadd.f32 %v822, %v842
    %v847 = vadd.f32 %v823, %v843
    %v848 = vadd.f32 %v824, %v844
    %v849 = vlaneseq
    %v850 = vshrl.u32 %v849, 7
    %v851 = vsub.s32 1, %v850
    %v852 = vrot.slane %v626, %v851
    %v853 = vlaneseq
    %v854 = vshrl.u32 %v853, 7
    %v855 = vsub.s32 1, %v854
    %v856 = vrot.slane %v628, %v855
    %857 = vset.pattern.permute.xlu0 9
    %858 = vperm.xlu0 %857, %v633
    %v859 = vpop.permute.xlu0 %858
    %861 = vset.pattern.permute.xlu0 9
    %862 = vperm.xlu0 %861, %v634
    %v863 = vpop.permute.xlu0 %862
    %v865 = vmul.f32 %v852, %v859
    %v866 = vmul.f32 %v852, %v863
    %v867 = vmul.f32 %v856, %v859
    %v868 = vmul.f32 %v856, %v863
    %v869 = vadd.f32 %v845, %v865
    %v870 = vadd.f32 %v846, %v866
    %v871 = vadd.f32 %v847, %v867
    %v872 = vadd.f32 %v848, %v868
    %v873 = vlaneseq
    %v874 = vshrl.u32 %v873, 7
    %v875 = vsub.s32 2, %v874
    %v876 = vrot.slane %v626, %v875
    %v877 = vlaneseq
    %v878 = vshrl.u32 %v877, 7
    %v879 = vsub.s32 2, %v878
    %v880 = vrot.slane %v628, %v879
    %881 = vset.pattern.permute.xlu0 10
    %882 = vperm.xlu0 %881, %v633
    %v883 = vpop.permute.xlu0 %882
    %885 = vset.pattern.permute.xlu0 10
    %886 = vperm.xlu0 %885, %v634
    %v887 = vpop.permute.xlu0 %886
    %v889 = vmul.f32 %v876, %v883
    %v890 = vmul.f32 %v876, %v887
    %v891 = vmul.f32 %v880, %v883
    %v892 = vmul.f32 %v880, %v887
    %v893 = vadd.f32 %v869, %v889
    %v894 = vadd.f32 %v870, %v890
    %v895 = vadd.f32 %v871, %v891
    %v896 = vadd.f32 %v872, %v892
    %v897 = vlaneseq
    %v898 = vshrl.u32 %v897, 7
    %v899 = vsub.s32 3, %v898
    %v900 = vrot.slane %v626, %v899
    %v901 = vlaneseq
    %v902 = vshrl.u32 %v901, 7
    %v903 = vsub.s32 3, %v902
    %v904 = vrot.slane %v628, %v903
    %905 = vset.pattern.permute.xlu0 11
    %906 = vperm.xlu0 %905, %v633
    %v907 = vpop.permute.xlu0 %906
    %909 = vset.pattern.permute.xlu0 11
    %910 = vperm.xlu0 %909, %v634
    %v911 = vpop.permute.xlu0 %910
    %v913 = vmul.f32 %v900, %v907
    %v914 = vmul.f32 %v900, %v911
    %v915 = vmul.f32 %v904, %v907
    %v916 = vmul.f32 %v904, %v911
    %v917 = vadd.f32 %v893, %v913
    %v918 = vadd.f32 %v894, %v914
    %v919 = vadd.f32 %v895, %v915
    %v920 = vadd.f32 %v896, %v916
    %v921 = vlaneseq
    %v922 = vshrl.u32 %v921, 7
    %v923 = vsub.s32 4, %v922
    %v924 = vrot.slane %v626, %v923
    %v925 = vlaneseq
    %v926 = vshrl.u32 %v925, 7
    %v927 = vsub.s32 4, %v926
    %v928 = vrot.slane %v628, %v927
    %929 = vset.pattern.permute.xlu0 12
    %930 = vperm.xlu0 %929, %v633
    %v931 = vpop.permute.xlu0 %930
    %933 = vset.pattern.permute.xlu0 12
    %934 = vperm.xlu0 %933, %v634
    %v935 = vpop.permute.xlu0 %934
    %v937 = vmul.f32 %v924, %v931
    %v938 = vmul.f32 %v924, %v935
    %v939 = vmul.f32 %v928, %v931
    %v940 = vmul.f32 %v928, %v935
    %v941 = vadd.f32 %v917, %v937
    %v942 = vadd.f32 %v918, %v938
    %v943 = vadd.f32 %v919, %v939
    %v944 = vadd.f32 %v920, %v940
    %v945 = vlaneseq
    %v946 = vshrl.u32 %v945, 7
    %v947 = vsub.s32 5, %v946
    %v948 = vrot.slane %v626, %v947
    %v949 = vlaneseq
    %v950 = vshrl.u32 %v949, 7
    %v951 = vsub.s32 5, %v950
    %v952 = vrot.slane %v628, %v951
    %953 = vset.pattern.permute.xlu0 13
    %954 = vperm.xlu0 %953, %v633
    %v955 = vpop.permute.xlu0 %954
    %957 = vset.pattern.permute.xlu0 13
    %958 = vperm.xlu0 %957, %v634
    %v959 = vpop.permute.xlu0 %958
    %v961 = vmul.f32 %v948, %v955
    %v962 = vmul.f32 %v948, %v959
    %v963 = vmul.f32 %v952, %v955
    %v964 = vmul.f32 %v952, %v959
    %v965 = vadd.f32 %v941, %v961
    %v966 = vadd.f32 %v942, %v962
    %v967 = vadd.f32 %v943, %v963
    %v968 = vadd.f32 %v944, %v964
    %v969 = vlaneseq
    %v970 = vshrl.u32 %v969, 7
    %v971 = vsub.s32 6, %v970
    %v972 = vrot.slane %v626, %v971
    %v973 = vlaneseq
    %v974 = vshrl.u32 %v973, 7
    %v975 = vsub.s32 6, %v974
    %v976 = vrot.slane %v628, %v975
    %977 = vset.pattern.permute.xlu0 14
    %978 = vperm.xlu0 %977, %v633
    %v979 = vpop.permute.xlu0 %978
    %981 = vset.pattern.permute.xlu0 14
    %982 = vperm.xlu0 %981, %v634
    %v983 = vpop.permute.xlu0 %982
    %v985 = vmul.f32 %v972, %v979
    %v986 = vmul.f32 %v972, %v983
    %v987 = vmul.f32 %v976, %v979
    %v988 = vmul.f32 %v976, %v983
    %v989 = vadd.f32 %v965, %v985
    %v990 = vadd.f32 %v966, %v986
    %v991 = vadd.f32 %v967, %v987
    %v992 = vadd.f32 %v968, %v988
    %v993 = vlaneseq
    %v994 = vshrl.u32 %v993, 7
    %v995 = vsub.s32 7, %v994
    %v996 = vrot.slane %v626, %v995
    %v997 = vlaneseq
    %v998 = vshrl.u32 %v997, 7
    %v999 = vsub.s32 7, %v998
    %v1000 = vrot.slane %v628, %v999
    %1001 = vset.pattern.permute.xlu0 15
    %1002 = vperm.xlu0 %1001, %v633
    %v1003 = vpop.permute.xlu0 %1002
    %1005 = vset.pattern.permute.xlu0 15
    %1006 = vperm.xlu0 %1005, %v634
    %v1007 = vpop.permute.xlu0 %1006
    %v1009 = vmul.f32 %v996, %v1003
    %v1010 = vmul.f32 %v996, %v1007
    %v1011 = vmul.f32 %v1000, %v1003
    %v1012 = vmul.f32 %v1000, %v1007
    %v1013 = vadd.f32 %v989, %v1009
    %v1014 = vadd.f32 %v990, %v1010
    %v1015 = vadd.f32 %v991, %v1011
    %v1016 = vadd.f32 %v992, %v1012
    %v1017 = vld [vmem:[%s5] sm:$0xff]
    %v1018 = vld [vmem:[%s5 + $0x8] sm:$0xff]
    %1020 = vset.pattern.permute.xlu0 0
    %1021 = vperm.xlu0 %1020, %v1017
    %v1022 = vpop.permute.xlu0 %1021
    %1025 = vset.pattern.permute.xlu0 0
    %1026 = vperm.xlu0 %1025, %v1018
    %v1027 = vpop.permute.xlu0 %1026
    %v1030 = vsel %vm136, %v1013, 0
    %v1033 = vsel %vm136, %v1014, 0
    %1035 = vmatprep.subr.mxu0 0.0
    %1036 = vmatpush1.msra.mxu0 %v346
    %1037 = vmatprep.subr.mxu0 0.0
    %1038 = vmatpush1.msra.mxu0 %v347
    %1039 = vmatprep.subr.mxu0 0.0
    %1040 = vmatpush1.msra.mxu0 %v348
    %1041 = vmatprep.subr.mxu0 0.0
    %1042 = vmatpush1.msra.mxu0 %v349
    %1043 = vmatprep.subr.mxu0 0.0
    %1044 = vmatpush1.msra.mxu0 %v350
    %1045 = vmatprep.subr.mxu0 0.0
    %1046 = vmatpush1.msra.mxu0 %v351
    %1047 = vmatprep.subr.mxu0 0.0
    %1048 = vmatpush1.msra.mxu0 %v352
    %1049 = vmatprep.subr.mxu0 0.0
    %1050 = vmatpush1.msra.mxu0 %v353
    %1051 = vmatprep.subr.mxu0 0.0
    %1052 = vmatpush1.msra.mxu0 %v354
    %1053 = vmatprep.subr.mxu0 0.0
    %1054 = vmatpush1.msra.mxu0 %v355
    %1055 = vmatprep.subr.mxu0 0.0
    %1056 = vmatpush1.msra.mxu0 %v356
    %1057 = vmatprep.subr.mxu0 0.0
    %1058 = vmatpush1.msra.mxu0 %v464
    %1059 = vmatprep.subr.mxu0 0.0
    %1060 = vmatpush1.msra.mxu0 0.0
    %1061 = vmatprep.subr.mxu0 0.0
    %1062 = vmatpush1.msra.mxu0 0.0
    %1063 = vmatprep.subr.mxu0 0.0
    %1064 = vmatpush1.msra.mxu0 0.0
    %1065 = vmatprep.subr.mxu0 0.0
    %1066 = vmatpush1.msra.mxu0 0.0
    %1067 = vmatprep.subr.mxu0 0.0
    %1068 = vmatpush1.msra.mxu0 0.0
    %1069 = vmatprep.subr.mxu0 0.0
    %1070 = vmatpush1.msra.mxu0 0.0
    %1071 = vmatprep.subr.mxu0 0.0
    %1072 = vmatpush1.msra.mxu0 0.0
    %1073 = vmatprep.subr.mxu0 0.0
    %1074 = vmatpush1.msra.mxu0 0.0
    %1075 = vmatprep.subr.mxu0 0.0
    %1076 = vmatpush1.msra.mxu0 0.0
    %1077 = vmatprep.subr.mxu0 0.0
    %1078 = vmatpush1.msra.mxu0 0.0
    %1079 = vmatprep.subr.mxu0 0.0
    %1080 = vmatpush1.msra.mxu0 0.0
    %1081 = vmatprep.subr.mxu0 0.0
    %1082 = vmatpush1.msra.mxu0 0.0
    %1083 = vmatprep.subr.mxu0 0.0
    %1084 = vmatpush1.msra.mxu0 0.0
    %1085 = vmatprep.subr.mxu0 0.0
    %1086 = vmatpush1.msra.mxu0 0.0
    %1087 = vmatprep.subr.mxu0 0.0
    %1088 = vmatpush1.msra.mxu0 0.0
    %1089 = vmatprep.subr.mxu0 0.0
    %1090 = vmatpush1.msra.mxu0 0.0
    %1091 = vmatprep.subr.mxu0 0.0
    %1092 = vmatpush1.msra.mxu0 0.0
    %1093 = vmatprep.subr.mxu0 0.0
    %1094 = vmatpush1.msra.mxu0 0.0
    %1095 = vmatprep.subr.mxu0 0.0
    %1096 = vmatpush1.msra.mxu0 0.0
    %1097 = vmatprep.subr.mxu0 0.0
    %1098 = vmatpush1.msra.mxu0 0.0
    %1099 = vmatprep.mubr.f32.mxu0 0.0
    %1100 = vmatmul.mubr.f32.gmra.mrb[0].mxu0 %v1030
    %v1101 = vpop.f32.mrb[0].mxu0
    %v1102 = vadd.f32 %v1022, %v1101
    %v1103 = vpop.f32.mrb[0].mxu0
    %1104 = vmatprep.mubr.f32.mxu0 0.0
    %1105 = vmatmul.mubr.f32.gmra.mrb[0].mxu0 %v1033
    %v1106 = vpop.f32.mrb[0].mxu0
    %v1107 = vadd.f32 %v1027, %v1106
    %v1108 = vpop.f32.mrb[0].mxu0
    %1109 = vdwg.mxu0
    %v1111 = vsel %vm136, %v1015, 0
    %v1114 = vsel %vm136, %v1016, 0
    %1116 = vmatprep.subr.mxu0 0.0
    %1117 = vmatpush1.msra.mxu0 %v358
    %1118 = vmatprep.subr.mxu0 0.0
    %1119 = vmatpush1.msra.mxu0 %v359
    %1120 = vmatprep.subr.mxu0 0.0
    %1121 = vmatpush1.msra.mxu0 %v360
    %1122 = vmatprep.subr.mxu0 0.0
    %1123 = vmatpush1.msra.mxu0 %v361
    %1124 = vmatprep.subr.mxu0 0.0
    %1125 = vmatpush1.msra.mxu0 %v362
    %1126 = vmatprep.subr.mxu0 0.0
    %1127 = vmatpush1.msra.mxu0 %v363
    %1128 = vmatprep.subr.mxu0 0.0
    %1129 = vmatpush1.msra.mxu0 %v364
    %1130 = vmatprep.subr.mxu0 0.0
    %1131 = vmatpush1.msra.mxu0 %v365
    %1132 = vmatprep.subr.mxu0 0.0
    %1133 = vmatpush1.msra.mxu0 %v366
    %1134 = vmatprep.subr.mxu0 0.0
    %1135 = vmatpush1.msra.mxu0 %v367
    %1136 = vmatprep.subr.mxu0 0.0
    %1137 = vmatpush1.msra.mxu0 %v368
    %1138 = vmatprep.subr.mxu0 0.0
    %1139 = vmatpush1.msra.mxu0 %v548
    %1140 = vmatprep.subr.mxu0 0.0
    %1141 = vmatpush1.msra.mxu0 0.0
    %1142 = vmatprep.subr.mxu0 0.0
    %1143 = vmatpush1.msra.mxu0 0.0
    %1144 = vmatprep.subr.mxu0 0.0
    %1145 = vmatpush1.msra.mxu0 0.0
    %1146 = vmatprep.subr.mxu0 0.0
    %1147 = vmatpush1.msra.mxu0 0.0
    %1148 = vmatprep.subr.mxu0 0.0
    %1149 = vmatpush1.msra.mxu0 0.0
    %1150 = vmatprep.subr.mxu0 0.0
    %1151 = vmatpush1.msra.mxu0 0.0
    %1152 = vmatprep.subr.mxu0 0.0
    %1153 = vmatpush1.msra.mxu0 0.0
    %1154 = vmatprep.subr.mxu0 0.0
    %1155 = vmatpush1.msra.mxu0 0.0
    %1156 = vmatprep.subr.mxu0 0.0
    %1157 = vmatpush1.msra.mxu0 0.0
    %1158 = vmatprep.subr.mxu0 0.0
    %1159 = vmatpush1.msra.mxu0 0.0
    %1160 = vmatprep.subr.mxu0 0.0
    %1161 = vmatpush1.msra.mxu0 0.0
    %1162 = vmatprep.subr.mxu0 0.0
    %1163 = vmatpush1.msra.mxu0 0.0
    %1164 = vmatprep.subr.mxu0 0.0
    %1165 = vmatpush1.msra.mxu0 0.0
    %1166 = vmatprep.subr.mxu0 0.0
    %1167 = vmatpush1.msra.mxu0 0.0
    %1168 = vmatprep.subr.mxu0 0.0
    %1169 = vmatpush1.msra.mxu0 0.0
    %1170 = vmatprep.subr.mxu0 0.0
    %1171 = vmatpush1.msra.mxu0 0.0
    %1172 = vmatprep.subr.mxu0 0.0
    %1173 = vmatpush1.msra.mxu0 0.0
    %1174 = vmatprep.subr.mxu0 0.0
    %1175 = vmatpush1.msra.mxu0 0.0
    %1176 = vmatprep.subr.mxu0 0.0
    %1177 = vmatpush1.msra.mxu0 0.0
    %1178 = vmatprep.subr.mxu0 0.0
    %1179 = vmatpush1.msra.mxu0 0.0
    %1180 = vmatprep.mubr.f32.mxu0 0.0
    %1181 = vmatmul.mubr.f32.gmra.mrb[0].mxu0 %v1111
    %v1182 = vpop.f32.mrb[0].mxu0
    %v1183 = vadd.f32 %v1022, %v1182
    %v1184 = vpop.f32.mrb[0].mxu0
    %1185 = vmatprep.mubr.f32.mxu0 0.0
    %1186 = vmatmul.mubr.f32.gmra.mrb[0].mxu0 %v1114
    %v1187 = vpop.f32.mrb[0].mxu0
    %v1188 = vadd.f32 %v1027, %v1187
    %v1189 = vpop.f32.mrb[0].mxu0
    %1190 = vdwg.mxu0
    %v1191 = vmax.f32 %v1102, 0.0
    %v1192 = vmax.f32 %v1107, 0.0
    %v1193 = vmax.f32 %v1183, 0.0
    %v1194 = vmax.f32 %v1188, 0.0
    %1195 = vst.msk [vmem:[%s6 + $0x10] sm:$0xff] %vm136, %v1191
    %1196 = vst.msk [vmem:[%s6 + $0x18] sm:$0xff] %vm136, %v1192
    %1197 = vst.msk [vmem:[%s6 + $0x40] sm:$0xff] %vm136, %v1193
    %1198 = vst.msk [vmem:[%s6 + $0x48] sm:$0xff] %vm136, %v1194
    %s1199 = scalar_lea.vmem [#allocation2], 16
    %v1200 = vld [vmem:[%s1199] sm:$0xff]
    %v1201 = vld [vmem:[%s1199 + $0x8] sm:$0xff]
    %v1202 = vlaneseq
    %v1203 = vshrl.u32 %v1202, 7
    %v1204 = vsub.s32 0, %v1203
    %v1205 = vrot.slane %v1191, %v1204
    %v1206 = vlaneseq
    %v1207 = vshrl.u32 %v1206, 7
    %v1208 = vsub.s32 0, %v1207
    %v1209 = vrot.slane %v1193, %v1208
    %1211 = vset.pattern.permute.xlu0 0
    %1212 = vperm.xlu0 %1211, %v1200
    %v1213 = vpop.permute.xlu0 %1212
    %1216 = vset.pattern.permute.xlu0 0
    %1217 = vperm.xlu0 %1216, %v1201
    %v1218 = vpop.permute.xlu0 %1217
    %v1220 = vmul.f32 %v1205, %v1213
    %v1221 = vmul.f32 %v1205, %v1218
    %v1222 = vmul.f32 %v1209, %v1213
    %v1223 = vmul.f32 %v1209, %v1218
    %v1224 = vlaneseq
    %v1225 = vshrl.u32 %v1224, 7
    %v1226 = vsub.s32 1, %v1225
    %v1227 = vrot.slane %v1191, %v1226
    %v1228 = vlaneseq
    %v1229 = vshrl.u32 %v1228, 7
    %v1230 = vsub.s32 1, %v1229
    %v1231 = vrot.slane %v1193, %v1230
    %1232 = vset.pattern.permute.xlu0 1
    %1233 = vperm.xlu0 %1232, %v1200
    %v1234 = vpop.permute.xlu0 %1233
    %1236 = vset.pattern.permute.xlu0 1
    %1237 = vperm.xlu0 %1236, %v1201
    %v1238 = vpop.permute.xlu0 %1237
    %v1240 = vmul.f32 %v1227, %v1234
    %v1241 = vmul.f32 %v1227, %v1238
    %v1242 = vmul.f32 %v1231, %v1234
    %v1243 = vmul.f32 %v1231, %v1238
    %v1244 = vadd.f32 %v1220, %v1240
    %v1245 = vadd.f32 %v1221, %v1241
    %v1246 = vadd.f32 %v1222, %v1242
    %v1247 = vadd.f32 %v1223, %v1243
    %v1248 = vlaneseq
    %v1249 = vshrl.u32 %v1248, 7
    %v1250 = vsub.s32 2, %v1249
    %v1251 = vrot.slane %v1191, %v1250
    %v1252 = vlaneseq
    %v1253 = vshrl.u32 %v1252, 7
    %v1254 = vsub.s32 2, %v1253
    %v1255 = vrot.slane %v1193, %v1254
    %1256 = vset.pattern.permute.xlu0 2
    %1257 = vperm.xlu0 %1256, %v1200
    %v1258 = vpop.permute.xlu0 %1257
    %1260 = vset.pattern.permute.xlu0 2
    %1261 = vperm.xlu0 %1260, %v1201
    %v1262 = vpop.permute.xlu0 %1261
    %v1264 = vmul.f32 %v1251, %v1258
    %v1265 = vmul.f32 %v1251, %v1262
    %v1266 = vmul.f32 %v1255, %v1258
    %v1267 = vmul.f32 %v1255, %v1262
    %v1268 = vadd.f32 %v1244, %v1264
    %v1269 = vadd.f32 %v1245, %v1265
    %v1270 = vadd.f32 %v1246, %v1266
    %v1271 = vadd.f32 %v1247, %v1267
    %v1272 = vlaneseq
    %v1273 = vshrl.u32 %v1272, 7
    %v1274 = vsub.s32 3, %v1273
    %v1275 = vrot.slane %v1191, %v1274
    %v1276 = vlaneseq
    %v1277 = vshrl.u32 %v1276, 7
    %v1278 = vsub.s32 3, %v1277
    %v1279 = vrot.slane %v1193, %v1278
    %1280 = vset.pattern.permute.xlu0 3
    %1281 = vperm.xlu0 %1280, %v1200
    %v1282 = vpop.permute.xlu0 %1281
    %1284 = vset.pattern.permute.xlu0 3
    %1285 = vperm.xlu0 %1284, %v1201
    %v1286 = vpop.permute.xlu0 %1285
    %v1288 = vmul.f32 %v1275, %v1282
    %v1289 = vmul.f32 %v1275, %v1286
    %v1290 = vmul.f32 %v1279, %v1282
    %v1291 = vmul.f32 %v1279, %v1286
    %v1292 = vadd.f32 %v1268, %v1288
    %v1293 = vadd.f32 %v1269, %v1289
    %v1294 = vadd.f32 %v1270, %v1290
    %v1295 = vadd.f32 %v1271, %v1291
    %v1296 = vlaneseq
    %v1297 = vshrl.u32 %v1296, 7
    %v1298 = vsub.s32 4, %v1297
    %v1299 = vrot.slane %v1191, %v1298
    %v1300 = vlaneseq
    %v1301 = vshrl.u32 %v1300, 7
    %v1302 = vsub.s32 4, %v1301
    %v1303 = vrot.slane %v1193, %v1302
    %1304 = vset.pattern.permute.xlu0 4
    %1305 = vperm.xlu0 %1304, %v1200
    %v1306 = vpop.permute.xlu0 %1305
    %1308 = vset.pattern.permute.xlu0 4
    %1309 = vperm.xlu0 %1308, %v1201
    %v1310 = vpop.permute.xlu0 %1309
    %v1312 = vmul.f32 %v1299, %v1306
    %v1313 = vmul.f32 %v1299, %v1310
    %v1314 = vmul.f32 %v1303, %v1306
    %v1315 = vmul.f32 %v1303, %v1310
    %v1316 = vadd.f32 %v1292, %v1312
    %v1317 = vadd.f32 %v1293, %v1313
    %v1318 = vadd.f32 %v1294, %v1314
    %v1319 = vadd.f32 %v1295, %v1315
    %v1320 = vlaneseq
    %v1321 = vshrl.u32 %v1320, 7
    %v1322 = vsub.s32 5, %v1321
    %v1323 = vrot.slane %v1191, %v1322
    %v1324 = vlaneseq
    %v1325 = vshrl.u32 %v1324, 7
    %v1326 = vsub.s32 5, %v1325
    %v1327 = vrot.slane %v1193, %v1326
    %1328 = vset.pattern.permute.xlu0 5
    %1329 = vperm.xlu0 %1328, %v1200
    %v1330 = vpop.permute.xlu0 %1329
    %1332 = vset.pattern.permute.xlu0 5
    %1333 = vperm.xlu0 %1332, %v1201
    %v1334 = vpop.permute.xlu0 %1333
    %v1336 = vmul.f32 %v1323, %v1330
    %v1337 = vmul.f32 %v1323, %v1334
    %v1338 = vmul.f32 %v1327, %v1330
    %v1339 = vmul.f32 %v1327, %v1334
    %v1340 = vadd.f32 %v1316, %v1336
    %v1341 = vadd.f32 %v1317, %v1337
    %v1342 = vadd.f32 %v1318, %v1338
    %v1343 = vadd.f32 %v1319, %v1339
    %v1344 = vlaneseq
    %v1345 = vshrl.u32 %v1344, 7
    %v1346 = vsub.s32 6, %v1345
    %v1347 = vrot.slane %v1191, %v1346
    %v1348 = vlaneseq
    %v1349 = vshrl.u32 %v1348, 7
    %v1350 = vsub.s32 6, %v1349
    %v1351 = vrot.slane %v1193, %v1350
    %1352 = vset.pattern.permute.xlu0 6
    %1353 = vperm.xlu0 %1352, %v1200
    %v1354 = vpop.permute.xlu0 %1353
    %1356 = vset.pattern.permute.xlu0 6
    %1357 = vperm.xlu0 %1356, %v1201
    %v1358 = vpop.permute.xlu0 %1357
    %v1360 = vmul.f32 %v1347, %v1354
    %v1361 = vmul.f32 %v1347, %v1358
    %v1362 = vmul.f32 %v1351, %v1354
    %v1363 = vmul.f32 %v1351, %v1358
    %v1364 = vadd.f32 %v1340, %v1360
    %v1365 = vadd.f32 %v1341, %v1361
    %v1366 = vadd.f32 %v1342, %v1362
    %v1367 = vadd.f32 %v1343, %v1363
    %v1368 = vlaneseq
    %v1369 = vshrl.u32 %v1368, 7
    %v1370 = vsub.s32 7, %v1369
    %v1371 = vrot.slane %v1191, %v1370
    %v1372 = vlaneseq
    %v1373 = vshrl.u32 %v1372, 7
    %v1374 = vsub.s32 7, %v1373
    %v1375 = vrot.slane %v1193, %v1374
    %1376 = vset.pattern.permute.xlu0 7
    %1377 = vperm.xlu0 %1376, %v1200
    %v1378 = vpop.permute.xlu0 %1377
    %1380 = vset.pattern.permute.xlu0 7
    %1381 = vperm.xlu0 %1380, %v1201
    %v1382 = vpop.permute.xlu0 %1381
    %v1384 = vmul.f32 %v1371, %v1378
    %v1385 = vmul.f32 %v1371, %v1382
    %v1386 = vmul.f32 %v1375, %v1378
    %v1387 = vmul.f32 %v1375, %v1382
    %v1388 = vadd.f32 %v1364, %v1384
    %v1389 = vadd.f32 %v1365, %v1385
    %v1390 = vadd.f32 %v1366, %v1386
    %v1391 = vadd.f32 %v1367, %v1387
    %v1392 = vlaneseq
    %v1393 = vshrl.u32 %v1392, 7
    %v1394 = vsub.s32 0, %v1393
    %v1395 = vrot.slane %v1192, %v1394
    %v1396 = vlaneseq
    %v1397 = vshrl.u32 %v1396, 7
    %v1398 = vsub.s32 0, %v1397
    %v1399 = vrot.slane %v1194, %v1398
    %1400 = vset.pattern.permute.xlu0 8
    %1401 = vperm.xlu0 %1400, %v1200
    %v1402 = vpop.permute.xlu0 %1401
    %1404 = vset.pattern.permute.xlu0 8
    %1405 = vperm.xlu0 %1404, %v1201
    %v1406 = vpop.permute.xlu0 %1405
    %v1408 = vmul.f32 %v1395, %v1402
    %v1409 = vmul.f32 %v1395, %v1406
    %v1410 = vmul.f32 %v1399, %v1402
    %v1411 = vmul.f32 %v1399, %v1406
    %v1412 = vadd.f32 %v1388, %v1408
    %v1413 = vadd.f32 %v1389, %v1409
    %v1414 = vadd.f32 %v1390, %v1410
    %v1415 = vadd.f32 %v1391, %v1411
    %v1416 = vlaneseq
    %v1417 = vshrl.u32 %v1416, 7
    %v1418 = vsub.s32 1, %v1417
    %v1419 = vrot.slane %v1192, %v1418
    %v1420 = vlaneseq
    %v1421 = vshrl.u32 %v1420, 7
    %v1422 = vsub.s32 1, %v1421
    %v1423 = vrot.slane %v1194, %v1422
    %1424 = vset.pattern.permute.xlu0 9
    %1425 = vperm.xlu0 %1424, %v1200
    %v1426 = vpop.permute.xlu0 %1425
    %1428 = vset.pattern.permute.xlu0 9
    %1429 = vperm.xlu0 %1428, %v1201
    %v1430 = vpop.permute.xlu0 %1429
    %v1432 = vmul.f32 %v1419, %v1426
    %v1433 = vmul.f32 %v1419, %v1430
    %v1434 = vmul.f32 %v1423, %v1426
    %v1435 = vmul.f32 %v1423, %v1430
    %v1436 = vadd.f32 %v1412, %v1432
    %v1437 = vadd.f32 %v1413, %v1433
    %v1438 = vadd.f32 %v1414, %v1434
    %v1439 = vadd.f32 %v1415, %v1435
    %v1440 = vlaneseq
    %v1441 = vshrl.u32 %v1440, 7
    %v1442 = vsub.s32 2, %v1441
    %v1443 = vrot.slane %v1192, %v1442
    %v1444 = vlaneseq
    %v1445 = vshrl.u32 %v1444, 7
    %v1446 = vsub.s32 2, %v1445
    %v1447 = vrot.slane %v1194, %v1446
    %1448 = vset.pattern.permute.xlu0 10
    %1449 = vperm.xlu0 %1448, %v1200
    %v1450 = vpop.permute.xlu0 %1449
    %1452 = vset.pattern.permute.xlu0 10
    %1453 = vperm.xlu0 %1452, %v1201
    %v1454 = vpop.permute.xlu0 %1453
    %v1456 = vmul.f32 %v1443, %v1450
    %v1457 = vmul.f32 %v1443, %v1454
    %v1458 = vmul.f32 %v1447, %v1450
    %v1459 = vmul.f32 %v1447, %v1454
    %v1460 = vadd.f32 %v1436, %v1456
    %v1461 = vadd.f32 %v1437, %v1457
    %v1462 = vadd.f32 %v1438, %v1458
    %v1463 = vadd.f32 %v1439, %v1459
    %v1464 = vlaneseq
    %v1465 = vshrl.u32 %v1464, 7
    %v1466 = vsub.s32 3, %v1465
    %v1467 = vrot.slane %v1192, %v1466
    %v1468 = vlaneseq
    %v1469 = vshrl.u32 %v1468, 7
    %v1470 = vsub.s32 3, %v1469
    %v1471 = vrot.slane %v1194, %v1470
    %1472 = vset.pattern.permute.xlu0 11
    %1473 = vperm.xlu0 %1472, %v1200
    %v1474 = vpop.permute.xlu0 %1473
    %1476 = vset.pattern.permute.xlu0 11
    %1477 = vperm.xlu0 %1476, %v1201
    %v1478 = vpop.permute.xlu0 %1477
    %v1480 = vmul.f32 %v1467, %v1474
    %v1481 = vmul.f32 %v1467, %v1478
    %v1482 = vmul.f32 %v1471, %v1474
    %v1483 = vmul.f32 %v1471, %v1478
    %v1484 = vadd.f32 %v1460, %v1480
    %v1485 = vadd.f32 %v1461, %v1481
    %v1486 = vadd.f32 %v1462, %v1482
    %v1487 = vadd.f32 %v1463, %v1483
    %v1488 = vlaneseq
    %v1489 = vshrl.u32 %v1488, 7
    %v1490 = vsub.s32 4, %v1489
    %v1491 = vrot.slane %v1192, %v1490
    %v1492 = vlaneseq
    %v1493 = vshrl.u32 %v1492, 7
    %v1494 = vsub.s32 4, %v1493
    %v1495 = vrot.slane %v1194, %v1494
    %1496 = vset.pattern.permute.xlu0 12
    %1497 = vperm.xlu0 %1496, %v1200
    %v1498 = vpop.permute.xlu0 %1497
    %1500 = vset.pattern.permute.xlu0 12
    %1501 = vperm.xlu0 %1500, %v1201
    %v1502 = vpop.permute.xlu0 %1501
    %v1504 = vmul.f32 %v1491, %v1498
    %v1505 = vmul.f32 %v1491, %v1502
    %v1506 = vmul.f32 %v1495, %v1498
    %v1507 = vmul.f32 %v1495, %v1502
    %v1508 = vadd.f32 %v1484, %v1504
    %v1509 = vadd.f32 %v1485, %v1505
    %v1510 = vadd.f32 %v1486, %v1506
    %v1511 = vadd.f32 %v1487, %v1507
    %v1512 = vlaneseq
    %v1513 = vshrl.u32 %v1512, 7
    %v1514 = vsub.s32 5, %v1513
    %v1515 = vrot.slane %v1192, %v1514
    %v1516 = vlaneseq
    %v1517 = vshrl.u32 %v1516, 7
    %v1518 = vsub.s32 5, %v1517
    %v1519 = vrot.slane %v1194, %v1518
    %1520 = vset.pattern.permute.xlu0 13
    %1521 = vperm.xlu0 %1520, %v1200
    %v1522 = vpop.permute.xlu0 %1521
    %1524 = vset.pattern.permute.xlu0 13
    %1525 = vperm.xlu0 %1524, %v1201
    %v1526 = vpop.permute.xlu0 %1525
    %v1528 = vmul.f32 %v1515, %v1522
    %v1529 = vmul.f32 %v1515, %v1526
    %v1530 = vmul.f32 %v1519, %v1522
    %v1531 = vmul.f32 %v1519, %v1526
    %v1532 = vadd.f32 %v1508, %v1528
    %v1533 = vadd.f32 %v1509, %v1529
    %v1534 = vadd.f32 %v1510, %v1530
    %v1535 = vadd.f32 %v1511, %v1531
    %v1536 = vlaneseq
    %v1537 = vshrl.u32 %v1536, 7
    %v1538 = vsub.s32 6, %v1537
    %v1539 = vrot.slane %v1192, %v1538
    %v1540 = vlaneseq
    %v1541 = vshrl.u32 %v1540, 7
    %v1542 = vsub.s32 6, %v1541
    %v1543 = vrot.slane %v1194, %v1542
    %1544 = vset.pattern.permute.xlu0 14
    %1545 = vperm.xlu0 %1544, %v1200
    %v1546 = vpop.permute.xlu0 %1545
    %1548 = vset.pattern.permute.xlu0 14
    %1549 = vperm.xlu0 %1548, %v1201
    %v1550 = vpop.permute.xlu0 %1549
    %v1552 = vmul.f32 %v1539, %v1546
    %v1553 = vmul.f32 %v1539, %v1550
    %v1554 = vmul.f32 %v1543, %v1546
    %v1555 = vmul.f32 %v1543, %v1550
    %v1556 = vadd.f32 %v1532, %v1552
    %v1557 = vadd.f32 %v1533, %v1553
    %v1558 = vadd.f32 %v1534, %v1554
    %v1559 = vadd.f32 %v1535, %v1555
    %v1560 = vlaneseq
    %v1561 = vshrl.u32 %v1560, 7
    %v1562 = vsub.s32 7, %v1561
    %v1563 = vrot.slane %v1192, %v1562
    %v1564 = vlaneseq
    %v1565 = vshrl.u32 %v1564, 7
    %v1566 = vsub.s32 7, %v1565
    %v1567 = vrot.slane %v1194, %v1566
    %1568 = vset.pattern.permute.xlu0 15
    %1569 = vperm.xlu0 %1568, %v1200
    %v1570 = vpop.permute.xlu0 %1569
    %1572 = vset.pattern.permute.xlu0 15
    %1573 = vperm.xlu0 %1572, %v1201
    %v1574 = vpop.permute.xlu0 %1573
    %v1576 = vmul.f32 %v1563, %v1570
    %v1577 = vmul.f32 %v1563, %v1574
    %v1578 = vmul.f32 %v1567, %v1570
    %v1579 = vmul.f32 %v1567, %v1574
    %v1580 = vadd.f32 %v1556, %v1576
    %v1581 = vadd.f32 %v1557, %v1577
    %v1582 = vadd.f32 %v1558, %v1578
    %v1583 = vadd.f32 %v1559, %v1579
    %s1584 = scalar_lea.vmem %s5, 16
    %v1585 = vld [vmem:[%s1584] sm:$0xff]
    %v1586 = vld [vmem:[%s1584 + $0x8] sm:$0xff]
    %1588 = vset.pattern.permute.xlu0 0
    %1589 = vperm.xlu0 %1588, %v1585
    %v1590 = vpop.permute.xlu0 %1589
    %1593 = vset.pattern.permute.xlu0 0
    %1594 = vperm.xlu0 %1593, %v1586
    %v1595 = vpop.permute.xlu0 %1594
    %v1598 = vsel %vm136, %v1580, 0
    %v1601 = vsel %vm136, %v1581, 0
    %1603 = vmatprep.subr.mxu0 0.0
    %1604 = vmatpush1.msra.mxu0 %v346
    %1605 = vmatprep.subr.mxu0 0.0
    %1606 = vmatpush1.msra.mxu0 %v347
    %1607 = vmatprep.subr.mxu0 0.0
    %1608 = vmatpush1.msra.mxu0 %v348
    %1609 = vmatprep.subr.mxu0 0.0
    %1610 = vmatpush1.msra.mxu0 %v349
    %1611 = vmatprep.subr.mxu0 0.0
    %1612 = vmatpush1.msra.mxu0 %v350
    %1613 = vmatprep.subr.mxu0 0.0
    %1614 = vmatpush1.msra.mxu0 %v351
    %1615 = vmatprep.subr.mxu0 0.0
    %1616 = vmatpush1.msra.mxu0 %v352
    %1617 = vmatprep.subr.mxu0 0.0
    %1618 = vmatpush1.msra.mxu0 %v353
    %1619 = vmatprep.subr.mxu0 0.0
    %1620 = vmatpush1.msra.mxu0 %v354
    %1621 = vmatprep.subr.mxu0 0.0
    %1622 = vmatpush1.msra.mxu0 %v355
    %1623 = vmatprep.subr.mxu0 0.0
    %1624 = vmatpush1.msra.mxu0 %v356
    %1625 = vmatprep.subr.mxu0 0.0
    %1626 = vmatpush1.msra.mxu0 %v464
    %1627 = vmatprep.subr.mxu0 0.0
    %1628 = vmatpush1.msra.mxu0 0.0
    %1629 = vmatprep.subr.mxu0 0.0
    %1630 = vmatpush1.msra.mxu0 0.0
    %1631 = vmatprep.subr.mxu0 0.0
    %1632 = vmatpush1.msra.mxu0 0.0
    %1633 = vmatprep.subr.mxu0 0.0
    %1634 = vmatpush1.msra.mxu0 0.0
    %1635 = vmatprep.subr.mxu0 0.0
    %1636 = vmatpush1.msra.mxu0 0.0
    %1637 = vmatprep.subr.mxu0 0.0
    %1638 = vmatpush1.msra.mxu0 0.0
    %1639 = vmatprep.subr.mxu0 0.0
    %1640 = vmatpush1.msra.mxu0 0.0
    %1641 = vmatprep.subr.mxu0 0.0
    %1642 = vmatpush1.msra.mxu0 0.0
    %1643 = vmatprep.subr.mxu0 0.0
    %1644 = vmatpush1.msra.mxu0 0.0
    %1645 = vmatprep.subr.mxu0 0.0
    %1646 = vmatpush1.msra.mxu0 0.0
    %1647 = vmatprep.subr.mxu0 0.0
    %1648 = vmatpush1.msra.mxu0 0.0
    %1649 = vmatprep.subr.mxu0 0.0
    %1650 = vmatpush1.msra.mxu0 0.0
    %1651 = vmatprep.subr.mxu0 0.0
    %1652 = vmatpush1.msra.mxu0 0.0
    %1653 = vmatprep.subr.mxu0 0.0
    %1654 = vmatpush1.msra.mxu0 0.0
    %1655 = vmatprep.subr.mxu0 0.0
    %1656 = vmatpush1.msra.mxu0 0.0
    %1657 = vmatprep.subr.mxu0 0.0
    %1658 = vmatpush1.msra.mxu0 0.0
    %1659 = vmatprep.subr.mxu0 0.0
    %1660 = vmatpush1.msra.mxu0 0.0
    %1661 = vmatprep.subr.mxu0 0.0
    %1662 = vmatpush1.msra.mxu0 0.0
    %1663 = vmatprep.subr.mxu0 0.0
    %1664 = vmatpush1.msra.mxu0 0.0
    %1665 = vmatprep.subr.mxu0 0.0
    %1666 = vmatpush1.msra.mxu0 0.0
    %1667 = vmatprep.mubr.f32.mxu0 0.0
    %1668 = vmatmul.mubr.f32.gmra.mrb[0].mxu0 %v1598
    %v1669 = vpop.f32.mrb[0].mxu0
    %v1670 = vadd.f32 %v1590, %v1669
    %v1671 = vpop.f32.mrb[0].mxu0
    %1672 = vmatprep.mubr.f32.mxu0 0.0
    %1673 = vmatmul.mubr.f32.gmra.mrb[0].mxu0 %v1601
    %v1674 = vpop.f32.mrb[0].mxu0
    %v1675 = vadd.f32 %v1595, %v1674
    %v1676 = vpop.f32.mrb[0].mxu0
    %1677 = vdwg.mxu0
    %v1679 = vsel %vm136, %v1582, 0
    %v1682 = vsel %vm136, %v1583, 0
    %1684 = vmatprep.subr.mxu0 0.0
    %1685 = vmatpush1.msra.mxu0 %v358
    %1686 = vmatprep.subr.mxu0 0.0
    %1687 = vmatpush1.msra.mxu0 %v359
    %1688 = vmatprep.subr.mxu0 0.0
    %1689 = vmatpush1.msra.mxu0 %v360
    %1690 = vmatprep.subr.mxu0 0.0
    %1691 = vmatpush1.msra.mxu0 %v361
    %1692 = vmatprep.subr.mxu0 0.0
    %1693 = vmatpush1.msra.mxu0 %v362
    %1694 = vmatprep.subr.mxu0 0.0
    %1695 = vmatpush1.msra.mxu0 %v363
    %1696 = vmatprep.subr.mxu0 0.0
    %1697 = vmatpush1.msra.mxu0 %v364
    %1698 = vmatprep.subr.mxu0 0.0
    %1699 = vmatpush1.msra.mxu0 %v365
    %1700 = vmatprep.subr.mxu0 0.0
    %1701 = vmatpush1.msra.mxu0 %v366
    %1702 = vmatprep.subr.mxu0 0.0
    %1703 = vmatpush1.msra.mxu0 %v367
    %1704 = vmatprep.subr.mxu0 0.0
    %1705 = vmatpush1.msra.mxu0 %v368
    %1706 = vmatprep.subr.mxu0 0.0
    %1707 = vmatpush1.msra.mxu0 %v548
    %1708 = vmatprep.subr.mxu0 0.0
    %1709 = vmatpush1.msra.mxu0 0.0
    %1710 = vmatprep.subr.mxu0 0.0
    %1711 = vmatpush1.msra.mxu0 0.0
    %1712 = vmatprep.subr.mxu0 0.0
    %1713 = vmatpush1.msra.mxu0 0.0
    %1714 = vmatprep.subr.mxu0 0.0
    %1715 = vmatpush1.msra.mxu0 0.0
    %1716 = vmatprep.subr.mxu0 0.0
    %1717 = vmatpush1.msra.mxu0 0.0
    %1718 = vmatprep.subr.mxu0 0.0
    %1719 = vmatpush1.msra.mxu0 0.0
    %1720 = vmatprep.subr.mxu0 0.0
    %1721 = vmatpush1.msra.mxu0 0.0
    %1722 = vmatprep.subr.mxu0 0.0
    %1723 = vmatpush1.msra.mxu0 0.0
    %1724 = vmatprep.subr.mxu0 0.0
    %1725 = vmatpush1.msra.mxu0 0.0
    %1726 = vmatprep.subr.mxu0 0.0
    %1727 = vmatpush1.msra.mxu0 0.0
    %1728 = vmatprep.subr.mxu0 0.0
    %1729 = vmatpush1.msra.mxu0 0.0
    %1730 = vmatprep.subr.mxu0 0.0
    %1731 = vmatpush1.msra.mxu0 0.0
    %1732 = vmatprep.subr.mxu0 0.0
    %1733 = vmatpush1.msra.mxu0 0.0
    %1734 = vmatprep.subr.mxu0 0.0
    %1735 = vmatpush1.msra.mxu0 0.0
    %1736 = vmatprep.subr.mxu0 0.0
    %1737 = vmatpush1.msra.mxu0 0.0
    %1738 = vmatprep.subr.mxu0 0.0
    %1739 = vmatpush1.msra.mxu0 0.0
    %1740 = vmatprep.subr.mxu0 0.0
    %1741 = vmatpush1.msra.mxu0 0.0
    %1742 = vmatprep.subr.mxu0 0.0
    %1743 = vmatpush1.msra.mxu0 0.0
    %1744 = vmatprep.subr.mxu0 0.0
    %1745 = vmatpush1.msra.mxu0 0.0
    %1746 = vmatprep.subr.mxu0 0.0
    %1747 = vmatpush1.msra.mxu0 0.0
    %1748 = vmatprep.mubr.f32.mxu0 0.0
    %1749 = vmatmul.mubr.f32.gmra.mrb[0].mxu0 %v1679
    %v1750 = vpop.f32.mrb[0].mxu0
    %v1751 = vadd.f32 %v1590, %v1750
    %v1752 = vpop.f32.mrb[0].mxu0
    %1753 = vmatprep.mubr.f32.mxu0 0.0
    %1754 = vmatmul.mubr.f32.gmra.mrb[0].mxu0 %v1682
    %v1755 = vpop.f32.mrb[0].mxu0
    %v1756 = vadd.f32 %v1595, %v1755
    %v1757 = vpop.f32.mrb[0].mxu0
    %1758 = vdwg.mxu0
    %v1759 = vmax.f32 %v1670, 0.0
    %v1760 = vmax.f32 %v1675, 0.0
    %v1761 = vmax.f32 %v1751, 0.0
    %v1762 = vmax.f32 %v1756, 0.0
    %1763 = vst.msk [vmem:[%s6 + $0x20] sm:$0xff] %vm136, %v1759
    %1764 = vst.msk [vmem:[%s6 + $0x28] sm:$0xff] %vm136, %v1760
    %1765 = vst.msk [vmem:[%s6 + $0x50] sm:$0xff] %vm136, %v1761
    %1766 = vst.msk [vmem:[%s6 + $0x58] sm:$0xff] %vm136, %v1762
    // Predicated region
    $region30: #{forward.2} parent=1 // pred_check
      _
    $region31: #{forward.2} parent=1 // pred_check_branch
      %1768 = sbr.rel (0) target = $region33
    $region32: #{forward.2} parent=1 // pred_region
      _
    $region33: #{forward.2} parent=1 // pred_fallthru
      _
    // Predicated region
    $region34: #{forward.2} parent=1 // pred_check
      _
    $region35: #{forward.2} parent=1 // pred_check_branch
      %1770 = sbr.rel (0) target = $region37
    $region36: #{forward.2} parent=1 // pred_region
      _
    $region37: #{forward.2} parent=1 // pred_fallthru
      _
    %1771 = vsyncpa [#allocation3], 1

// kernel: forward.3
$region0: #{forward.3}
  #allocation0 [shape = 'u32[]', space=smem, size = 0x4, offset = 0x4, fixed_abs, tag = 'smem constant byte address 0x4 - core index']
  #allocation1 [shape = 'u32[144,128]{1,0:T(1,128)}', space=vmem, size = 0x12000, scoped, tag = 'internal scratch']
  %s0 = inlined_call_operand.vmem [shape: f32[2,4320], index: 0, kind: input, shape index: {}]
  %s1 = inlined_call_operand.vmem [shape: f32[2,270], index: 1, kind: input, shape index: {}]
  %s2 = inlined_call_operand.hbm [shape: f32[1,270], index: 2, kind: input, shape index: {}]
  %s3 = inlined_call_operand.hbm [shape: f32[4320,128], index: 3, kind: input, shape index: {}]
  %s4 = inlined_call_operand.hbm [shape: f32[1,128], index: 4, kind: input, shape index: {}]
  %s5 = inlined_call_operand.vmem [shape: f32[64,2], index: 5, kind: input, shape index: {}]
  %s6 = inlined_call_operand.hbm [shape: f32[1,2], index: 6, kind: input, shape index: {}]
  %s7 = inlined_call_operand.vmem [shape: f32[270,64], index: 7, kind: input, shape index: {}]
  %s8 = inlined_call_operand.vmem [shape: f32[64,4], index: 8, kind: input, shape index: {}]
  %s9 = inlined_call_operand.hbm [shape: f32[1,4], index: 9, kind: input, shape index: {}]
  %s10 = inlined_call_operand.vmem [shape: f32[2,128], index: 10, kind: output, shape index: {}]
  %s11 = sld [smem:[#allocation0]]
  $region70: #{forward.3} parent=0
    _
  %s13 = ssub.s32 1, %s11
  %s14 = scalar_select 0, %s13, %s11
  $region1: #{forward.3} parent=0
    #allocation2 [shape = 'u8[1536]{0}', space=vmem, size = 0x800, scoped, tag = 'input window, operand 2, single buffered']
    #allocation3 [shape = 's32[1]{0}', space=sflag, size = 0x4, scoped, tag = 'scoped memory for forward.3']
    #allocation4 [shape = 'u8[2211840]{0}', space=vmem, size = 0x21c000, scoped, tag = 'input window, operand 3, single buffered']
    #allocation5 [shape = 's32[1]{0}', space=sflag, size = 0x4, scoped, tag = 'scoped memory for forward.3']
    #allocation6 [shape = 'u8[512]{0}', space=vmem, size = 0x400, scoped, tag = 'input window, operand 4, single buffered']
    #allocation7 [shape = 'u8[512]{0}', space=vmem, size = 0x400, scoped, tag = 'input window, operand 6, single buffered']
    #allocation8 [shape = 's32[1]{0}', space=sflag, size = 0x4, scoped, tag = 'scoped memory for forward.3']
    #allocation9 [shape = 'u8[512]{0}', space=vmem, size = 0x400, scoped, tag = 'input window, operand 9, single buffered']
    %15 = vsyncpa [#allocation3], 0
    %16 = vsyncpa [#allocation5], 0
    %17 = vsyncpa [#allocation8], 0
    // Predicated region
    $region2: #{forward.3} parent=1 // pred_check
      _
    $region3: #{forward.3} parent=1 // pred_check_branch
      %19 = sbr.rel (0) target = $region5
    $region4: #{forward.3} parent=1 // pred_region
      _
    $region5: #{forward.3} parent=1 // pred_fallthru
      _
    // Predicated region
    $region6: #{forward.3} parent=1 // pred_check
      _
    $region7: #{forward.3} parent=1 // pred_check_branch
      %21 = sbr.rel (0) target = $region9
    $region8: #{forward.3} parent=1 // pred_region
      _
    $region9: #{forward.3} parent=1 // pred_fallthru
      _
    // Predicated region
    $region10: #{forward.3} parent=1 // pred_check
      _
    $region11: #{forward.3} parent=1 // pred_check_branch
      %23 = sbr.rel (0) target = $region13
    $region12: #{forward.3} parent=1 // pred_region
      %s25 = ssub.s32 48, 48
      %26 = vsyncadd [#allocation3], %s25
      %s28 = sshll.u32 [#allocation2], 4
      %s29 = int_to_ptr.vmem [resolvable:$true] %s28
      %31 = dma.hbm_to_vmem [thread:$0]  %s2, 48, %s29, [#allocation3]
    $region13: #{forward.3} parent=1 // pred_fallthru
      _
    // Predicated region
    $region14: #{forward.3} parent=1 // pred_check
      _
    $region15: #{forward.3} parent=1 // pred_check_branch
      %33 = sbr.rel (0) target = $region17
    $region16: #{forward.3} parent=1 // pred_region
      %s35 = ssub.s32 69120, 69120
      %36 = vsyncadd [#allocation5], %s35
      %s37 = sshll.u32 [#allocation4], 4
      %s38 = int_to_ptr.vmem [resolvable:$true] %s37
      %43 = dma.hbm_to_vmem [thread:$0]  %s3, 69120, %s38, [#allocation5], 128, 128, 8
    $region17: #{forward.3} parent=1 // pred_fallthru
      _
    // Predicated region
    $region18: #{forward.3} parent=1 // pred_check
      _
    $region19: #{forward.3} parent=1 // pred_check_branch
      %45 = sbr.rel (0) target = $region21
    $region20: #{forward.3} parent=1 // pred_region
      %s47 = ssub.s32 16, 16
      %48 = vsyncadd [#allocation5], %s47
      %s50 = sshll.u32 [#allocation6], 4
      %s51 = int_to_ptr.vmem [resolvable:$true] %s50
      %53 = dma.hbm_to_vmem [thread:$0]  %s4, 16, %s51, [#allocation5]
    $region21: #{forward.3} parent=1 // pred_fallthru
      _
    // Predicated region
    $region22: #{forward.3} parent=1 // pred_check
      _
    $region23: #{forward.3} parent=1 // pred_check_branch
      %55 = sbr.rel (0) target = $region25
    $region24: #{forward.3} parent=1 // pred_region
      _
    $region25: #{forward.3} parent=1 // pred_fallthru
      _
    // Predicated region
    $region26: #{forward.3} parent=1 // pred_check
      _
    $region27: #{forward.3} parent=1 // pred_check_branch
      %57 = sbr.rel (0) target = $region29
    $region28: #{forward.3} parent=1 // pred_region
      %s59 = ssub.s32 16, 16
      %60 = vsyncadd [#allocation8], %s59
      %s62 = sshll.u32 [#allocation7], 4
      %s63 = int_to_ptr.vmem [resolvable:$true] %s62
      %65 = dma.hbm_to_vmem [thread:$0]  %s6, 16, %s63, [#allocation8]
    $region29: #{forward.3} parent=1 // pred_fallthru
      _
    // Predicated region
    $region30: #{forward.3} parent=1 // pred_check
      _
    $region31: #{forward.3} parent=1 // pred_check_branch
      %67 = sbr.rel (0) target = $region33
    $region32: #{forward.3} parent=1 // pred_region
      _
    $region33: #{forward.3} parent=1 // pred_fallthru
      _
    // Predicated region
    $region34: #{forward.3} parent=1 // pred_check
      _
    $region35: #{forward.3} parent=1 // pred_check_branch
      %69 = sbr.rel (0) target = $region37
    $region36: #{forward.3} parent=1 // pred_region
      _
    $region37: #{forward.3} parent=1 // pred_fallthru
      _
    // Predicated region
    $region38: #{forward.3} parent=1 // pred_check
      _
    $region39: #{forward.3} parent=1 // pred_check_branch
      %71 = sbr.rel (0) target = $region41
    $region40: #{forward.3} parent=1 // pred_region
      %s73 = ssub.s32 16, 16
      %74 = vsyncadd [#allocation8], %s73
      %s76 = sshll.u32 [#allocation9], 4
      %s77 = int_to_ptr.vmem [resolvable:$true] %s76
      %79 = dma.hbm_to_vmem [thread:$0]  %s9, 16, %s77, [#allocation8]
    $region41: #{forward.3} parent=1 // pred_fallthru
      _
    // Predicated region
    $region42: #{forward.3} parent=1 // pred_check
      _
    $region43: #{forward.3} parent=1 // pred_check_branch
      %81 = sbr.rel (0) target = $region45
    $region44: #{forward.3} parent=1 // pred_region
      %82 = dma.done [#allocation3], 48
    $region45: #{forward.3} parent=1 // pred_fallthru
      _
    // Predicated region
    $region46: #{forward.3} parent=1 // pred_check
      _
    $region47: #{forward.3} parent=1 // pred_check_branch
      %84 = sbr.rel (0) target = $region49
    $region48: #{forward.3} parent=1 // pred_region
      %85 = dma.done [#allocation5], 69120
    $region49: #{forward.3} parent=1 // pred_fallthru
      _
    // Predicated region
    $region50: #{forward.3} parent=1 // pred_check
      _
    $region51: #{forward.3} parent=1 // pred_check_branch
      %87 = sbr.rel (0) target = $region53
    $region52: #{forward.3} parent=1 // pred_region
      %88 = dma.done [#allocation5], 16
    $region53: #{forward.3} parent=1 // pred_fallthru
      _
    // Predicated region
    $region54: #{forward.3} parent=1 // pred_check
      _
    $region55: #{forward.3} parent=1 // pred_check_branch
      %90 = sbr.rel (0) target = $region57
    $region56: #{forward.3} parent=1 // pred_region
      %91 = dma.done [#allocation8], 16
    $region57: #{forward.3} parent=1 // pred_fallthru
      _
    // Predicated region
    $region58: #{forward.3} parent=1 // pred_check
      _
    $region59: #{forward.3} parent=1 // pred_check_branch
      %93 = sbr.rel (0) target = $region61
    $region60: #{forward.3} parent=1 // pred_region
      %94 = dma.done [#allocation8], 16
    $region61: #{forward.3} parent=1 // pred_fallthru
      _
    %v95 = vld [vmem:[%s0] sm:$0xff]
    %v96 = vld [vmem:[%s0 + $0x8] sm:$0xff]
    %v97 = vld [vmem:[%s0 + $0x10] sm:$0xff]
    %v98 = vld [vmem:[%s0 + $0x18] sm:$0xff]
    %v99 = vld [vmem:[%s0 + $0x20] sm:$0xff]
    %v100 = vld [vmem:[%s0 + $0x28] sm:$0xff]
    %v101 = vld [vmem:[%s0 + $0x30] sm:$0xff]
    %v102 = vld [vmem:[%s0 + $0x38] sm:$0xff]
    %v103 = vld [vmem:[%s0 + $0x40] sm:$0xf]
    %v104 = vld [vmem:[#allocation4] sm:$0xff]
    %v105 = vld [vmem:[#allocation4 + $0x8] sm:$0xff]
    %v106 = vld [vmem:[#allocation4 + $0x10] sm:$0xff]
    %v107 = vld [vmem:[#allocation4 + $0x18] sm:$0xff]
    %v108 = vld [vmem:[#allocation4 + $0x20] sm:$0xff]
    %v109 = vld [vmem:[#allocation4 + $0x28] sm:$0xff]
    %v110 = vld [vmem:[#allocation4 + $0x30] sm:$0xff]
    %v111 = vld [vmem:[#allocation4 + $0x38] sm:$0xff]
    %v112 = vld [vmem:[#allocation4 + $0x40] sm:$0xff]
    %v113 = vld [vmem:[#allocation4 + $0x48] sm:$0xff]
    %v114 = vld [vmem:[#allocation4 + $0x50] sm:$0xff]
    %v115 = vld [vmem:[#allocation4 + $0x58] sm:$0xff]
    %v116 = vld [vmem:[#allocation4 + $0x60] sm:$0xff]
    %v117 = vld [vmem:[#allocation4 + $0x68] sm:$0xff]
    %v118 = vld [vmem:[#allocation4 + $0x70] sm:$0xff]
    %v119 = vld [vmem:[#allocation4 + $0x78] sm:$0xff]
    %v120 = vld [vmem:[#allocation4 + $0x80] sm:$0xff]
    %v121 = vld [vmem:[#allocation4 + $0x88] sm:$0xff]
    %v122 = vld [vmem:[#allocation4 + $0x90] sm:$0xff]
    %v123 = vld [vmem:[#allocation4 + $0x98] sm:$0xff]
    %v124 = vld [vmem:[#allocation4 + $0xa0] sm:$0xff]
    %v125 = vld [vmem:[#allocation4 + $0xa8] sm:$0xff]
    %v126 = vld [vmem:[#allocation4 + $0xb0] sm:$0xff]
    %v127 = vld [vmem:[#allocation4 + $0xb8] sm:$0xff]
    %v128 = vld [vmem:[#allocation4 + $0xc0] sm:$0xff]
    %v129 = vld [vmem:[#allocation4 + $0xc8] sm:$0xff]
    %v130 = vld [vmem:[#allocation4 + $0xd0] sm:$0xff]
    %v131 = vld [vmem:[#allocation4 + $0xd8] sm:$0xff]
    %v132 = vld [vmem:[#allocation4 + $0xe0] sm:$0xff]
    %v133 = vld [vmem:[#allocation4 + $0xe8] sm:$0xff]
    %v134 = vld [vmem:[#allocation4 + $0xf0] sm:$0xff]
    %v135 = vld [vmem:[#allocation4 + $0xf8] sm:$0xff]
    %v136 = vld [vmem:[#allocation4 + $0x100] sm:$0xff]
    %v137 = vld [vmem:[#allocation4 + $0x108] sm:$0xff]
    %v138 = vld [vmem:[#allocation4 + $0x110] sm:$0xff]
    %v139 = vld [vmem:[#allocation4 + $0x118] sm:$0xff]
    %v140 = vld [vmem:[#allocation4 + $0x120] sm:$0xff]
    %v141 = vld [vmem:[#allocation4 + $0x128] sm:$0xff]
    %v142 = vld [vmem:[#allocation4 + $0x130] sm:$0xff]
    %v143 = vld [vmem:[#allocation4 + $0x138] sm:$0xff]
    %v144 = vld [vmem:[#allocation4 + $0x140] sm:$0xff]
    %v145 = vld [vmem:[#allocation4 + $0x148] sm:$0xff]
    %v146 = vld [vmem:[#allocation4 + $0x150] sm:$0xff]
    %v147 = vld [vmem:[#allocation4 + $0x158] sm:$0xff]
    %v148 = vld [vmem:[#allocation4 + $0x160] sm:$0xff]
    %v149 = vld [vmem:[#allocation4 + $0x168] sm:$0xff]
    %v150 = vld [vmem:[#allocation4 + $0x170] sm:$0xff]
    %v151 = vld [vmem:[#allocation4 + $0x178] sm:$0xff]
    %v152 = vld [vmem:[#allocation4 + $0x180] sm:$0xff]
    %v153 = vld [vmem:[#allocation4 + $0x188] sm:$0xff]
    %v154 = vld [vmem:[#allocation4 + $0x190] sm:$0xff]
    %v155 = vld [vmem:[#allocation4 + $0x198] sm:$0xff]
    %v156 = vld [vmem:[#allocation4 + $0x1a0] sm:$0xff]
    %v157 = vld [vmem:[#allocation4 + $0x1a8] sm:$0xff]
    %v158 = vld [vmem:[#allocation4 + $0x1b0] sm:$0xff]
    %v159 = vld [vmem:[#allocation4 + $0x1b8] sm:$0xff]
    %v160 = vld [vmem:[#allocation4 + $0x1c0] sm:$0xff]
    %v161 = vld [vmem:[#allocation4 + $0x1c8] sm:$0xff]
    %v162 = vld [vmem:[#allocation4 + $0x1d0] sm:$0xff]
    %v163 = vld [vmem:[#allocation4 + $0x1d8] sm:$0xff]
    %v164 = vld [vmem:[#allocation4 + $0x1e0] sm:$0xff]
    %v165 = vld [vmem:[#allocation4 + $0x1e8] sm:$0xff]
    %v166 = vld [vmem:[#allocation4 + $0x1f0] sm:$0xff]
    %v167 = vld [vmem:[#allocation4 + $0x1f8] sm:$0xff]
    %v168 = vld [vmem:[#allocation4 + $0x200] sm:$0xff]
    %v169 = vld [vmem:[#allocation4 + $0x208] sm:$0xff]
    %v170 = vld [vmem:[#allocation4 + $0x210] sm:$0xff]
    %v171 = vld [vmem:[#allocation4 + $0x218] sm:$0xff]
    %v172 = vld [vmem:[#allocation4 + $0x220] sm:$0xff]
    %v173 = vld [vmem:[#allocation4 + $0x228] sm:$0xff]
    %v174 = vld [vmem:[#allocation4 + $0x230] sm:$0xff]
    %v175 = vld [vmem:[#allocation4 + $0x238] sm:$0xff]
    %v176 = vld [vmem:[#allocation4 + $0x240] sm:$0xff]
    %v177 = vld [vmem:[#allocation4 + $0x248] sm:$0xff]
    %v178 = vld [vmem:[#allocation4 + $0x250] sm:$0xff]
    %v179 = vld [vmem:[#allocation4 + $0x258] sm:$0xff]
    %v180 = vld [vmem:[#allocation4 + $0x260] sm:$0xff]
    %v181 = vld [vmem:[#allocation4 + $0x268] sm:$0xff]
    %v182 = vld [vmem:[#allocation4 + $0x270] sm:$0xff]
    %v183 = vld [vmem:[#allocation4 + $0x278] sm:$0xff]
    %v184 = vld [vmem:[#allocation4 + $0x280] sm:$0xff]
    %v185 = vld [vmem:[#allocation4 + $0x288] sm:$0xff]
    %v186 = vld [vmem:[#allocation4 + $0x290] sm:$0xff]
    %v187 = vld [vmem:[#allocation4 + $0x298] sm:$0xff]
    %v188 = vld [vmem:[#allocation4 + $0x2a0] sm:$0xff]
    %v189 = vld [vmem:[#allocation4 + $0x2a8] sm:$0xff]
    %v190 = vld [vmem:[#allocation4 + $0x2b0] sm:$0xff]
    %v191 = vld [vmem:[#allocation4 + $0x2b8] sm:$0xff]
    %v192 = vld [vmem:[#allocation4 + $0x2c0] sm:$0xff]
    %v193 = vld [vmem:[#allocation4 + $0x2c8] sm:$0xff]
    %v194 = vld [vmem:[#allocation4 + $0x2d0] sm:$0xff]
    %v195 = vld [vmem:[#allocation4 + $0x2d8] sm:$0xff]
    %v196 = vld [vmem:[#allocation4 + $0x2e0] sm:$0xff]
    %v197 = vld [vmem:[#allocation4 + $0x2e8] sm:$0xff]
    %v198 = vld [vmem:[#allocation4 + $0x2f0] sm:$0xff]
    %v199 = vld [vmem:[#allocation4 + $0x2f8] sm:$0xff]
    %v200 = vld [vmem:[#allocation4 + $0x300] sm:$0xff]
    %v201 = vld [vmem:[#allocation4 + $0x308] sm:$0xff]
    %v202 = vld [vmem:[#allocation4 + $0x310] sm:$0xff]
    %v203 = vld [vmem:[#allocation4 + $0x318] sm:$0xff]
    %v204 = vld [vmem:[#allocation4 + $0x320] sm:$0xff]
    %v205 = vld [vmem:[#allocation4 + $0x328] sm:$0xff]
    %v206 = vld [vmem:[#allocation4 + $0x330] sm:$0xff]
    %v207 = vld [vmem:[#allocation4 + $0x338] sm:$0xff]
    %v208 = vld [vmem:[#allocation4 + $0x340] sm:$0xff]
    %v209 = vld [vmem:[#allocation4 + $0x348] sm:$0xff]
    %v210 = vld [vmem:[#allocation4 + $0x350] sm:$0xff]
    %v211 = vld [vmem:[#allocation4 + $0x358] sm:$0xff]
    %v212 = vld [vmem:[#allocation4 + $0x360] sm:$0xff]
    %v213 = vld [vmem:[#allocation4 + $0x368] sm:$0xff]
    %v214 = vld [vmem:[#allocation4 + $0x370] sm:$0xff]
    %v215 = vld [vmem:[#allocation4 + $0x378] sm:$0xff]
    %v216 = vld [vmem:[#allocation4 + $0x380] sm:$0xff]
    %v217 = vld [vmem:[#allocation4 + $0x388] sm:$0xff]
    %v218 = vld [vmem:[#allocation4 + $0x390] sm:$0xff]
    %v219 = vld [vmem:[#allocation4 + $0x398] sm:$0xff]
    %v220 = vld [vmem:[#allocation4 + $0x3a0] sm:$0xff]
    %v221 = vld [vmem:[#allocation4 + $0x3a8] sm:$0xff]
    %v222 = vld [vmem:[#allocation4 + $0x3b0] sm:$0xff]
    %v223 = vld [vmem:[#allocation4 + $0x3b8] sm:$0xff]
    %v224 = vld [vmem:[#allocation4 + $0x3c0] sm:$0xff]
    %v225 = vld [vmem:[#allocation4 + $0x3c8] sm:$0xff]
    %v226 = vld [vmem:[#allocation4 + $0x3d0] sm:$0xff]
    %v227 = vld [vmem:[#allocation4 + $0x3d8] sm:$0xff]
    %v228 = vld [vmem:[#allocation4 + $0x3e0] sm:$0xff]
    %v229 = vld [vmem:[#allocation4 + $0x3e8] sm:$0xff]
    %v230 = vld [vmem:[#allocation4 + $0x3f0] sm:$0xff]
    %v231 = vld [vmem:[#allocation4 + $0x3f8] sm:$0xff]
    %v232 = vld [vmem:[#allocation4 + $0x400] sm:$0xff]
    %v233 = vld [vmem:[#allocation4 + $0x408] sm:$0xff]
    %v234 = vld [vmem:[#allocation4 + $0x410] sm:$0xff]
    %v235 = vld [vmem:[#allocation4 + $0x418] sm:$0xff]
    %v236 = vld [vmem:[#allocation4 + $0x420] sm:$0xff]
    %v237 = vld [vmem:[#allocation4 + $0x428] sm:$0xff]
    %v238 = vld [vmem:[#allocation4 + $0x430] sm:$0xff]
    %v239 = vld [vmem:[#allocation4 + $0x438] sm:$0xff]
    %v240 = vld [vmem:[#allocation4 + $0x440] sm:$0xff]
    %v241 = vld [vmem:[#allocation4 + $0x448] sm:$0xff]
    %v242 = vld [vmem:[#allocation4 + $0x450] sm:$0xff]
    %v243 = vld [vmem:[#allocation4 + $0x458] sm:$0xff]
    %v244 = vld [vmem:[#allocation4 + $0x460] sm:$0xff]
    %v245 = vld [vmem:[#allocation4 + $0x468] sm:$0xff]
    %v246 = vld [vmem:[#allocation4 + $0x470] sm:$0xff]
    %v247 = vld [vmem:[#allocation4 + $0x478] sm:$0xff]
    %v248 = vld [vmem:[#allocation4 + $0x480] sm:$0xff]
    %v249 = vld [vmem:[#allocation4 + $0x488] sm:$0xff]
    %v250 = vld [vmem:[#allocation4 + $0x490] sm:$0xff]
    %v251 = vld [vmem:[#allocation4 + $0x498] sm:$0xff]
    %v252 = vld [vmem:[#allocation4 + $0x4a0] sm:$0xff]
    %v253 = vld [vmem:[#allocation4 + $0x4a8] sm:$0xff]
    %v254 = vld [vmem:[#allocation4 + $0x4b0] sm:$0xff]
    %v255 = vld [vmem:[#allocation4 + $0x4b8] sm:$0xff]
    %v256 = vld [vmem:[#allocation4 + $0x4c0] sm:$0xff]
    %v257 = vld [vmem:[#allocation4 + $0x4c8] sm:$0xff]
    %v258 = vld [vmem:[#allocation4 + $0x4d0] sm:$0xff]
    %v259 = vld [vmem:[#allocation4 + $0x4d8] sm:$0xff]
    %v260 = vld [vmem:[#allocation4 + $0x4e0] sm:$0xff]
    %v261 = vld [vmem:[#allocation4 + $0x4e8] sm:$0xff]
    %v262 = vld [vmem:[#allocation4 + $0x4f0] sm:$0xff]
    %v263 = vld [vmem:[#allocation4 + $0x4f8] sm:$0xff]
    %v264 = vld [vmem:[#allocation4 + $0x500] sm:$0xff]
    %v265 = vld [vmem:[#allocation4 + $0x508] sm:$0xff]
    %v266 = vld [vmem:[#allocation4 + $0x510] sm:$0xff]
    %v267 = vld [vmem:[#allocation4 + $0x518] sm:$0xff]
    %v268 = vld [vmem:[#allocation4 + $0x520] sm:$0xff]
    %v269 = vld [vmem:[#allocation4 + $0x528] sm:$0xff]
    %v270 = vld [vmem:[#allocation4 + $0x530] sm:$0xff]
    %v271 = vld [vmem:[#allocation4 + $0x538] sm:$0xff]
    %v272 = vld [vmem:[#allocation4 + $0x540] sm:$0xff]
    %v273 = vld [vmem:[#allocation4 + $0x548] sm:$0xff]
    %v274 = vld [vmem:[#allocation4 + $0x550] sm:$0xff]
    %v275 = vld [vmem:[#allocation4 + $0x558] sm:$0xff]
    %v276 = vld [vmem:[#allocation4 + $0x560] sm:$0xff]
    %v277 = vld [vmem:[#allocation4 + $0x568] sm:$0xff]
    %v278 = vld [vmem:[#allocation4 + $0x570] sm:$0xff]
    %v279 = vld [vmem:[#allocation4 + $0x578] sm:$0xff]
    %v280 = vld [vmem:[#allocation4 + $0x580] sm:$0xff]
    %v281 = vld [vmem:[#allocation4 + $0x588] sm:$0xff]
    %v282 = vld [vmem:[#allocation4 + $0x590] sm:$0xff]
    %v283 = vld [vmem:[#allocation4 + $0x598] sm:$0xff]
    %v284 = vld [vmem:[#allocation4 + $0x5a0] sm:$0xff]
    %v285 = vld [vmem:[#allocation4 + $0x5a8] sm:$0xff]
    %v286 = vld [vmem:[#allocation4 + $0x5b0] sm:$0xff]
    %v287 = vld [vmem:[#allocation4 + $0x5b8] sm:$0xff]
    %v288 = vld [vmem:[#allocation4 + $0x5c0] sm:$0xff]
    %v289 = vld [vmem:[#allocation4 + $0x5c8] sm:$0xff]
    %v290 = vld [vmem:[#allocation4 + $0x5d0] sm:$0xff]
    %v291 = vld [vmem:[#allocation4 + $0x5d8] sm:$0xff]
    %v292 = vld [vmem:[#allocation4 + $0x5e0] sm:$0xff]
    %v293 = vld [vmem:[#allocation4 + $0x5e8] sm:$0xff]
    %v294 = vld [vmem:[#allocation4 + $0x5f0] sm:$0xff]
    %v295 = vld [vmem:[#allocation4 + $0x5f8] sm:$0xff]
    %v296 = vld [vmem:[#allocation4 + $0x600] sm:$0xff]
    %v297 = vld [vmem:[#allocation4 + $0x608] sm:$0xff]
    %v298 = vld [vmem:[#allocation4 + $0x610] sm:$0xff]
    %v299 = vld [vmem:[#allocation4 + $0x618] sm:$0xff]
    %v300 = vld [vmem:[#allocation4 + $0x620] sm:$0xff]
    %v301 = vld [vmem:[#allocation4 + $0x628] sm:$0xff]
    %v302 = vld [vmem:[#allocation4 + $0x630] sm:$0xff]
    %v303 = vld [vmem:[#allocation4 + $0x638] sm:$0xff]
    %v304 = vld [vmem:[#allocation4 + $0x640] sm:$0xff]
    %v305 = vld [vmem:[#allocation4 + $0x648] sm:$0xff]
    %v306 = vld [vmem:[#allocation4 + $0x650] sm:$0xff]
    %v307 = vld [vmem:[#allocation4 + $0x658] sm:$0xff]
    %v308 = vld [vmem:[#allocation4 + $0x660] sm:$0xff]
    %v309 = vld [vmem:[#allocation4 + $0x668] sm:$0xff]
    %v310 = vld [vmem:[#allocation4 + $0x670] sm:$0xff]
    %v311 = vld [vmem:[#allocation4 + $0x678] sm:$0xff]
    %v312 = vld [vmem:[#allocation4 + $0x680] sm:$0xff]
    %v313 = vld [vmem:[#allocation4 + $0x688] sm:$0xff]
    %v314 = vld [vmem:[#allocation4 + $0x690] sm:$0xff]
    %v315 = vld [vmem:[#allocation4 + $0x698] sm:$0xff]
    %v316 = vld [vmem:[#allocation4 + $0x6a0] sm:$0xff]
    %v317 = vld [vmem:[#allocation4 + $0x6a8] sm:$0xff]
    %v318 = vld [vmem:[#allocation4 + $0x6b0] sm:$0xff]
    %v319 = vld [vmem:[#allocation4 + $0x6b8] sm:$0xff]
    %v320 = vld [vmem:[#allocation4 + $0x6c0] sm:$0xff]
    %v321 = vld [vmem:[#allocation4 + $0x6c8] sm:$0xff]
    %v322 = vld [vmem:[#allocation4 + $0x6d0] sm:$0xff]
    %v323 = vld [vmem:[#allocation4 + $0x6d8] sm:$0xff]
    %v324 = vld [vmem:[#allocation4 + $0x6e0] sm:$0xff]
    %v325 = vld [vmem:[#allocation4 + $0x6e8] sm:$0xff]
    %v326 = vld [vmem:[#allocation4 + $0x6f0] sm:$0xff]
    %v327 = vld [vmem:[#allocation4 + $0x6f8] sm:$0xff]
    %v328 = vld [vmem:[#allocation4 + $0x700] sm:$0xff]
    %v329 = vld [vmem:[#allocation4 + $0x708] sm:$0xff]
    %v330 = vld [vmem:[#allocation4 + $0x710] sm:$0xff]
    %v331 = vld [vmem:[#allocation4 + $0x718] sm:$0xff]
    %v332 = vld [vmem:[#allocation4 + $0x720] sm:$0xff]
    %v333 = vld [vmem:[#allocation4 + $0x728] sm:$0xff]
    %v334 = vld [vmem:[#allocation4 + $0x730] sm:$0xff]
    %v335 = vld [vmem:[#allocation4 + $0x738] sm:$0xff]
    %v336 = vld [vmem:[#allocation4 + $0x740] sm:$0xff]
    %v337 = vld [vmem:[#allocation4 + $0x748] sm:$0xff]
    %v338 = vld [vmem:[#allocation4 + $0x750] sm:$0xff]
    %v339 = vld [vmem:[#allocation4 + $0x758] sm:$0xff]
    %v340 = vld [vmem:[#allocation4 + $0x760] sm:$0xff]
    %v341 = vld [vmem:[#allocation4 + $0x768] sm:$0xff]
    %v342 = vld [vmem:[#allocation4 + $0x770] sm:$0xff]
    %v343 = vld [vmem:[#allocation4 + $0x778] sm:$0xff]
    %v344 = vld [vmem:[#allocation4 + $0x780] sm:$0xff]
    %v345 = vld [vmem:[#allocation4 + $0x788] sm:$0xff]
    %v346 = vld [vmem:[#allocation4 + $0x790] sm:$0xff]
    %v347 = vld [vmem:[#allocation4 + $0x798] sm:$0xff]
    %v348 = vld [vmem:[#allocation4 + $0x7a0] sm:$0xff]
    %v349 = vld [vmem:[#allocation4 + $0x7a8] sm:$0xff]
    %v350 = vld [vmem:[#allocation4 + $0x7b0] sm:$0xff]
    %v351 = vld [vmem:[#allocation4 + $0x7b8] sm:$0xff]
    %v352 = vld [vmem:[#allocation4 + $0x7c0] sm:$0xff]
    %v353 = vld [vmem:[#allocation4 + $0x7c8] sm:$0xff]
    %v354 = vld [vmem:[#allocation4 + $0x7d0] sm:$0xff]
    %v355 = vld [vmem:[#allocation4 + $0x7d8] sm:$0xff]
    %v356 = vld [vmem:[#allocation4 + $0x7e0] sm:$0xff]
    %v357 = vld [vmem:[#allocation4 + $0x7e8] sm:$0xff]
    %v358 = vld [vmem:[#allocation4 + $0x7f0] sm:$0xff]
    %v359 = vld [vmem:[#allocation4 + $0x7f8] sm:$0xff]
    %v360 = vld [vmem:[#allocation4 + $0x800] sm:$0xff]
    %v361 = vld [vmem:[#allocation4 + $0x808] sm:$0xff]
    %v362 = vld [vmem:[#allocation4 + $0x810] sm:$0xff]
    %v363 = vld [vmem:[#allocation4 + $0x818] sm:$0xff]
    %v364 = vld [vmem:[#allocation4 + $0x820] sm:$0xff]
    %v365 = vld [vmem:[#allocation4 + $0x828] sm:$0xff]
    %v366 = vld [vmem:[#allocation4 + $0x830] sm:$0xff]
    %v367 = vld [vmem:[#allocation4 + $0x838] sm:$0xff]
    %v368 = vld [vmem:[#allocation4 + $0x840] sm:$0xff]
    %v369 = vld [vmem:[#allocation4 + $0x848] sm:$0xff]
    %v370 = vld [vmem:[#allocation4 + $0x850] sm:$0xff]
    %v371 = vld [vmem:[#allocation4 + $0x858] sm:$0xff]
    %v372 = vld [vmem:[#allocation4 + $0x860] sm:$0xff]
    %v373 = vld [vmem:[#allocation4 + $0x868] sm:$0xff]
    %v374 = vld [vmem:[#allocation4 + $0x870] sm:$0xff]
    %v375 = vld [vmem:[#allocation4 + $0x878] sm:$0xff]
    %v376 = vld [vmem:[#allocation4 + $0x880] sm:$0xff]
    %v377 = vld [vmem:[#allocation4 + $0x888] sm:$0xff]
    %v378 = vld [vmem:[#allocation4 + $0x890] sm:$0xff]
    %v379 = vld [vmem:[#allocation4 + $0x898] sm:$0xff]
    %v380 = vld [vmem:[#allocation4 + $0x8a0] sm:$0xff]
    %v381 = vld [vmem:[#allocation4 + $0x8a8] sm:$0xff]
    %v382 = vld [vmem:[#allocation4 + $0x8b0] sm:$0xff]
    %v383 = vld [vmem:[#allocation4 + $0x8b8] sm:$0xff]
    %v384 = vld [vmem:[#allocation4 + $0x8c0] sm:$0xff]
    %v385 = vld [vmem:[#allocation4 + $0x8c8] sm:$0xff]
    %v386 = vld [vmem:[#allocation4 + $0x8d0] sm:$0xff]
    %v387 = vld [vmem:[#allocation4 + $0x8d8] sm:$0xff]
    %v388 = vld [vmem:[#allocation4 + $0x8e0] sm:$0xff]
    %v389 = vld [vmem:[#allocation4 + $0x8e8] sm:$0xff]
    %v390 = vld [vmem:[#allocation4 + $0x8f0] sm:$0xff]
    %v391 = vld [vmem:[#allocation4 + $0x8f8] sm:$0xff]
    %v392 = vld [vmem:[#allocation4 + $0x900] sm:$0xff]
    %v393 = vld [vmem:[#allocation4 + $0x908] sm:$0xff]
    %v394 = vld [vmem:[#allocation4 + $0x910] sm:$0xff]
    %v395 = vld [vmem:[#allocation4 + $0x918] sm:$0xff]
    %v396 = vld [vmem:[#allocation4 + $0x920] sm:$0xff]
    %v397 = vld [vmem:[#allocation4 + $0x928] sm:$0xff]
    %v398 = vld [vmem:[#allocation4 + $0x930] sm:$0xff]
    %v399 = vld [vmem:[#allocation4 + $0x938] sm:$0xff]
    %v400 = vld [vmem:[#allocation4 + $0x940] sm:$0xff]
    %v401 = vld [vmem:[#allocation4 + $0x948] sm:$0xff]
    %v402 = vld [vmem:[#allocation4 + $0x950] sm:$0xff]
    %v403 = vld [vmem:[#allocation4 + $0x958] sm:$0xff]
    %v404 = vld [vmem:[#allocation4 + $0x960] sm:$0xff]
    %v405 = vld [vmem:[#allocation4 + $0x968] sm:$0xff]
    %v406 = vld [vmem:[#allocation4 + $0x970] sm:$0xff]
    %v407 = vld [vmem:[#allocation4 + $0x978] sm:$0xff]
    %v408 = vld [vmem:[#allocation4 + $0x980] sm:$0xff]
    %v409 = vld [vmem:[#allocation4 + $0x988] sm:$0xff]
    %v410 = vld [vmem:[#allocation4 + $0x990] sm:$0xff]
    %v411 = vld [vmem:[#allocation4 + $0x998] sm:$0xff]
    %v412 = vld [vmem:[#allocation4 + $0x9a0] sm:$0xff]
    %v413 = vld [vmem:[#allocation4 + $0x9a8] sm:$0xff]
    %v414 = vld [vmem:[#allocation4 + $0x9b0] sm:$0xff]
    %v415 = vld [vmem:[#allocation4 + $0x9b8] sm:$0xff]
    %v416 = vld [vmem:[#allocation4 + $0x9c0] sm:$0xff]
    %v417 = vld [vmem:[#allocation4 + $0x9c8] sm:$0xff]
    %v418 = vld [vmem:[#allocation4 + $0x9d0] sm:$0xff]
    %v419 = vld [vmem:[#allocation4 + $0x9d8] sm:$0xff]
    %v420 = vld [vmem:[#allocation4 + $0x9e0] sm:$0xff]
    %v421 = vld [vmem:[#allocation4 + $0x9e8] sm:$0xff]
    %v422 = vld [vmem:[#allocation4 + $0x9f0] sm:$0xff]
    %v423 = vld [vmem:[#allocation4 + $0x9f8] sm:$0xff]
    %v424 = vld [vmem:[#allocation4 + $0xa00] sm:$0xff]
    %v425 = vld [vmem:[#allocation4 + $0xa08] sm:$0xff]
    %v426 = vld [vmem:[#allocation4 + $0xa10] sm:$0xff]
    %v427 = vld [vmem:[#allocation4 + $0xa18] sm:$0xff]
    %v428 = vld [vmem:[#allocation4 + $0xa20] sm:$0xff]
    %v429 = vld [vmem:[#allocation4 + $0xa28] sm:$0xff]
    %v430 = vld [vmem:[#allocation4 + $0xa30] sm:$0xff]
    %v431 = vld [vmem:[#allocation4 + $0xa38] sm:$0xff]
    %v432 = vld [vmem:[#allocation4 + $0xa40] sm:$0xff]
    %v433 = vld [vmem:[#allocation4 + $0xa48] sm:$0xff]
    %v434 = vld [vmem:[#allocation4 + $0xa50] sm:$0xff]
    %v435 = vld [vmem:[#allocation4 + $0xa58] sm:$0xff]
    %v436 = vld [vmem:[#allocation4 + $0xa60] sm:$0xff]
    %v437 = vld [vmem:[#allocation4 + $0xa68] sm:$0xff]
    %v438 = vld [vmem:[#allocation4 + $0xa70] sm:$0xff]
    %v439 = vld [vmem:[#allocation4 + $0xa78] sm:$0xff]
    %v440 = vld [vmem:[#allocation4 + $0xa80] sm:$0xff]
    %v441 = vld [vmem:[#allocation4 + $0xa88] sm:$0xff]
    %v442 = vld [vmem:[#allocation4 + $0xa90] sm:$0xff]
    %v443 = vld [vmem:[#allocation4 + $0xa98] sm:$0xff]
    %v444 = vld [vmem:[#allocation4 + $0xaa0] sm:$0xff]
    %v445 = vld [vmem:[#allocation4 + $0xaa8] sm:$0xff]
    %v446 = vld [vmem:[#allocation4 + $0xab0] sm:$0xff]
    %v447 = vld [vmem:[#allocation4 + $0xab8] sm:$0xff]
    %v448 = vld [vmem:[#allocation4 + $0xac0] sm:$0xff]
    %v449 = vld [vmem:[#allocation4 + $0xac8] sm:$0xff]
    %v450 = vld [vmem:[#allocation4 + $0xad0] sm:$0xff]
    %v451 = vld [vmem:[#allocation4 + $0xad8] sm:$0xff]
    %v452 = vld [vmem:[#allocation4 + $0xae0] sm:$0xff]
    %v453 = vld [vmem:[#allocation4 + $0xae8] sm:$0xff]
    %v454 = vld [vmem:[#allocation4 + $0xaf0] sm:$0xff]
    %v455 = vld [vmem:[#allocation4 + $0xaf8] sm:$0xff]
    %v456 = vld [vmem:[#allocation4 + $0xb00] sm:$0xff]
    %v457 = vld [vmem:[#allocation4 + $0xb08] sm:$0xff]
    %v458 = vld [vmem:[#allocation4 + $0xb10] sm:$0xff]
    %v459 = vld [vmem:[#allocation4 + $0xb18] sm:$0xff]
    %v460 = vld [vmem:[#allocation4 + $0xb20] sm:$0xff]
    %v461 = vld [vmem:[#allocation4 + $0xb28] sm:$0xff]
    %v462 = vld [vmem:[#allocation4 + $0xb30] sm:$0xff]
    %v463 = vld [vmem:[#allocation4 + $0xb38] sm:$0xff]
    %v464 = vld [vmem:[#allocation4 + $0xb40] sm:$0xff]
    %v465 = vld [vmem:[#allocation4 + $0xb48] sm:$0xff]
    %v466 = vld [vmem:[#allocation4 + $0xb50] sm:$0xff]
    %v467 = vld [vmem:[#allocation4 + $0xb58] sm:$0xff]
    %v468 = vld [vmem:[#allocation4 + $0xb60] sm:$0xff]
    %v469 = vld [vmem:[#allocation4 + $0xb68] sm:$0xff]
    %v470 = vld [vmem:[#allocation4 + $0xb70] sm:$0xff]
    %v471 = vld [vmem:[#allocation4 + $0xb78] sm:$0xff]
    %v472 = vld [vmem:[#allocation4 + $0xb80] sm:$0xff]
    %v473 = vld [vmem:[#allocation4 + $0xb88] sm:$0xff]
    %v474 = vld [vmem:[#allocation4 + $0xb90] sm:$0xff]
    %v475 = vld [vmem:[#allocation4 + $0xb98] sm:$0xff]
    %v476 = vld [vmem:[#allocation4 + $0xba0] sm:$0xff]
    %v477 = vld [vmem:[#allocation4 + $0xba8] sm:$0xff]
    %v478 = vld [vmem:[#allocation4 + $0xbb0] sm:$0xff]
    %v479 = vld [vmem:[#allocation4 + $0xbb8] sm:$0xff]
    %v480 = vld [vmem:[#allocation4 + $0xbc0] sm:$0xff]
    %v481 = vld [vmem:[#allocation4 + $0xbc8] sm:$0xff]
    %v482 = vld [vmem:[#allocation4 + $0xbd0] sm:$0xff]
    %v483 = vld [vmem:[#allocation4 + $0xbd8] sm:$0xff]
    %v484 = vld [vmem:[#allocation4 + $0xbe0] sm:$0xff]
    %v485 = vld [vmem:[#allocation4 + $0xbe8] sm:$0xff]
    %v486 = vld [vmem:[#allocation4 + $0xbf0] sm:$0xff]
    %v487 = vld [vmem:[#allocation4 + $0xbf8] sm:$0xff]
    %v488 = vld [vmem:[#allocation4 + $0xc00] sm:$0xff]
    %v489 = vld [vmem:[#allocation4 + $0xc08] sm:$0xff]
    %v490 = vld [vmem:[#allocation4 + $0xc10] sm:$0xff]
    %v491 = vld [vmem:[#allocation4 + $0xc18] sm:$0xff]
    %v492 = vld [vmem:[#allocation4 + $0xc20] sm:$0xff]
    %v493 = vld [vmem:[#allocation4 + $0xc28] sm:$0xff]
    %v494 = vld [vmem:[#allocation4 + $0xc30] sm:$0xff]
    %v495 = vld [vmem:[#allocation4 + $0xc38] sm:$0xff]
    %v496 = vld [vmem:[#allocation4 + $0xc40] sm:$0xff]
    %v497 = vld [vmem:[#allocation4 + $0xc48] sm:$0xff]
    %v498 = vld [vmem:[#allocation4 + $0xc50] sm:$0xff]
    %v499 = vld [vmem:[#allocation4 + $0xc58] sm:$0xff]
    %v500 = vld [vmem:[#allocation4 + $0xc60] sm:$0xff]
    %v501 = vld [vmem:[#allocation4 + $0xc68] sm:$0xff]
    %v502 = vld [vmem:[#allocation4 + $0xc70] sm:$0xff]
    %v503 = vld [vmem:[#allocation4 + $0xc78] sm:$0xff]
    %v504 = vld [vmem:[#allocation4 + $0xc80] sm:$0xff]
    %v505 = vld [vmem:[#allocation4 + $0xc88] sm:$0xff]
    %v506 = vld [vmem:[#allocation4 + $0xc90] sm:$0xff]
    %v507 = vld [vmem:[#allocation4 + $0xc98] sm:$0xff]
    %v508 = vld [vmem:[#allocation4 + $0xca0] sm:$0xff]
    %v509 = vld [vmem:[#allocation4 + $0xca8] sm:$0xff]
    %v510 = vld [vmem:[#allocation4 + $0xcb0] sm:$0xff]
    %v511 = vld [vmem:[#allocation4 + $0xcb8] sm:$0xff]
    %v512 = vld [vmem:[#allocation4 + $0xcc0] sm:$0xff]
    %v513 = vld [vmem:[#allocation4 + $0xcc8] sm:$0xff]
    %v514 = vld [vmem:[#allocation4 + $0xcd0] sm:$0xff]
    %v515 = vld [vmem:[#allocation4 + $0xcd8] sm:$0xff]
    %v516 = vld [vmem:[#allocation4 + $0xce0] sm:$0xff]
    %v517 = vld [vmem:[#allocation4 + $0xce8] sm:$0xff]
    %v518 = vld [vmem:[#allocation4 + $0xcf0] sm:$0xff]
    %v519 = vld [vmem:[#allocation4 + $0xcf8] sm:$0xff]
    %v520 = vld [vmem:[#allocation4 + $0xd00] sm:$0xff]
    %v521 = vld [vmem:[#allocation4 + $0xd08] sm:$0xff]
    %v522 = vld [vmem:[#allocation4 + $0xd10] sm:$0xff]
    %v523 = vld [vmem:[#allocation4 + $0xd18] sm:$0xff]
    %v524 = vld [vmem:[#allocation4 + $0xd20] sm:$0xff]
    %v525 = vld [vmem:[#allocation4 + $0xd28] sm:$0xff]
    %v526 = vld [vmem:[#allocation4 + $0xd30] sm:$0xff]
    %v527 = vld [vmem:[#allocation4 + $0xd38] sm:$0xff]
    %v528 = vld [vmem:[#allocation4 + $0xd40] sm:$0xff]
    %v529 = vld [vmem:[#allocation4 + $0xd48] sm:$0xff]
    %v530 = vld [vmem:[#allocation4 + $0xd50] sm:$0xff]
    %v531 = vld [vmem:[#allocation4 + $0xd58] sm:$0xff]
    %v532 = vld [vmem:[#allocation4 + $0xd60] sm:$0xff]
    %v533 = vld [vmem:[#allocation4 + $0xd68] sm:$0xff]
    %v534 = vld [vmem:[#allocation4 + $0xd70] sm:$0xff]
    %v535 = vld [vmem:[#allocation4 + $0xd78] sm:$0xff]
    %v536 = vld [vmem:[#allocation4 + $0xd80] sm:$0xff]
    %v537 = vld [vmem:[#allocation4 + $0xd88] sm:$0xff]
    %v538 = vld [vmem:[#allocation4 + $0xd90] sm:$0xff]
    %v539 = vld [vmem:[#allocation4 + $0xd98] sm:$0xff]
    %v540 = vld [vmem:[#allocation4 + $0xda0] sm:$0xff]
    %v541 = vld [vmem:[#allocation4 + $0xda8] sm:$0xff]
    %v542 = vld [vmem:[#allocation4 + $0xdb0] sm:$0xff]
    %v543 = vld [vmem:[#allocation4 + $0xdb8] sm:$0xff]
    %v544 = vld [vmem:[#allocation4 + $0xdc0] sm:$0xff]
    %v545 = vld [vmem:[#allocation4 + $0xdc8] sm:$0xff]
    %v546 = vld [vmem:[#allocation4 + $0xdd0] sm:$0xff]
    %v547 = vld [vmem:[#allocation4 + $0xdd8] sm:$0xff]
    %v548 = vld [vmem:[#allocation4 + $0xde0] sm:$0xff]
    %v549 = vld [vmem:[#allocation4 + $0xde8] sm:$0xff]
    %v550 = vld [vmem:[#allocation4 + $0xdf0] sm:$0xff]
    %v551 = vld [vmem:[#allocation4 + $0xdf8] sm:$0xff]
    %v552 = vld [vmem:[#allocation4 + $0xe00] sm:$0xff]
    %v553 = vld [vmem:[#allocation4 + $0xe08] sm:$0xff]
    %v554 = vld [vmem:[#allocation4 + $0xe10] sm:$0xff]
    %v555 = vld [vmem:[#allocation4 + $0xe18] sm:$0xff]
    %v556 = vld [vmem:[#allocation4 + $0xe20] sm:$0xff]
    %v557 = vld [vmem:[#allocation4 + $0xe28] sm:$0xff]
    %v558 = vld [vmem:[#allocation4 + $0xe30] sm:$0xff]
    %v559 = vld [vmem:[#allocation4 + $0xe38] sm:$0xff]
    %v560 = vld [vmem:[#allocation4 + $0xe40] sm:$0xff]
    %v561 = vld [vmem:[#allocation4 + $0xe48] sm:$0xff]
    %v562 = vld [vmem:[#allocation4 + $0xe50] sm:$0xff]
    %v563 = vld [vmem:[#allocation4 + $0xe58] sm:$0xff]
    %v564 = vld [vmem:[#allocation4 + $0xe60] sm:$0xff]
    %v565 = vld [vmem:[#allocation4 + $0xe68] sm:$0xff]
    %v566 = vld [vmem:[#allocation4 + $0xe70] sm:$0xff]
    %v567 = vld [vmem:[#allocation4 + $0xe78] sm:$0xff]
    %v568 = vld [vmem:[#allocation4 + $0xe80] sm:$0xff]
    %v569 = vld [vmem:[#allocation4 + $0xe88] sm:$0xff]
    %v570 = vld [vmem:[#allocation4 + $0xe90] sm:$0xff]
    %v571 = vld [vmem:[#allocation4 + $0xe98] sm:$0xff]
    %v572 = vld [vmem:[#allocation4 + $0xea0] sm:$0xff]
    %v573 = vld [vmem:[#allocation4 + $0xea8] sm:$0xff]
    %v574 = vld [vmem:[#allocation4 + $0xeb0] sm:$0xff]
    %v575 = vld [vmem:[#allocation4 + $0xeb8] sm:$0xff]
    %v576 = vld [vmem:[#allocation4 + $0xec0] sm:$0xff]
    %v577 = vld [vmem:[#allocation4 + $0xec8] sm:$0xff]
    %v578 = vld [vmem:[#allocation4 + $0xed0] sm:$0xff]
    %v579 = vld [vmem:[#allocation4 + $0xed8] sm:$0xff]
    %v580 = vld [vmem:[#allocation4 + $0xee0] sm:$0xff]
    %v581 = vld [vmem:[#allocation4 + $0xee8] sm:$0xff]
    %v582 = vld [vmem:[#allocation4 + $0xef0] sm:$0xff]
    %v583 = vld [vmem:[#allocation4 + $0xef8] sm:$0xff]
    %v584 = vld [vmem:[#allocation4 + $0xf00] sm:$0xff]
    %v585 = vld [vmem:[#allocation4 + $0xf08] sm:$0xff]
    %v586 = vld [vmem:[#allocation4 + $0xf10] sm:$0xff]
    %v587 = vld [vmem:[#allocation4 + $0xf18] sm:$0xff]
    %v588 = vld [vmem:[#allocation4 + $0xf20] sm:$0xff]
    %v589 = vld [vmem:[#allocation4 + $0xf28] sm:$0xff]
    %v590 = vld [vmem:[#allocation4 + $0xf30] sm:$0xff]
    %v591 = vld [vmem:[#allocation4 + $0xf38] sm:$0xff]
    %v592 = vld [vmem:[#allocation4 + $0xf40] sm:$0xff]
    %v593 = vld [vmem:[#allocation4 + $0xf48] sm:$0xff]
    %v594 = vld [vmem:[#allocation4 + $0xf50] sm:$0xff]
    %v595 = vld [vmem:[#allocation4 + $0xf58] sm:$0xff]
    %v596 = vld [vmem:[#allocation4 + $0xf60] sm:$0xff]
    %v597 = vld [vmem:[#allocation4 + $0xf68] sm:$0xff]
    %v598 = vld [vmem:[#allocation4 + $0xf70] sm:$0xff]
    %v599 = vld [vmem:[#allocation4 + $0xf78] sm:$0xff]
    %v600 = vld [vmem:[#allocation4 + $0xf80] sm:$0xff]
    %v601 = vld [vmem:[#allocation4 + $0xf88] sm:$0xff]
    %v602 = vld [vmem:[#allocation4 + $0xf90] sm:$0xff]
    %v603 = vld [vmem:[#allocation4 + $0xf98] sm:$0xff]
    %v604 = vld [vmem:[#allocation4 + $0xfa0] sm:$0xff]
    %v605 = vld [vmem:[#allocation4 + $0xfa8] sm:$0xff]
    %v606 = vld [vmem:[#allocation4 + $0xfb0] sm:$0xff]
    %v607 = vld [vmem:[#allocation4 + $0xfb8] sm:$0xff]
    %v608 = vld [vmem:[#allocation4 + $0xfc0] sm:$0xff]
    %v609 = vld [vmem:[#allocation4 + $0xfc8] sm:$0xff]
    %v610 = vld [vmem:[#allocation4 + $0xfd0] sm:$0xff]
    %v611 = vld [vmem:[#allocation4 + $0xfd8] sm:$0xff]
    %v612 = vld [vmem:[#allocation4 + $0xfe0] sm:$0xff]
    %v613 = vld [vmem:[#allocation4 + $0xfe8] sm:$0xff]
    %v614 = vld [vmem:[#allocation4 + $0xff0] sm:$0xff]
    %v615 = vld [vmem:[#allocation4 + $0xff8] sm:$0xff]
    %v616 = vld [vmem:[#allocation4 + $0x1000] sm:$0xff]
    %v617 = vld [vmem:[#allocation4 + $0x1008] sm:$0xff]
    %v618 = vld [vmem:[#allocation4 + $0x1010] sm:$0xff]
    %v619 = vld [vmem:[#allocation4 + $0x1018] sm:$0xff]
    %v620 = vld [vmem:[#allocation4 + $0x1020] sm:$0xff]
    %v621 = vld [vmem:[#allocation4 + $0x1028] sm:$0xff]
    %v622 = vld [vmem:[#allocation4 + $0x1030] sm:$0xff]
    %v623 = vld [vmem:[#allocation4 + $0x1038] sm:$0xff]
    %v624 = vld [vmem:[#allocation4 + $0x1040] sm:$0xff]
    %v625 = vld [vmem:[#allocation4 + $0x1048] sm:$0xff]
    %v626 = vld [vmem:[#allocation4 + $0x1050] sm:$0xff]
    %v627 = vld [vmem:[#allocation4 + $0x1058] sm:$0xff]
    %v628 = vld [vmem:[#allocation4 + $0x1060] sm:$0xff]
    %v629 = vld [vmem:[#allocation4 + $0x1068] sm:$0xff]
    %v630 = vld [vmem:[#allocation4 + $0x1070] sm:$0xff]
    %v631 = vld [vmem:[#allocation4 + $0x1078] sm:$0xff]
    %v632 = vld [vmem:[#allocation4 + $0x1080] sm:$0xff]
    %v633 = vld [vmem:[#allocation4 + $0x1088] sm:$0xff]
    %v634 = vld [vmem:[#allocation4 + $0x1090] sm:$0xff]
    %v635 = vld [vmem:[#allocation4 + $0x1098] sm:$0xff]
    %v636 = vld [vmem:[#allocation4 + $0x10a0] sm:$0xff]
    %v637 = vld [vmem:[#allocation4 + $0x10a8] sm:$0xff]
    %v638 = vld [vmem:[#allocation4 + $0x10b0] sm:$0xff]
    %v639 = vld [vmem:[#allocation4 + $0x10b8] sm:$0xff]
    %v640 = vld [vmem:[#allocation4 + $0x10c0] sm:$0xff]
    %v641 = vld [vmem:[#allocation4 + $0x10c8] sm:$0xff]
    %v642 = vld [vmem:[#allocation4 + $0x10d0] sm:$0xff]
    %v643 = vld [vmem:[#allocation4 + $0x10d8] sm:$0xff]
    %v644 = vld [vmem:[#allocation6] sm:$0x1]
    %v646 = vlaneseq
    %v647 = vshrl.u32 %v646, 7
    %v648 = vsub.s32 0, %v647
    %v649 = vrot.slane %v644, %v648
    %v660 = vcombine.high %v95, %v95
    %v662 = vunpack.c.l.s4 1983009808
    %v663 = vunpack.c.0.s8 %v662
    %v664 = vlaneseq
    %v665 = vshrl.u32 %v664, 7
    %v666 = vsub.s32 %v663, %v665
    %v667 = vrot.slane %v95, %v666
    %v669 = vunpack.c.l.s4 1983009808
    %v670 = vunpack.c.0.s8 %v669
    %v671 = vlaneseq
    %v672 = vshrl.u32 %v671, 7
    %v673 = vsub.s32 %v670, %v672
    %v674 = vrot.slane %v660, %v673
    %v675 = vcombine.high %v667, %v667
    %v676 = vcombine.high %v674, %v674
    %v677 = vcombine.high %v96, %v96
    %v679 = vunpack.c.l.s4 1983009808
    %v680 = vunpack.c.0.s8 %v679
    %v681 = vlaneseq
    %v682 = vshrl.u32 %v681, 7
    %v683 = vsub.s32 %v680, %v682
    %v684 = vrot.slane %v96, %v683
    %v686 = vunpack.c.l.s4 1983009808
    %v687 = vunpack.c.0.s8 %v686
    %v688 = vlaneseq
    %v689 = vshrl.u32 %v688, 7
    %v690 = vsub.s32 %v687, %v689
    %v691 = vrot.slane %v677, %v690
    %v692 = vcombine.high %v684, %v684
    %v693 = vcombine.high %v691, %v691
    %v694 = vcombine.high %v97, %v97
    %v696 = vunpack.c.l.s4 1983009808
    %v697 = vunpack.c.0.s8 %v696
    %v698 = vlaneseq
    %v699 = vshrl.u32 %v698, 7
    %v700 = vsub.s32 %v697, %v699
    %v701 = vrot.slane %v97, %v700
    %v703 = vunpack.c.l.s4 1983009808
    %v704 = vunpack.c.0.s8 %v703
    %v705 = vlaneseq
    %v706 = vshrl.u32 %v705, 7
    %v707 = vsub.s32 %v704, %v706
    %v708 = vrot.slane %v694, %v707
    %v709 = vcombine.high %v701, %v701
    %v710 = vcombine.high %v708, %v708
    %v711 = vcombine.high %v98, %v98
    %v713 = vunpack.c.l.s4 1983009808
    %v714 = vunpack.c.0.s8 %v713
    %v715 = vlaneseq
    %v716 = vshrl.u32 %v715, 7
    %v717 = vsub.s32 %v714, %v716
    %v718 = vrot.slane %v98, %v717
    %v720 = vunpack.c.l.s4 1983009808
    %v721 = vunpack.c.0.s8 %v720
    %v722 = vlaneseq
    %v723 = vshrl.u32 %v722, 7
    %v724 = vsub.s32 %v721, %v723
    %v725 = vrot.slane %v711, %v724
    %v726 = vcombine.high %v718, %v718
    %v727 = vcombine.high %v725, %v725
    %v728 = vcombine.high %v99, %v99
    %v730 = vunpack.c.l.s4 1983009808
    %v731 = vunpack.c.0.s8 %v730
    %v732 = vlaneseq
    %v733 = vshrl.u32 %v732, 7
    %v734 = vsub.s32 %v731, %v733
    %v735 = vrot.slane %v99, %v734
    %v737 = vunpack.c.l.s4 1983009808
    %v738 = vunpack.c.0.s8 %v737
    %v739 = vlaneseq
    %v740 = vshrl.u32 %v739, 7
    %v741 = vsub.s32 %v738, %v740
    %v742 = vrot.slane %v728, %v741
    %v743 = vcombine.high %v735, %v735
    %v744 = vcombine.high %v742, %v742
    %v745 = vcombine.high %v100, %v100
    %v747 = vunpack.c.l.s4 1983009808
    %v748 = vunpack.c.0.s8 %v747
    %v749 = vlaneseq
    %v750 = vshrl.u32 %v749, 7
    %v751 = vsub.s32 %v748, %v750
    %v752 = vrot.slane %v100, %v751
    %v754 = vunpack.c.l.s4 1983009808
    %v755 = vunpack.c.0.s8 %v754
    %v756 = vlaneseq
    %v757 = vshrl.u32 %v756, 7
    %v758 = vsub.s32 %v755, %v757
    %v759 = vrot.slane %v745, %v758
    %v760 = vcombine.high %v752, %v752
    %v761 = vcombine.high %v759, %v759
    %v762 = vcombine.high %v101, %v101
    %v764 = vunpack.c.l.s4 1983009808
    %v765 = vunpack.c.0.s8 %v764
    %v766 = vlaneseq
    %v767 = vshrl.u32 %v766, 7
    %v768 = vsub.s32 %v765, %v767
    %v769 = vrot.slane %v101, %v768
    %v771 = vunpack.c.l.s4 1983009808
    %v772 = vunpack.c.0.s8 %v771
    %v773 = vlaneseq
    %v774 = vshrl.u32 %v773, 7
    %v775 = vsub.s32 %v772, %v774
    %v776 = vrot.slane %v762, %v775
    %v777 = vcombine.high %v769, %v769
    %v778 = vcombine.high %v776, %v776
    %v779 = vcombine.high %v102, %v102
    %v781 = vunpack.c.l.s4 1983009808
    %v782 = vunpack.c.0.s8 %v781
    %v783 = vlaneseq
    %v784 = vshrl.u32 %v783, 7
    %v785 = vsub.s32 %v782, %v784
    %v786 = vrot.slane %v102, %v785
    %v788 = vunpack.c.l.s4 1983009808
    %v789 = vunpack.c.0.s8 %v788
    %v790 = vlaneseq
    %v791 = vshrl.u32 %v790, 7
    %v792 = vsub.s32 %v789, %v791
    %v793 = vrot.slane %v779, %v792
    %v794 = vcombine.high %v786, %v786
    %v795 = vcombine.high %v793, %v793
    %v797 = vunpack.c.l.s4 1983009808
    %v798 = vunpack.c.0.s8 %v797
    %v799 = vlaneseq
    %v800 = vshrl.u32 %v799, 7
    %v801 = vsub.s32 %v798, %v800
    %v802 = vrot.slane %v103, %v801
    %v803 = vcombine.high %v802, %v802
    %vm837 = vcmask 785408
    %v838 = vsel %vm837, %v803, 0
    %840 = vmatprep.subr.mxu0 0.0
    %841 = vmatpush1.msra.mxu0 %v104
    %842 = vmatprep.subr.mxu0 0.0
    %843 = vmatpush1.msra.mxu0 %v105
    %844 = vmatprep.subr.mxu0 0.0
    %845 = vmatpush1.msra.mxu0 %v106
    %846 = vmatprep.subr.mxu0 0.0
    %847 = vmatpush1.msra.mxu0 %v107
    %848 = vmatprep.subr.mxu0 0.0
    %849 = vmatpush1.msra.mxu0 %v108
    %850 = vmatprep.subr.mxu0 0.0
    %851 = vmatpush1.msra.mxu0 %v109
    %852 = vmatprep.subr.mxu0 0.0
    %853 = vmatpush1.msra.mxu0 %v110
    %854 = vmatprep.subr.mxu0 0.0
    %855 = vmatpush1.msra.mxu0 %v111
    %856 = vmatprep.subr.mxu0 0.0
    %857 = vmatpush1.msra.mxu0 %v112
    %858 = vmatprep.subr.mxu0 0.0
    %859 = vmatpush1.msra.mxu0 %v113
    %860 = vmatprep.subr.mxu0 0.0
    %861 = vmatpush1.msra.mxu0 %v114
    %862 = vmatprep.subr.mxu0 0.0
    %863 = vmatpush1.msra.mxu0 %v115
    %864 = vmatprep.subr.mxu0 0.0
    %865 = vmatpush1.msra.mxu0 %v116
    %866 = vmatprep.subr.mxu0 0.0
    %867 = vmatpush1.msra.mxu0 %v117
    %868 = vmatprep.subr.mxu0 0.0
    %869 = vmatpush1.msra.mxu0 %v118
    %870 = vmatprep.subr.mxu0 0.0
    %871 = vmatpush1.msra.mxu0 %v119
    %872 = vmatprep.subr.mxu0 0.0
    %873 = vmatpush1.msra.mxu0 %v120
    %874 = vmatprep.subr.mxu0 0.0
    %875 = vmatpush1.msra.mxu0 %v121
    %876 = vmatprep.subr.mxu0 0.0
    %877 = vmatpush1.msra.mxu0 %v122
    %878 = vmatprep.subr.mxu0 0.0
    %879 = vmatpush1.msra.mxu0 %v123
    %880 = vmatprep.subr.mxu0 0.0
    %881 = vmatpush1.msra.mxu0 %v124
    %882 = vmatprep.subr.mxu0 0.0
    %883 = vmatpush1.msra.mxu0 %v125
    %884 = vmatprep.subr.mxu0 0.0
    %885 = vmatpush1.msra.mxu0 %v126
    %886 = vmatprep.subr.mxu0 0.0
    %887 = vmatpush1.msra.mxu0 %v127
    %888 = vmatprep.subr.mxu0 0.0
    %889 = vmatpush1.msra.mxu0 %v128
    %890 = vmatprep.subr.mxu0 0.0
    %891 = vmatpush1.msra.mxu0 %v129
    %892 = vmatprep.subr.mxu0 0.0
    %893 = vmatpush1.msra.mxu0 %v130
    %894 = vmatprep.subr.mxu0 0.0
    %895 = vmatpush1.msra.mxu0 %v131
    %896 = vmatprep.subr.mxu0 0.0
    %897 = vmatpush1.msra.mxu0 %v132
    %898 = vmatprep.subr.mxu0 0.0
    %899 = vmatpush1.msra.mxu0 %v133
    %900 = vmatprep.subr.mxu0 0.0
    %901 = vmatpush1.msra.mxu0 %v134
    %902 = vmatprep.subr.mxu0 0.0
    %903 = vmatpush1.msra.mxu0 %v135
    %904 = vmatprep.mubr.f32.mxu0 %v675
    %905 = vmatmul.mubr.f32.gmra.mrb[0].mxu0 %v667
    %v906 = vpop.f32.mrb[0].mxu0
    %v907 = vadd.f32 %v649, %v906
    %v908 = vpop.f32.mrb[0].mxu0
    %909 = vdwg.mxu0
    %910 = vmatprep.subr.mxu0 0.0
    %911 = vmatpush1.msra.mxu0 %v136
    %912 = vmatprep.subr.mxu0 0.0
    %913 = vmatpush1.msra.mxu0 %v137
    %914 = vmatprep.subr.mxu0 0.0
    %915 = vmatpush1.msra.mxu0 %v138
    %916 = vmatprep.subr.mxu0 0.0
    %917 = vmatpush1.msra.mxu0 %v139
    %918 = vmatprep.subr.mxu0 0.0
    %919 = vmatpush1.msra.mxu0 %v140
    %920 = vmatprep.subr.mxu0 0.0
    %921 = vmatpush1.msra.mxu0 %v141
    %922 = vmatprep.subr.mxu0 0.0
    %923 = vmatpush1.msra.mxu0 %v142
    %924 = vmatprep.subr.mxu0 0.0
    %925 = vmatpush1.msra.mxu0 %v143
    %926 = vmatprep.subr.mxu0 0.0
    %927 = vmatpush1.msra.mxu0 %v144
    %928 = vmatprep.subr.mxu0 0.0
    %929 = vmatpush1.msra.mxu0 %v145
    %930 = vmatprep.subr.mxu0 0.0
    %931 = vmatpush1.msra.mxu0 %v146
    %932 = vmatprep.subr.mxu0 0.0
    %933 = vmatpush1.msra.mxu0 %v147
    %934 = vmatprep.subr.mxu0 0.0
    %935 = vmatpush1.msra.mxu0 %v148
    %936 = vmatprep.subr.mxu0 0.0
    %937 = vmatpush1.msra.mxu0 %v149
    %938 = vmatprep.subr.mxu0 0.0
    %939 = vmatpush1.msra.mxu0 %v150
    %940 = vmatprep.subr.mxu0 0.0
    %941 = vmatpush1.msra.mxu0 %v151
    %942 = vmatprep.subr.mxu0 0.0
    %943 = vmatpush1.msra.mxu0 %v152
    %944 = vmatprep.subr.mxu0 0.0
    %945 = vmatpush1.msra.mxu0 %v153
    %946 = vmatprep.subr.mxu0 0.0
    %947 = vmatpush1.msra.mxu0 %v154
    %948 = vmatprep.subr.mxu0 0.0
    %949 = vmatpush1.msra.mxu0 %v155
    %950 = vmatprep.subr.mxu0 0.0
    %951 = vmatpush1.msra.mxu0 %v156
    %952 = vmatprep.subr.mxu0 0.0
    %953 = vmatpush1.msra.mxu0 %v157
    %954 = vmatprep.subr.mxu0 0.0
    %955 = vmatpush1.msra.mxu0 %v158
    %956 = vmatprep.subr.mxu0 0.0
    %957 = vmatpush1.msra.mxu0 %v159
    %958 = vmatprep.subr.mxu0 0.0
    %959 = vmatpush1.msra.mxu0 %v160
    %960 = vmatprep.subr.mxu0 0.0
    %961 = vmatpush1.msra.mxu0 %v161
    %962 = vmatprep.subr.mxu0 0.0
    %963 = vmatpush1.msra.mxu0 %v162
    %964 = vmatprep.subr.mxu0 0.0
    %965 = vmatpush1.msra.mxu0 %v163
    %966 = vmatprep.subr.mxu0 0.0
    %967 = vmatpush1.msra.mxu0 %v164
    %968 = vmatprep.subr.mxu0 0.0
    %969 = vmatpush1.msra.mxu0 %v165
    %970 = vmatprep.subr.mxu0 0.0
    %971 = vmatpush1.msra.mxu0 %v166
    %972 = vmatprep.subr.mxu0 0.0
    %973 = vmatpush1.msra.mxu0 %v167
    %974 = vmatprep.mubr.f32.mxu0 %v676
    %975 = vmatmul.mubr.f32.gmra.mrb[0].mxu0 %v674
    %v976 = vpop.f32.mrb[0].mxu0
    %v977 = vadd.f32 %v907, %v976
    %v978 = vpop.f32.mrb[0].mxu0
    %979 = vdwg.mxu0
    %980 = vmatprep.subr.mxu0 0.0
    %981 = vmatpush1.msra.mxu0 %v168
    %982 = vmatprep.subr.mxu0 0.0
    %983 = vmatpush1.msra.mxu0 %v169
    %984 = vmatprep.subr.mxu0 0.0
    %985 = vmatpush1.msra.mxu0 %v170
    %986 = vmatprep.subr.mxu0 0.0
    %987 = vmatpush1.msra.mxu0 %v171
    %988 = vmatprep.subr.mxu0 0.0
    %989 = vmatpush1.msra.mxu0 %v172
    %990 = vmatprep.subr.mxu0 0.0
    %991 = vmatpush1.msra.mxu0 %v173
    %992 = vmatprep.subr.mxu0 0.0
    %993 = vmatpush1.msra.mxu0 %v174
    %994 = vmatprep.subr.mxu0 0.0
    %995 = vmatpush1.msra.mxu0 %v175
    %996 = vmatprep.subr.mxu0 0.0
    %997 = vmatpush1.msra.mxu0 %v176
    %998 = vmatprep.subr.mxu0 0.0
    %999 = vmatpush1.msra.mxu0 %v177
    %1000 = vmatprep.subr.mxu0 0.0
    %1001 = vmatpush1.msra.mxu0 %v178
    %1002 = vmatprep.subr.mxu0 0.0
    %1003 = vmatpush1.msra.mxu0 %v179
    %1004 = vmatprep.subr.mxu0 0.0
    %1005 = vmatpush1.msra.mxu0 %v180
    %1006 = vmatprep.subr.mxu0 0.0
    %1007 = vmatpush1.msra.mxu0 %v181
    %1008 = vmatprep.subr.mxu0 0.0
    %1009 = vmatpush1.msra.mxu0 %v182
    %1010 = vmatprep.subr.mxu0 0.0
    %1011 = vmatpush1.msra.mxu0 %v183
    %1012 = vmatprep.subr.mxu0 0.0
    %1013 = vmatpush1.msra.mxu0 %v184
    %1014 = vmatprep.subr.mxu0 0.0
    %1015 = vmatpush1.msra.mxu0 %v185
    %1016 = vmatprep.subr.mxu0 0.0
    %1017 = vmatpush1.msra.mxu0 %v186
    %1018 = vmatprep.subr.mxu0 0.0
    %1019 = vmatpush1.msra.mxu0 %v187
    %1020 = vmatprep.subr.mxu0 0.0
    %1021 = vmatpush1.msra.mxu0 %v188
    %1022 = vmatprep.subr.mxu0 0.0
    %1023 = vmatpush1.msra.mxu0 %v189
    %1024 = vmatprep.subr.mxu0 0.0
    %1025 = vmatpush1.msra.mxu0 %v190
    %1026 = vmatprep.subr.mxu0 0.0
    %1027 = vmatpush1.msra.mxu0 %v191
    %1028 = vmatprep.subr.mxu0 0.0
    %1029 = vmatpush1.msra.mxu0 %v192
    %1030 = vmatprep.subr.mxu0 0.0
    %1031 = vmatpush1.msra.mxu0 %v193
    %1032 = vmatprep.subr.mxu0 0.0
    %1033 = vmatpush1.msra.mxu0 %v194
    %1034 = vmatprep.subr.mxu0 0.0
    %1035 = vmatpush1.msra.mxu0 %v195
    %1036 = vmatprep.subr.mxu0 0.0
    %1037 = vmatpush1.msra.mxu0 %v196
    %1038 = vmatprep.subr.mxu0 0.0
    %1039 = vmatpush1.msra.mxu0 %v197
    %1040 = vmatprep.subr.mxu0 0.0
    %1041 = vmatpush1.msra.mxu0 %v198
    %1042 = vmatprep.subr.mxu0 0.0
    %1043 = vmatpush1.msra.mxu0 %v199
    %1044 = vmatprep.mubr.f32.mxu0 %v692
    %1045 = vmatmul.mubr.f32.gmra.mrb[0].mxu0 %v684
    %v1046 = vpop.f32.mrb[0].mxu0
    %v1047 = vadd.f32 %v977, %v1046
    %v1048 = vpop.f32.mrb[0].mxu0
    %1049 = vdwg.mxu0
    %1050 = vmatprep.subr.mxu0 0.0
    %1051 = vmatpush1.msra.mxu0 %v200
    %1052 = vmatprep.subr.mxu0 0.0
    %1053 = vmatpush1.msra.mxu0 %v201
    %1054 = vmatprep.subr.mxu0 0.0
    %1055 = vmatpush1.msra.mxu0 %v202
    %1056 = vmatprep.subr.mxu0 0.0
    %1057 = vmatpush1.msra.mxu0 %v203
    %1058 = vmatprep.subr.mxu0 0.0
    %1059 = vmatpush1.msra.mxu0 %v204
    %1060 = vmatprep.subr.mxu0 0.0
    %1061 = vmatpush1.msra.mxu0 %v205
    %1062 = vmatprep.subr.mxu0 0.0
    %1063 = vmatpush1.msra.mxu0 %v206
    %1064 = vmatprep.subr.mxu0 0.0
    %1065 = vmatpush1.msra.mxu0 %v207
    %1066 = vmatprep.subr.mxu0 0.0
    %1067 = vmatpush1.msra.mxu0 %v208
    %1068 = vmatprep.subr.mxu0 0.0
    %1069 = vmatpush1.msra.mxu0 %v209
    %1070 = vmatprep.subr.mxu0 0.0
    %1071 = vmatpush1.msra.mxu0 %v210
    %1072 = vmatprep.subr.mxu0 0.0
    %1073 = vmatpush1.msra.mxu0 %v211
    %1074 = vmatprep.subr.mxu0 0.0
    %1075 = vmatpush1.msra.mxu0 %v212
    %1076 = vmatprep.subr.mxu0 0.0
    %1077 = vmatpush1.msra.mxu0 %v213
    %1078 = vmatprep.subr.mxu0 0.0
    %1079 = vmatpush1.msra.mxu0 %v214
    %1080 = vmatprep.subr.mxu0 0.0
    %1081 = vmatpush1.msra.mxu0 %v215
    %1082 = vmatprep.subr.mxu0 0.0
    %1083 = vmatpush1.msra.mxu0 %v216
    %1084 = vmatprep.subr.mxu0 0.0
    %1085 = vmatpush1.msra.mxu0 %v217
    %1086 = vmatprep.subr.mxu0 0.0
    %1087 = vmatpush1.msra.mxu0 %v218
    %1088 = vmatprep.subr.mxu0 0.0
    %1089 = vmatpush1.msra.mxu0 %v219
    %1090 = vmatprep.subr.mxu0 0.0
    %1091 = vmatpush1.msra.mxu0 %v220
    %1092 = vmatprep.subr.mxu0 0.0
    %1093 = vmatpush1.msra.mxu0 %v221
    %1094 = vmatprep.subr.mxu0 0.0
    %1095 = vmatpush1.msra.mxu0 %v222
    %1096 = vmatprep.subr.mxu0 0.0
    %1097 = vmatpush1.msra.mxu0 %v223
    %1098 = vmatprep.subr.mxu0 0.0
    %1099 = vmatpush1.msra.mxu0 %v224
    %1100 = vmatprep.subr.mxu0 0.0
    %1101 = vmatpush1.msra.mxu0 %v225
    %1102 = vmatprep.subr.mxu0 0.0
    %1103 = vmatpush1.msra.mxu0 %v226
    %1104 = vmatprep.subr.mxu0 0.0
    %1105 = vmatpush1.msra.mxu0 %v227
    %1106 = vmatprep.subr.mxu0 0.0
    %1107 = vmatpush1.msra.mxu0 %v228
    %1108 = vmatprep.subr.mxu0 0.0
    %1109 = vmatpush1.msra.mxu0 %v229
    %1110 = vmatprep.subr.mxu0 0.0
    %1111 = vmatpush1.msra.mxu0 %v230
    %1112 = vmatprep.subr.mxu0 0.0
    %1113 = vmatpush1.msra.mxu0 %v231
    %1114 = vmatprep.mubr.f32.mxu0 %v693
    %1115 = vmatmul.mubr.f32.gmra.mrb[0].mxu0 %v691
    %v1116 = vpop.f32.mrb[0].mxu0
    %v1117 = vadd.f32 %v1047, %v1116
    %v1118 = vpop.f32.mrb[0].mxu0
    %1119 = vdwg.mxu0
    %1120 = vmatprep.subr.mxu0 0.0
    %1121 = vmatpush1.msra.mxu0 %v232
    %1122 = vmatprep.subr.mxu0 0.0
    %1123 = vmatpush1.msra.mxu0 %v233
    %1124 = vmatprep.subr.mxu0 0.0
    %1125 = vmatpush1.msra.mxu0 %v234
    %1126 = vmatprep.subr.mxu0 0.0
    %1127 = vmatpush1.msra.mxu0 %v235
    %1128 = vmatprep.subr.mxu0 0.0
    %1129 = vmatpush1.msra.mxu0 %v236
    %1130 = vmatprep.subr.mxu0 0.0
    %1131 = vmatpush1.msra.mxu0 %v237
    %1132 = vmatprep.subr.mxu0 0.0
    %1133 = vmatpush1.msra.mxu0 %v238
    %1134 = vmatprep.subr.mxu0 0.0
    %1135 = vmatpush1.msra.mxu0 %v239
    %1136 = vmatprep.subr.mxu0 0.0
    %1137 = vmatpush1.msra.mxu0 %v240
    %1138 = vmatprep.subr.mxu0 0.0
    %1139 = vmatpush1.msra.mxu0 %v241
    %1140 = vmatprep.subr.mxu0 0.0
    %1141 = vmatpush1.msra.mxu0 %v242
    %1142 = vmatprep.subr.mxu0 0.0
    %1143 = vmatpush1.msra.mxu0 %v243
    %1144 = vmatprep.subr.mxu0 0.0
    %1145 = vmatpush1.msra.mxu0 %v244
    %1146 = vmatprep.subr.mxu0 0.0
    %1147 = vmatpush1.msra.mxu0 %v245
    %1148 = vmatprep.subr.mxu0 0.0
    %1149 = vmatpush1.msra.mxu0 %v246
    %1150 = vmatprep.subr.mxu0 0.0
    %1151 = vmatpush1.msra.mxu0 %v247
    %1152 = vmatprep.subr.mxu0 0.0
    %1153 = vmatpush1.msra.mxu0 %v248
    %1154 = vmatprep.subr.mxu0 0.0
    %1155 = vmatpush1.msra.mxu0 %v249
    %1156 = vmatprep.subr.mxu0 0.0
    %1157 = vmatpush1.msra.mxu0 %v250
    %1158 = vmatprep.subr.mxu0 0.0
    %1159 = vmatpush1.msra.mxu0 %v251
    %1160 = vmatprep.subr.mxu0 0.0
    %1161 = vmatpush1.msra.mxu0 %v252
    %1162 = vmatprep.subr.mxu0 0.0
    %1163 = vmatpush1.msra.mxu0 %v253
    %1164 = vmatprep.subr.mxu0 0.0
    %1165 = vmatpush1.msra.mxu0 %v254
    %1166 = vmatprep.subr.mxu0 0.0
    %1167 = vmatpush1.msra.mxu0 %v255
    %1168 = vmatprep.subr.mxu0 0.0
    %1169 = vmatpush1.msra.mxu0 %v256
    %1170 = vmatprep.subr.mxu0 0.0
    %1171 = vmatpush1.msra.mxu0 %v257
    %1172 = vmatprep.subr.mxu0 0.0
    %1173 = vmatpush1.msra.mxu0 %v258
    %1174 = vmatprep.subr.mxu0 0.0
    %1175 = vmatpush1.msra.mxu0 %v259
    %1176 = vmatprep.subr.mxu0 0.0
    %1177 = vmatpush1.msra.mxu0 %v260
    %1178 = vmatprep.subr.mxu0 0.0
    %1179 = vmatpush1.msra.mxu0 %v261
    %1180 = vmatprep.subr.mxu0 0.0
    %1181 = vmatpush1.msra.mxu0 %v262
    %1182 = vmatprep.subr.mxu0 0.0
    %1183 = vmatpush1.msra.mxu0 %v263
    %1184 = vmatprep.mubr.f32.mxu0 %v709
    %1185 = vmatmul.mubr.f32.gmra.mrb[0].mxu0 %v701
    %v1186 = vpop.f32.mrb[0].mxu0
    %v1187 = vadd.f32 %v1117, %v1186
    %v1188 = vpop.f32.mrb[0].mxu0
    %1189 = vdwg.mxu0
    %1190 = vmatprep.subr.mxu0 0.0
    %1191 = vmatpush1.msra.mxu0 %v264
    %1192 = vmatprep.subr.mxu0 0.0
    %1193 = vmatpush1.msra.mxu0 %v265
    %1194 = vmatprep.subr.mxu0 0.0
    %1195 = vmatpush1.msra.mxu0 %v266
    %1196 = vmatprep.subr.mxu0 0.0
    %1197 = vmatpush1.msra.mxu0 %v267
    %1198 = vmatprep.subr.mxu0 0.0
    %1199 = vmatpush1.msra.mxu0 %v268
    %1200 = vmatprep.subr.mxu0 0.0
    %1201 = vmatpush1.msra.mxu0 %v269
    %1202 = vmatprep.subr.mxu0 0.0
    %1203 = vmatpush1.msra.mxu0 %v270
    %1204 = vmatprep.subr.mxu0 0.0
    %1205 = vmatpush1.msra.mxu0 %v271
    %1206 = vmatprep.subr.mxu0 0.0
    %1207 = vmatpush1.msra.mxu0 %v272
    %1208 = vmatprep.subr.mxu0 0.0
    %1209 = vmatpush1.msra.mxu0 %v273
    %1210 = vmatprep.subr.mxu0 0.0
    %1211 = vmatpush1.msra.mxu0 %v274
    %1212 = vmatprep.subr.mxu0 0.0
    %1213 = vmatpush1.msra.mxu0 %v275
    %1214 = vmatprep.subr.mxu0 0.0
    %1215 = vmatpush1.msra.mxu0 %v276
    %1216 = vmatprep.subr.mxu0 0.0
    %1217 = vmatpush1.msra.mxu0 %v277
    %1218 = vmatprep.subr.mxu0 0.0
    %1219 = vmatpush1.msra.mxu0 %v278
    %1220 = vmatprep.subr.mxu0 0.0
    %1221 = vmatpush1.msra.mxu0 %v279
    %1222 = vmatprep.subr.mxu0 0.0
    %1223 = vmatpush1.msra.mxu0 %v280
    %1224 = vmatprep.subr.mxu0 0.0
    %1225 = vmatpush1.msra.mxu0 %v281
    %1226 = vmatprep.subr.mxu0 0.0
    %1227 = vmatpush1.msra.mxu0 %v282
    %1228 = vmatprep.subr.mxu0 0.0
    %1229 = vmatpush1.msra.mxu0 %v283
    %1230 = vmatprep.subr.mxu0 0.0
    %1231 = vmatpush1.msra.mxu0 %v284
    %1232 = vmatprep.subr.mxu0 0.0
    %1233 = vmatpush1.msra.mxu0 %v285
    %1234 = vmatprep.subr.mxu0 0.0
    %1235 = vmatpush1.msra.mxu0 %v286
    %1236 = vmatprep.subr.mxu0 0.0
    %1237 = vmatpush1.msra.mxu0 %v287
    %1238 = vmatprep.subr.mxu0 0.0
    %1239 = vmatpush1.msra.mxu0 %v288
    %1240 = vmatprep.subr.mxu0 0.0
    %1241 = vmatpush1.msra.mxu0 %v289
    %1242 = vmatprep.subr.mxu0 0.0
    %1243 = vmatpush1.msra.mxu0 %v290
    %1244 = vmatprep.subr.mxu0 0.0
    %1245 = vmatpush1.msra.mxu0 %v291
    %1246 = vmatprep.subr.mxu0 0.0
    %1247 = vmatpush1.msra.mxu0 %v292
    %1248 = vmatprep.subr.mxu0 0.0
    %1249 = vmatpush1.msra.mxu0 %v293
    %1250 = vmatprep.subr.mxu0 0.0
    %1251 = vmatpush1.msra.mxu0 %v294
    %1252 = vmatprep.subr.mxu0 0.0
    %1253 = vmatpush1.msra.mxu0 %v295
    %1254 = vmatprep.mubr.f32.mxu0 %v710
    %1255 = vmatmul.mubr.f32.gmra.mrb[0].mxu0 %v708
    %v1256 = vpop.f32.mrb[0].mxu0
    %v1257 = vadd.f32 %v1187, %v1256
    %v1258 = vpop.f32.mrb[0].mxu0
    %1259 = vdwg.mxu0
    %1260 = vmatprep.subr.mxu0 0.0
    %1261 = vmatpush1.msra.mxu0 %v296
    %1262 = vmatprep.subr.mxu0 0.0
    %1263 = vmatpush1.msra.mxu0 %v297
    %1264 = vmatprep.subr.mxu0 0.0
    %1265 = vmatpush1.msra.mxu0 %v298
    %1266 = vmatprep.subr.mxu0 0.0
    %1267 = vmatpush1.msra.mxu0 %v299
    %1268 = vmatprep.subr.mxu0 0.0
    %1269 = vmatpush1.msra.mxu0 %v300
    %1270 = vmatprep.subr.mxu0 0.0
    %1271 = vmatpush1.msra.mxu0 %v301
    %1272 = vmatprep.subr.mxu0 0.0
    %1273 = vmatpush1.msra.mxu0 %v302
    %1274 = vmatprep.subr.mxu0 0.0
    %1275 = vmatpush1.msra.mxu0 %v303
    %1276 = vmatprep.subr.mxu0 0.0
    %1277 = vmatpush1.msra.mxu0 %v304
    %1278 = vmatprep.subr.mxu0 0.0
    %1279 = vmatpush1.msra.mxu0 %v305
    %1280 = vmatprep.subr.mxu0 0.0
    %1281 = vmatpush1.msra.mxu0 %v306
    %1282 = vmatprep.subr.mxu0 0.0
    %1283 = vmatpush1.msra.mxu0 %v307
    %1284 = vmatprep.subr.mxu0 0.0
    %1285 = vmatpush1.msra.mxu0 %v308
    %1286 = vmatprep.subr.mxu0 0.0
    %1287 = vmatpush1.msra.mxu0 %v309
    %1288 = vmatprep.subr.mxu0 0.0
    %1289 = vmatpush1.msra.mxu0 %v310
    %1290 = vmatprep.subr.mxu0 0.0
    %1291 = vmatpush1.msra.mxu0 %v311
    %1292 = vmatprep.subr.mxu0 0.0
    %1293 = vmatpush1.msra.mxu0 %v312
    %1294 = vmatprep.subr.mxu0 0.0
    %1295 = vmatpush1.msra.mxu0 %v313
    %1296 = vmatprep.subr.mxu0 0.0
    %1297 = vmatpush1.msra.mxu0 %v314
    %1298 = vmatprep.subr.mxu0 0.0
    %1299 = vmatpush1.msra.mxu0 %v315
    %1300 = vmatprep.subr.mxu0 0.0
    %1301 = vmatpush1.msra.mxu0 %v316
    %1302 = vmatprep.subr.mxu0 0.0
    %1303 = vmatpush1.msra.mxu0 %v317
    %1304 = vmatprep.subr.mxu0 0.0
    %1305 = vmatpush1.msra.mxu0 %v318
    %1306 = vmatprep.subr.mxu0 0.0
    %1307 = vmatpush1.msra.mxu0 %v319
    %1308 = vmatprep.subr.mxu0 0.0
    %1309 = vmatpush1.msra.mxu0 %v320
    %1310 = vmatprep.subr.mxu0 0.0
    %1311 = vmatpush1.msra.mxu0 %v321
    %1312 = vmatprep.subr.mxu0 0.0
    %1313 = vmatpush1.msra.mxu0 %v322
    %1314 = vmatprep.subr.mxu0 0.0
    %1315 = vmatpush1.msra.mxu0 %v323
    %1316 = vmatprep.subr.mxu0 0.0
    %1317 = vmatpush1.msra.mxu0 %v324
    %1318 = vmatprep.subr.mxu0 0.0
    %1319 = vmatpush1.msra.mxu0 %v325
    %1320 = vmatprep.subr.mxu0 0.0
    %1321 = vmatpush1.msra.mxu0 %v326
    %1322 = vmatprep.subr.mxu0 0.0
    %1323 = vmatpush1.msra.mxu0 %v327
    %1324 = vmatprep.mubr.f32.mxu0 %v726
    %1325 = vmatmul.mubr.f32.gmra.mrb[0].mxu0 %v718
    %v1326 = vpop.f32.mrb[0].mxu0
    %v1327 = vadd.f32 %v1257, %v1326
    %v1328 = vpop.f32.mrb[0].mxu0
    %1329 = vdwg.mxu0
    %1330 = vmatprep.subr.mxu0 0.0
    %1331 = vmatpush1.msra.mxu0 %v328
    %1332 = vmatprep.subr.mxu0 0.0
    %1333 = vmatpush1.msra.mxu0 %v329
    %1334 = vmatprep.subr.mxu0 0.0
    %1335 = vmatpush1.msra.mxu0 %v330
    %1336 = vmatprep.subr.mxu0 0.0
    %1337 = vmatpush1.msra.mxu0 %v331
    %1338 = vmatprep.subr.mxu0 0.0
    %1339 = vmatpush1.msra.mxu0 %v332
    %1340 = vmatprep.subr.mxu0 0.0
    %1341 = vmatpush1.msra.mxu0 %v333
    %1342 = vmatprep.subr.mxu0 0.0
    %1343 = vmatpush1.msra.mxu0 %v334
    %1344 = vmatprep.subr.mxu0 0.0
    %1345 = vmatpush1.msra.mxu0 %v335
    %1346 = vmatprep.subr.mxu0 0.0
    %1347 = vmatpush1.msra.mxu0 %v336
    %1348 = vmatprep.subr.mxu0 0.0
    %1349 = vmatpush1.msra.mxu0 %v337
    %1350 = vmatprep.subr.mxu0 0.0
    %1351 = vmatpush1.msra.mxu0 %v338
    %1352 = vmatprep.subr.mxu0 0.0
    %1353 = vmatpush1.msra.mxu0 %v339
    %1354 = vmatprep.subr.mxu0 0.0
    %1355 = vmatpush1.msra.mxu0 %v340
    %1356 = vmatprep.subr.mxu0 0.0
    %1357 = vmatpush1.msra.mxu0 %v341
    %1358 = vmatprep.subr.mxu0 0.0
    %1359 = vmatpush1.msra.mxu0 %v342
    %1360 = vmatprep.subr.mxu0 0.0
    %1361 = vmatpush1.msra.mxu0 %v343
    %1362 = vmatprep.subr.mxu0 0.0
    %1363 = vmatpush1.msra.mxu0 %v344
    %1364 = vmatprep.subr.mxu0 0.0
    %1365 = vmatpush1.msra.mxu0 %v345
    %1366 = vmatprep.subr.mxu0 0.0
    %1367 = vmatpush1.msra.mxu0 %v346
    %1368 = vmatprep.subr.mxu0 0.0
    %1369 = vmatpush1.msra.mxu0 %v347
    %1370 = vmatprep.subr.mxu0 0.0
    %1371 = vmatpush1.msra.mxu0 %v348
    %1372 = vmatprep.subr.mxu0 0.0
    %1373 = vmatpush1.msra.mxu0 %v349
    %1374 = vmatprep.subr.mxu0 0.0
    %1375 = vmatpush1.msra.mxu0 %v350
    %1376 = vmatprep.subr.mxu0 0.0
    %1377 = vmatpush1.msra.mxu0 %v351
    %1378 = vmatprep.subr.mxu0 0.0
    %1379 = vmatpush1.msra.mxu0 %v352
    %1380 = vmatprep.subr.mxu0 0.0
    %1381 = vmatpush1.msra.mxu0 %v353
    %1382 = vmatprep.subr.mxu0 0.0
    %1383 = vmatpush1.msra.mxu0 %v354
    %1384 = vmatprep.subr.mxu0 0.0
    %1385 = vmatpush1.msra.mxu0 %v355
    %1386 = vmatprep.subr.mxu0 0.0
    %1387 = vmatpush1.msra.mxu0 %v356
    %1388 = vmatprep.subr.mxu0 0.0
    %1389 = vmatpush1.msra.mxu0 %v357
    %1390 = vmatprep.subr.mxu0 0.0
    %1391 = vmatpush1.msra.mxu0 %v358
    %1392 = vmatprep.subr.mxu0 0.0
    %1393 = vmatpush1.msra.mxu0 %v359
    %1394 = vmatprep.mubr.f32.mxu0 %v727
    %1395 = vmatmul.mubr.f32.gmra.mrb[0].mxu0 %v725
    %v1396 = vpop.f32.mrb[0].mxu0
    %v1397 = vadd.f32 %v1327, %v1396
    %v1398 = vpop.f32.mrb[0].mxu0
    %1399 = vdwg.mxu0
    %1400 = vmatprep.subr.mxu0 0.0
    %1401 = vmatpush1.msra.mxu0 %v360
    %1402 = vmatprep.subr.mxu0 0.0
    %1403 = vmatpush1.msra.mxu0 %v361
    %1404 = vmatprep.subr.mxu0 0.0
    %1405 = vmatpush1.msra.mxu0 %v362
    %1406 = vmatprep.subr.mxu0 0.0
    %1407 = vmatpush1.msra.mxu0 %v363
    %1408 = vmatprep.subr.mxu0 0.0
    %1409 = vmatpush1.msra.mxu0 %v364
    %1410 = vmatprep.subr.mxu0 0.0
    %1411 = vmatpush1.msra.mxu0 %v365
    %1412 = vmatprep.subr.mxu0 0.0
    %1413 = vmatpush1.msra.mxu0 %v366
    %1414 = vmatprep.subr.mxu0 0.0
    %1415 = vmatpush1.msra.mxu0 %v367
    %1416 = vmatprep.subr.mxu0 0.0
    %1417 = vmatpush1.msra.mxu0 %v368
    %1418 = vmatprep.subr.mxu0 0.0
    %1419 = vmatpush1.msra.mxu0 %v369
    %1420 = vmatprep.subr.mxu0 0.0
    %1421 = vmatpush1.msra.mxu0 %v370
    %1422 = vmatprep.subr.mxu0 0.0
    %1423 = vmatpush1.msra.mxu0 %v371
    %1424 = vmatprep.subr.mxu0 0.0
    %1425 = vmatpush1.msra.mxu0 %v372
    %1426 = vmatprep.subr.mxu0 0.0
    %1427 = vmatpush1.msra.mxu0 %v373
    %1428 = vmatprep.subr.mxu0 0.0
    %1429 = vmatpush1.msra.mxu0 %v374
    %1430 = vmatprep.subr.mxu0 0.0
    %1431 = vmatpush1.msra.mxu0 %v375
    %1432 = vmatprep.subr.mxu0 0.0
    %1433 = vmatpush1.msra.mxu0 %v376
    %1434 = vmatprep.subr.mxu0 0.0
    %1435 = vmatpush1.msra.mxu0 %v377
    %1436 = vmatprep.subr.mxu0 0.0
    %1437 = vmatpush1.msra.mxu0 %v378
    %1438 = vmatprep.subr.mxu0 0.0
    %1439 = vmatpush1.msra.mxu0 %v379
    %1440 = vmatprep.subr.mxu0 0.0
    %1441 = vmatpush1.msra.mxu0 %v380
    %1442 = vmatprep.subr.mxu0 0.0
    %1443 = vmatpush1.msra.mxu0 %v381
    %1444 = vmatprep.subr.mxu0 0.0
    %1445 = vmatpush1.msra.mxu0 %v382
    %1446 = vmatprep.subr.mxu0 0.0
    %1447 = vmatpush1.msra.mxu0 %v383
    %1448 = vmatprep.subr.mxu0 0.0
    %1449 = vmatpush1.msra.mxu0 %v384
    %1450 = vmatprep.subr.mxu0 0.0
    %1451 = vmatpush1.msra.mxu0 %v385
    %1452 = vmatprep.subr.mxu0 0.0
    %1453 = vmatpush1.msra.mxu0 %v386
    %1454 = vmatprep.subr.mxu0 0.0
    %1455 = vmatpush1.msra.mxu0 %v387
    %1456 = vmatprep.subr.mxu0 0.0
    %1457 = vmatpush1.msra.mxu0 %v388
    %1458 = vmatprep.subr.mxu0 0.0
    %1459 = vmatpush1.msra.mxu0 %v389
    %1460 = vmatprep.subr.mxu0 0.0
    %1461 = vmatpush1.msra.mxu0 %v390
    %1462 = vmatprep.subr.mxu0 0.0
    %1463 = vmatpush1.msra.mxu0 %v391
    %1464 = vmatprep.mubr.f32.mxu0 %v743
    %1465 = vmatmul.mubr.f32.gmra.mrb[0].mxu0 %v735
    %v1466 = vpop.f32.mrb[0].mxu0
    %v1467 = vadd.f32 %v1397, %v1466
    %v1468 = vpop.f32.mrb[0].mxu0
    %1469 = vdwg.mxu0
    %1470 = vmatprep.subr.mxu0 0.0
    %1471 = vmatpush1.msra.mxu0 %v392
    %1472 = vmatprep.subr.mxu0 0.0
    %1473 = vmatpush1.msra.mxu0 %v393
    %1474 = vmatprep.subr.mxu0 0.0
    %1475 = vmatpush1.msra.mxu0 %v394
    %1476 = vmatprep.subr.mxu0 0.0
    %1477 = vmatpush1.msra.mxu0 %v395
    %1478 = vmatprep.subr.mxu0 0.0
    %1479 = vmatpush1.msra.mxu0 %v396
    %1480 = vmatprep.subr.mxu0 0.0
    %1481 = vmatpush1.msra.mxu0 %v397
    %1482 = vmatprep.subr.mxu0 0.0
    %1483 = vmatpush1.msra.mxu0 %v398
    %1484 = vmatprep.subr.mxu0 0.0
    %1485 = vmatpush1.msra.mxu0 %v399
    %1486 = vmatprep.subr.mxu0 0.0
    %1487 = vmatpush1.msra.mxu0 %v400
    %1488 = vmatprep.subr.mxu0 0.0
    %1489 = vmatpush1.msra.mxu0 %v401
    %1490 = vmatprep.subr.mxu0 0.0
    %1491 = vmatpush1.msra.mxu0 %v402
    %1492 = vmatprep.subr.mxu0 0.0
    %1493 = vmatpush1.msra.mxu0 %v403
    %1494 = vmatprep.subr.mxu0 0.0
    %1495 = vmatpush1.msra.mxu0 %v404
    %1496 = vmatprep.subr.mxu0 0.0
    %1497 = vmatpush1.msra.mxu0 %v405
    %1498 = vmatprep.subr.mxu0 0.0
    %1499 = vmatpush1.msra.mxu0 %v406
    %1500 = vmatprep.subr.mxu0 0.0
    %1501 = vmatpush1.msra.mxu0 %v407
    %1502 = vmatprep.subr.mxu0 0.0
    %1503 = vmatpush1.msra.mxu0 %v408
    %1504 = vmatprep.subr.mxu0 0.0
    %1505 = vmatpush1.msra.mxu0 %v409
    %1506 = vmatprep.subr.mxu0 0.0
    %1507 = vmatpush1.msra.mxu0 %v410
    %1508 = vmatprep.subr.mxu0 0.0
    %1509 = vmatpush1.msra.mxu0 %v411
    %1510 = vmatprep.subr.mxu0 0.0
    %1511 = vmatpush1.msra.mxu0 %v412
    %1512 = vmatprep.subr.mxu0 0.0
    %1513 = vmatpush1.msra.mxu0 %v413
    %1514 = vmatprep.subr.mxu0 0.0
    %1515 = vmatpush1.msra.mxu0 %v414
    %1516 = vmatprep.subr.mxu0 0.0
    %1517 = vmatpush1.msra.mxu0 %v415
    %1518 = vmatprep.subr.mxu0 0.0
    %1519 = vmatpush1.msra.mxu0 %v416
    %1520 = vmatprep.subr.mxu0 0.0
    %1521 = vmatpush1.msra.mxu0 %v417
    %1522 = vmatprep.subr.mxu0 0.0
    %1523 = vmatpush1.msra.mxu0 %v418
    %1524 = vmatprep.subr.mxu0 0.0
    %1525 = vmatpush1.msra.mxu0 %v419
    %1526 = vmatprep.subr.mxu0 0.0
    %1527 = vmatpush1.msra.mxu0 %v420
    %1528 = vmatprep.subr.mxu0 0.0
    %1529 = vmatpush1.msra.mxu0 %v421
    %1530 = vmatprep.subr.mxu0 0.0
    %1531 = vmatpush1.msra.mxu0 %v422
    %1532 = vmatprep.subr.mxu0 0.0
    %1533 = vmatpush1.msra.mxu0 %v423
    %1534 = vmatprep.mubr.f32.mxu0 %v744
    %1535 = vmatmul.mubr.f32.gmra.mrb[0].mxu0 %v742
    %v1536 = vpop.f32.mrb[0].mxu0
    %v1537 = vadd.f32 %v1467, %v1536
    %v1538 = vpop.f32.mrb[0].mxu0
    %1539 = vdwg.mxu0
    %1540 = vmatprep.subr.mxu0 0.0
    %1541 = vmatpush1.msra.mxu0 %v424
    %1542 = vmatprep.subr.mxu0 0.0
    %1543 = vmatpush1.msra.mxu0 %v425
    %1544 = vmatprep.subr.mxu0 0.0
    %1545 = vmatpush1.msra.mxu0 %v426
    %1546 = vmatprep.subr.mxu0 0.0
    %1547 = vmatpush1.msra.mxu0 %v427
    %1548 = vmatprep.subr.mxu0 0.0
    %1549 = vmatpush1.msra.mxu0 %v428
    %1550 = vmatprep.subr.mxu0 0.0
    %1551 = vmatpush1.msra.mxu0 %v429
    %1552 = vmatprep.subr.mxu0 0.0
    %1553 = vmatpush1.msra.mxu0 %v430
    %1554 = vmatprep.subr.mxu0 0.0
    %1555 = vmatpush1.msra.mxu0 %v431
    %1556 = vmatprep.subr.mxu0 0.0
    %1557 = vmatpush1.msra.mxu0 %v432
    %1558 = vmatprep.subr.mxu0 0.0
    %1559 = vmatpush1.msra.mxu0 %v433
    %1560 = vmatprep.subr.mxu0 0.0
    %1561 = vmatpush1.msra.mxu0 %v434
    %1562 = vmatprep.subr.mxu0 0.0
    %1563 = vmatpush1.msra.mxu0 %v435
    %1564 = vmatprep.subr.mxu0 0.0
    %1565 = vmatpush1.msra.mxu0 %v436
    %1566 = vmatprep.subr.mxu0 0.0
    %1567 = vmatpush1.msra.mxu0 %v437
    %1568 = vmatprep.subr.mxu0 0.0
    %1569 = vmatpush1.msra.mxu0 %v438
    %1570 = vmatprep.subr.mxu0 0.0
    %1571 = vmatpush1.msra.mxu0 %v439
    %1572 = vmatprep.subr.mxu0 0.0
    %1573 = vmatpush1.msra.mxu0 %v440
    %1574 = vmatprep.subr.mxu0 0.0
    %1575 = vmatpush1.msra.mxu0 %v441
    %1576 = vmatprep.subr.mxu0 0.0
    %1577 = vmatpush1.msra.mxu0 %v442
    %1578 = vmatprep.subr.mxu0 0.0
    %1579 = vmatpush1.msra.mxu0 %v443
    %1580 = vmatprep.subr.mxu0 0.0
    %1581 = vmatpush1.msra.mxu0 %v444
    %1582 = vmatprep.subr.mxu0 0.0
    %1583 = vmatpush1.msra.mxu0 %v445
    %1584 = vmatprep.subr.mxu0 0.0
    %1585 = vmatpush1.msra.mxu0 %v446
    %1586 = vmatprep.subr.mxu0 0.0
    %1587 = vmatpush1.msra.mxu0 %v447
    %1588 = vmatprep.subr.mxu0 0.0
    %1589 = vmatpush1.msra.mxu0 %v448
    %1590 = vmatprep.subr.mxu0 0.0
    %1591 = vmatpush1.msra.mxu0 %v449
    %1592 = vmatprep.subr.mxu0 0.0
    %1593 = vmatpush1.msra.mxu0 %v450
    %1594 = vmatprep.subr.mxu0 0.0
    %1595 = vmatpush1.msra.mxu0 %v451
    %1596 = vmatprep.subr.mxu0 0.0
    %1597 = vmatpush1.msra.mxu0 %v452
    %1598 = vmatprep.subr.mxu0 0.0
    %1599 = vmatpush1.msra.mxu0 %v453
    %1600 = vmatprep.subr.mxu0 0.0
    %1601 = vmatpush1.msra.mxu0 %v454
    %1602 = vmatprep.subr.mxu0 0.0
    %1603 = vmatpush1.msra.mxu0 %v455
    %1604 = vmatprep.mubr.f32.mxu0 %v760
    %1605 = vmatmul.mubr.f32.gmra.mrb[0].mxu0 %v752
    %v1606 = vpop.f32.mrb[0].mxu0
    %v1607 = vadd.f32 %v1537, %v1606
    %v1608 = vpop.f32.mrb[0].mxu0
    %1609 = vdwg.mxu0
    %1610 = vmatprep.subr.mxu0 0.0
    %1611 = vmatpush1.msra.mxu0 %v456
    %1612 = vmatprep.subr.mxu0 0.0
    %1613 = vmatpush1.msra.mxu0 %v457
    %1614 = vmatprep.subr.mxu0 0.0
    %1615 = vmatpush1.msra.mxu0 %v458
    %1616 = vmatprep.subr.mxu0 0.0
    %1617 = vmatpush1.msra.mxu0 %v459
    %1618 = vmatprep.subr.mxu0 0.0
    %1619 = vmatpush1.msra.mxu0 %v460
    %1620 = vmatprep.subr.mxu0 0.0
    %1621 = vmatpush1.msra.mxu0 %v461
    %1622 = vmatprep.subr.mxu0 0.0
    %1623 = vmatpush1.msra.mxu0 %v462
    %1624 = vmatprep.subr.mxu0 0.0
    %1625 = vmatpush1.msra.mxu0 %v463
    %1626 = vmatprep.subr.mxu0 0.0
    %1627 = vmatpush1.msra.mxu0 %v464
    %1628 = vmatprep.subr.mxu0 0.0
    %1629 = vmatpush1.msra.mxu0 %v465
    %1630 = vmatprep.subr.mxu0 0.0
    %1631 = vmatpush1.msra.mxu0 %v466
    %1632 = vmatprep.subr.mxu0 0.0
    %1633 = vmatpush1.msra.mxu0 %v467
    %1634 = vmatprep.subr.mxu0 0.0
    %1635 = vmatpush1.msra.mxu0 %v468
    %1636 = vmatprep.subr.mxu0 0.0
    %1637 = vmatpush1.msra.mxu0 %v469
    %1638 = vmatprep.subr.mxu0 0.0
    %1639 = vmatpush1.msra.mxu0 %v470
    %1640 = vmatprep.subr.mxu0 0.0
    %1641 = vmatpush1.msra.mxu0 %v471
    %1642 = vmatprep.subr.mxu0 0.0
    %1643 = vmatpush1.msra.mxu0 %v472
    %1644 = vmatprep.subr.mxu0 0.0
    %1645 = vmatpush1.msra.mxu0 %v473
    %1646 = vmatprep.subr.mxu0 0.0
    %1647 = vmatpush1.msra.mxu0 %v474
    %1648 = vmatprep.subr.mxu0 0.0
    %1649 = vmatpush1.msra.mxu0 %v475
    %1650 = vmatprep.subr.mxu0 0.0
    %1651 = vmatpush1.msra.mxu0 %v476
    %1652 = vmatprep.subr.mxu0 0.0
    %1653 = vmatpush1.msra.mxu0 %v477
    %1654 = vmatprep.subr.mxu0 0.0
    %1655 = vmatpush1.msra.mxu0 %v478
    %1656 = vmatprep.subr.mxu0 0.0
    %1657 = vmatpush1.msra.mxu0 %v479
    %1658 = vmatprep.subr.mxu0 0.0
    %1659 = vmatpush1.msra.mxu0 %v480
    %1660 = vmatprep.subr.mxu0 0.0
    %1661 = vmatpush1.msra.mxu0 %v481
    %1662 = vmatprep.subr.mxu0 0.0
    %1663 = vmatpush1.msra.mxu0 %v482
    %1664 = vmatprep.subr.mxu0 0.0
    %1665 = vmatpush1.msra.mxu0 %v483
    %1666 = vmatprep.subr.mxu0 0.0
    %1667 = vmatpush1.msra.mxu0 %v484
    %1668 = vmatprep.subr.mxu0 0.0
    %1669 = vmatpush1.msra.mxu0 %v485
    %1670 = vmatprep.subr.mxu0 0.0
    %1671 = vmatpush1.msra.mxu0 %v486
    %1672 = vmatprep.subr.mxu0 0.0
    %1673 = vmatpush1.msra.mxu0 %v487
    %1674 = vmatprep.mubr.f32.mxu0 %v761
    %1675 = vmatmul.mubr.f32.gmra.mrb[0].mxu0 %v759
    %v1676 = vpop.f32.mrb[0].mxu0
    %v1677 = vadd.f32 %v1607, %v1676
    %v1678 = vpop.f32.mrb[0].mxu0
    %1679 = vdwg.mxu0
    %1680 = vmatprep.subr.mxu0 0.0
    %1681 = vmatpush1.msra.mxu0 %v488
    %1682 = vmatprep.subr.mxu0 0.0
    %1683 = vmatpush1.msra.mxu0 %v489
    %1684 = vmatprep.subr.mxu0 0.0
    %1685 = vmatpush1.msra.mxu0 %v490
    %1686 = vmatprep.subr.mxu0 0.0
    %1687 = vmatpush1.msra.mxu0 %v491
    %1688 = vmatprep.subr.mxu0 0.0
    %1689 = vmatpush1.msra.mxu0 %v492
    %1690 = vmatprep.subr.mxu0 0.0
    %1691 = vmatpush1.msra.mxu0 %v493
    %1692 = vmatprep.subr.mxu0 0.0
    %1693 = vmatpush1.msra.mxu0 %v494
    %1694 = vmatprep.subr.mxu0 0.0
    %1695 = vmatpush1.msra.mxu0 %v495
    %1696 = vmatprep.subr.mxu0 0.0
    %1697 = vmatpush1.msra.mxu0 %v496
    %1698 = vmatprep.subr.mxu0 0.0
    %1699 = vmatpush1.msra.mxu0 %v497
    %1700 = vmatprep.subr.mxu0 0.0
    %1701 = vmatpush1.msra.mxu0 %v498
    %1702 = vmatprep.subr.mxu0 0.0
    %1703 = vmatpush1.msra.mxu0 %v499
    %1704 = vmatprep.subr.mxu0 0.0
    %1705 = vmatpush1.msra.mxu0 %v500
    %1706 = vmatprep.subr.mxu0 0.0
    %1707 = vmatpush1.msra.mxu0 %v501
    %1708 = vmatprep.subr.mxu0 0.0
    %1709 = vmatpush1.msra.mxu0 %v502
    %1710 = vmatprep.subr.mxu0 0.0
    %1711 = vmatpush1.msra.mxu0 %v503
    %1712 = vmatprep.subr.mxu0 0.0
    %1713 = vmatpush1.msra.mxu0 %v504
    %1714 = vmatprep.subr.mxu0 0.0
    %1715 = vmatpush1.msra.mxu0 %v505
    %1716 = vmatprep.subr.mxu0 0.0
    %1717 = vmatpush1.msra.mxu0 %v506
    %1718 = vmatprep.subr.mxu0 0.0
    %1719 = vmatpush1.msra.mxu0 %v507
    %1720 = vmatprep.subr.mxu0 0.0
    %1721 = vmatpush1.msra.mxu0 %v508
    %1722 = vmatprep.subr.mxu0 0.0
    %1723 = vmatpush1.msra.mxu0 %v509
    %1724 = vmatprep.subr.mxu0 0.0
    %1725 = vmatpush1.msra.mxu0 %v510
    %1726 = vmatprep.subr.mxu0 0.0
    %1727 = vmatpush1.msra.mxu0 %v511
    %1728 = vmatprep.subr.mxu0 0.0
    %1729 = vmatpush1.msra.mxu0 %v512
    %1730 = vmatprep.subr.mxu0 0.0
    %1731 = vmatpush1.msra.mxu0 %v513
    %1732 = vmatprep.subr.mxu0 0.0
    %1733 = vmatpush1.msra.mxu0 %v514
    %1734 = vmatprep.subr.mxu0 0.0
    %1735 = vmatpush1.msra.mxu0 %v515
    %1736 = vmatprep.subr.mxu0 0.0
    %1737 = vmatpush1.msra.mxu0 %v516
    %1738 = vmatprep.subr.mxu0 0.0
    %1739 = vmatpush1.msra.mxu0 %v517
    %1740 = vmatprep.subr.mxu0 0.0
    %1741 = vmatpush1.msra.mxu0 %v518
    %1742 = vmatprep.subr.mxu0 0.0
    %1743 = vmatpush1.msra.mxu0 %v519
    %1744 = vmatprep.mubr.f32.mxu0 %v777
    %1745 = vmatmul.mubr.f32.gmra.mrb[0].mxu0 %v769
    %v1746 = vpop.f32.mrb[0].mxu0
    %v1747 = vadd.f32 %v1677, %v1746
    %v1748 = vpop.f32.mrb[0].mxu0
    %1749 = vdwg.mxu0
    %1750 = vmatprep.subr.mxu0 0.0
    %1751 = vmatpush1.msra.mxu0 %v520
    %1752 = vmatprep.subr.mxu0 0.0
    %1753 = vmatpush1.msra.mxu0 %v521
    %1754 = vmatprep.subr.mxu0 0.0
    %1755 = vmatpush1.msra.mxu0 %v522
    %1756 = vmatprep.subr.mxu0 0.0
    %1757 = vmatpush1.msra.mxu0 %v523
    %1758 = vmatprep.subr.mxu0 0.0
    %1759 = vmatpush1.msra.mxu0 %v524
    %1760 = vmatprep.subr.mxu0 0.0
    %1761 = vmatpush1.msra.mxu0 %v525
    %1762 = vmatprep.subr.mxu0 0.0
    %1763 = vmatpush1.msra.mxu0 %v526
    %1764 = vmatprep.subr.mxu0 0.0
    %1765 = vmatpush1.msra.mxu0 %v527
    %1766 = vmatprep.subr.mxu0 0.0
    %1767 = vmatpush1.msra.mxu0 %v528
    %1768 = vmatprep.subr.mxu0 0.0
    %1769 = vmatpush1.msra.mxu0 %v529
    %1770 = vmatprep.subr.mxu0 0.0
    %1771 = vmatpush1.msra.mxu0 %v530
    %1772 = vmatprep.subr.mxu0 0.0
    %1773 = vmatpush1.msra.mxu0 %v531
    %1774 = vmatprep.subr.mxu0 0.0
    %1775 = vmatpush1.msra.mxu0 %v532
    %1776 = vmatprep.subr.mxu0 0.0
    %1777 = vmatpush1.msra.mxu0 %v533
    %1778 = vmatprep.subr.mxu0 0.0
    %1779 = vmatpush1.msra.mxu0 %v534
    %1780 = vmatprep.subr.mxu0 0.0
    %1781 = vmatpush1.msra.mxu0 %v535
    %1782 = vmatprep.subr.mxu0 0.0
    %1783 = vmatpush1.msra.mxu0 %v536
    %1784 = vmatprep.subr.mxu0 0.0
    %1785 = vmatpush1.msra.mxu0 %v537
    %1786 = vmatprep.subr.mxu0 0.0
    %1787 = vmatpush1.msra.mxu0 %v538
    %1788 = vmatprep.subr.mxu0 0.0
    %1789 = vmatpush1.msra.mxu0 %v539
    %1790 = vmatprep.subr.mxu0 0.0
    %1791 = vmatpush1.msra.mxu0 %v540
    %1792 = vmatprep.subr.mxu0 0.0
    %1793 = vmatpush1.msra.mxu0 %v541
    %1794 = vmatprep.subr.mxu0 0.0
    %1795 = vmatpush1.msra.mxu0 %v542
    %1796 = vmatprep.subr.mxu0 0.0
    %1797 = vmatpush1.msra.mxu0 %v543
    %1798 = vmatprep.subr.mxu0 0.0
    %1799 = vmatpush1.msra.mxu0 %v544
    %1800 = vmatprep.subr.mxu0 0.0
    %1801 = vmatpush1.msra.mxu0 %v545
    %1802 = vmatprep.subr.mxu0 0.0
    %1803 = vmatpush1.msra.mxu0 %v546
    %1804 = vmatprep.subr.mxu0 0.0
    %1805 = vmatpush1.msra.mxu0 %v547
    %1806 = vmatprep.subr.mxu0 0.0
    %1807 = vmatpush1.msra.mxu0 %v548
    %1808 = vmatprep.subr.mxu0 0.0
    %1809 = vmatpush1.msra.mxu0 %v549
    %1810 = vmatprep.subr.mxu0 0.0
    %1811 = vmatpush1.msra.mxu0 %v550
    %1812 = vmatprep.subr.mxu0 0.0
    %1813 = vmatpush1.msra.mxu0 %v551
    %1814 = vmatprep.mubr.f32.mxu0 %v778
    %1815 = vmatmul.mubr.f32.gmra.mrb[0].mxu0 %v776
    %v1816 = vpop.f32.mrb[0].mxu0
    %v1817 = vadd.f32 %v1747, %v1816
    %v1818 = vpop.f32.mrb[0].mxu0
    %1819 = vdwg.mxu0
    %1820 = vmatprep.subr.mxu0 0.0
    %1821 = vmatpush1.msra.mxu0 %v552
    %1822 = vmatprep.subr.mxu0 0.0
    %1823 = vmatpush1.msra.mxu0 %v553
    %1824 = vmatprep.subr.mxu0 0.0
    %1825 = vmatpush1.msra.mxu0 %v554
    %1826 = vmatprep.subr.mxu0 0.0
    %1827 = vmatpush1.msra.mxu0 %v555
    %1828 = vmatprep.subr.mxu0 0.0
    %1829 = vmatpush1.msra.mxu0 %v556
    %1830 = vmatprep.subr.mxu0 0.0
    %1831 = vmatpush1.msra.mxu0 %v557
    %1832 = vmatprep.subr.mxu0 0.0
    %1833 = vmatpush1.msra.mxu0 %v558
    %1834 = vmatprep.subr.mxu0 0.0
    %1835 = vmatpush1.msra.mxu0 %v559
    %1836 = vmatprep.subr.mxu0 0.0
    %1837 = vmatpush1.msra.mxu0 %v560
    %1838 = vmatprep.subr.mxu0 0.0
    %1839 = vmatpush1.msra.mxu0 %v561
    %1840 = vmatprep.subr.mxu0 0.0
    %1841 = vmatpush1.msra.mxu0 %v562
    %1842 = vmatprep.subr.mxu0 0.0
    %1843 = vmatpush1.msra.mxu0 %v563
    %1844 = vmatprep.subr.mxu0 0.0
    %1845 = vmatpush1.msra.mxu0 %v564
    %1846 = vmatprep.subr.mxu0 0.0
    %1847 = vmatpush1.msra.mxu0 %v565
    %1848 = vmatprep.subr.mxu0 0.0
    %1849 = vmatpush1.msra.mxu0 %v566
    %1850 = vmatprep.subr.mxu0 0.0
    %1851 = vmatpush1.msra.mxu0 %v567
    %1852 = vmatprep.subr.mxu0 0.0
    %1853 = vmatpush1.msra.mxu0 %v568
    %1854 = vmatprep.subr.mxu0 0.0
    %1855 = vmatpush1.msra.mxu0 %v569
    %1856 = vmatprep.subr.mxu0 0.0
    %1857 = vmatpush1.msra.mxu0 %v570
    %1858 = vmatprep.subr.mxu0 0.0
    %1859 = vmatpush1.msra.mxu0 %v571
    %1860 = vmatprep.subr.mxu0 0.0
    %1861 = vmatpush1.msra.mxu0 %v572
    %1862 = vmatprep.subr.mxu0 0.0
    %1863 = vmatpush1.msra.mxu0 %v573
    %1864 = vmatprep.subr.mxu0 0.0
    %1865 = vmatpush1.msra.mxu0 %v574
    %1866 = vmatprep.subr.mxu0 0.0
    %1867 = vmatpush1.msra.mxu0 %v575
    %1868 = vmatprep.subr.mxu0 0.0
    %1869 = vmatpush1.msra.mxu0 %v576
    %1870 = vmatprep.subr.mxu0 0.0
    %1871 = vmatpush1.msra.mxu0 %v577
    %1872 = vmatprep.subr.mxu0 0.0
    %1873 = vmatpush1.msra.mxu0 %v578
    %1874 = vmatprep.subr.mxu0 0.0
    %1875 = vmatpush1.msra.mxu0 %v579
    %1876 = vmatprep.subr.mxu0 0.0
    %1877 = vmatpush1.msra.mxu0 %v580
    %1878 = vmatprep.subr.mxu0 0.0
    %1879 = vmatpush1.msra.mxu0 %v581
    %1880 = vmatprep.subr.mxu0 0.0
    %1881 = vmatpush1.msra.mxu0 %v582
    %1882 = vmatprep.subr.mxu0 0.0
    %1883 = vmatpush1.msra.mxu0 %v583
    %1884 = vmatprep.mubr.f32.mxu0 %v794
    %1885 = vmatmul.mubr.f32.gmra.mrb[0].mxu0 %v786
    %v1886 = vpop.f32.mrb[0].mxu0
    %v1887 = vadd.f32 %v1817, %v1886
    %v1888 = vpop.f32.mrb[0].mxu0
    %1889 = vdwg.mxu0
    %1890 = vmatprep.subr.mxu0 0.0
    %1891 = vmatpush1.msra.mxu0 %v584
    %1892 = vmatprep.subr.mxu0 0.0
    %1893 = vmatpush1.msra.mxu0 %v585
    %1894 = vmatprep.subr.mxu0 0.0
    %1895 = vmatpush1.msra.mxu0 %v586
    %1896 = vmatprep.subr.mxu0 0.0
    %1897 = vmatpush1.msra.mxu0 %v587
    %1898 = vmatprep.subr.mxu0 0.0
    %1899 = vmatpush1.msra.mxu0 %v588
    %1900 = vmatprep.subr.mxu0 0.0
    %1901 = vmatpush1.msra.mxu0 %v589
    %1902 = vmatprep.subr.mxu0 0.0
    %1903 = vmatpush1.msra.mxu0 %v590
    %1904 = vmatprep.subr.mxu0 0.0
    %1905 = vmatpush1.msra.mxu0 %v591
    %1906 = vmatprep.subr.mxu0 0.0
    %1907 = vmatpush1.msra.mxu0 %v592
    %1908 = vmatprep.subr.mxu0 0.0
    %1909 = vmatpush1.msra.mxu0 %v593
    %1910 = vmatprep.subr.mxu0 0.0
    %1911 = vmatpush1.msra.mxu0 %v594
    %1912 = vmatprep.subr.mxu0 0.0
    %1913 = vmatpush1.msra.mxu0 %v595
    %1914 = vmatprep.subr.mxu0 0.0
    %1915 = vmatpush1.msra.mxu0 %v596
    %1916 = vmatprep.subr.mxu0 0.0
    %1917 = vmatpush1.msra.mxu0 %v597
    %1918 = vmatprep.subr.mxu0 0.0
    %1919 = vmatpush1.msra.mxu0 %v598
    %1920 = vmatprep.subr.mxu0 0.0
    %1921 = vmatpush1.msra.mxu0 %v599
    %1922 = vmatprep.subr.mxu0 0.0
    %1923 = vmatpush1.msra.mxu0 %v600
    %1924 = vmatprep.subr.mxu0 0.0
    %1925 = vmatpush1.msra.mxu0 %v601
    %1926 = vmatprep.subr.mxu0 0.0
    %1927 = vmatpush1.msra.mxu0 %v602
    %1928 = vmatprep.subr.mxu0 0.0
    %1929 = vmatpush1.msra.mxu0 %v603
    %1930 = vmatprep.subr.mxu0 0.0
    %1931 = vmatpush1.msra.mxu0 %v604
    %1932 = vmatprep.subr.mxu0 0.0
    %1933 = vmatpush1.msra.mxu0 %v605
    %1934 = vmatprep.subr.mxu0 0.0
    %1935 = vmatpush1.msra.mxu0 %v606
    %1936 = vmatprep.subr.mxu0 0.0
    %1937 = vmatpush1.msra.mxu0 %v607
    %1938 = vmatprep.subr.mxu0 0.0
    %1939 = vmatpush1.msra.mxu0 %v608
    %1940 = vmatprep.subr.mxu0 0.0
    %1941 = vmatpush1.msra.mxu0 %v609
    %1942 = vmatprep.subr.mxu0 0.0
    %1943 = vmatpush1.msra.mxu0 %v610
    %1944 = vmatprep.subr.mxu0 0.0
    %1945 = vmatpush1.msra.mxu0 %v611
    %1946 = vmatprep.subr.mxu0 0.0
    %1947 = vmatpush1.msra.mxu0 %v612
    %1948 = vmatprep.subr.mxu0 0.0
    %1949 = vmatpush1.msra.mxu0 %v613
    %1950 = vmatprep.subr.mxu0 0.0
    %1951 = vmatpush1.msra.mxu0 %v614
    %1952 = vmatprep.subr.mxu0 0.0
    %1953 = vmatpush1.msra.mxu0 %v615
    %1954 = vmatprep.mubr.f32.mxu0 %v795
    %1955 = vmatmul.mubr.f32.gmra.mrb[0].mxu0 %v793
    %v1956 = vpop.f32.mrb[0].mxu0
    %v1957 = vadd.f32 %v1887, %v1956
    %v1958 = vpop.f32.mrb[0].mxu0
    %1959 = vdwg.mxu0
    %1960 = vmatprep.subr.mxu0 0.0
    %1961 = vmatpush1.msra.mxu0 %v616
    %1962 = vmatprep.subr.mxu0 0.0
    %1963 = vmatpush1.msra.mxu0 %v617
    %1964 = vmatprep.subr.mxu0 0.0
    %1965 = vmatpush1.msra.mxu0 %v618
    %1966 = vmatprep.subr.mxu0 0.0
    %1967 = vmatpush1.msra.mxu0 %v619
    %1968 = vmatprep.subr.mxu0 0.0
    %1969 = vmatpush1.msra.mxu0 %v620
    %1970 = vmatprep.subr.mxu0 0.0
    %1971 = vmatpush1.msra.mxu0 %v621
    %1972 = vmatprep.subr.mxu0 0.0
    %1973 = vmatpush1.msra.mxu0 %v622
    %1974 = vmatprep.subr.mxu0 0.0
    %1975 = vmatpush1.msra.mxu0 %v623
    %1976 = vmatprep.subr.mxu0 0.0
    %1977 = vmatpush1.msra.mxu0 %v624
    %1978 = vmatprep.subr.mxu0 0.0
    %1979 = vmatpush1.msra.mxu0 %v625
    %1980 = vmatprep.subr.mxu0 0.0
    %1981 = vmatpush1.msra.mxu0 %v626
    %1982 = vmatprep.subr.mxu0 0.0
    %1983 = vmatpush1.msra.mxu0 %v627
    %1984 = vmatprep.subr.mxu0 0.0
    %1985 = vmatpush1.msra.mxu0 %v628
    %1986 = vmatprep.subr.mxu0 0.0
    %1987 = vmatpush1.msra.mxu0 %v629
    %1988 = vmatprep.subr.mxu0 0.0
    %1989 = vmatpush1.msra.mxu0 %v630
    %1990 = vmatprep.subr.mxu0 0.0
    %1991 = vmatpush1.msra.mxu0 %v631
    %1992 = vmatprep.subr.mxu0 0.0
    %1993 = vmatpush1.msra.mxu0 %v632
    %1994 = vmatprep.subr.mxu0 0.0
    %1995 = vmatpush1.msra.mxu0 %v633
    %1996 = vmatprep.subr.mxu0 0.0
    %1997 = vmatpush1.msra.mxu0 %v634
    %1998 = vmatprep.subr.mxu0 0.0
    %1999 = vmatpush1.msra.mxu0 %v635
    %2000 = vmatprep.subr.mxu0 0.0
    %2001 = vmatpush1.msra.mxu0 %v636
    %2002 = vmatprep.subr.mxu0 0.0
    %2003 = vmatpush1.msra.mxu0 %v637
    %2004 = vmatprep.subr.mxu0 0.0
    %2005 = vmatpush1.msra.mxu0 %v638
    %2006 = vmatprep.subr.mxu0 0.0
    %2007 = vmatpush1.msra.mxu0 %v639
    %2008 = vmatprep.subr.mxu0 0.0
    %2009 = vmatpush1.msra.mxu0 %v640
    %2010 = vmatprep.subr.mxu0 0.0
    %2011 = vmatpush1.msra.mxu0 %v641
    %2012 = vmatprep.subr.mxu0 0.0
    %2013 = vmatpush1.msra.mxu0 %v642
    %2014 = vmatprep.subr.mxu0 0.0
    %2015 = vmatpush1.msra.mxu0 %v643
    %2016 = vmatprep.subr.mxu0 0.0
    %2017 = vmatpush1.msra.mxu0 0.0
    %2018 = vmatprep.subr.mxu0 0.0
    %2019 = vmatpush1.msra.mxu0 0.0
    %2020 = vmatprep.subr.mxu0 0.0
    %2021 = vmatpush1.msra.mxu0 0.0
    %2022 = vmatprep.subr.mxu0 0.0
    %2023 = vmatpush1.msra.mxu0 0.0
    %2024 = vmatprep.mubr.f32.mxu0 %v838
    %2025 = vmatmul.mubr.f32.gmra.mrb[0].mxu0 %v802
    %v2026 = vpop.f32.mrb[0].mxu0
    %v2027 = vadd.f32 %v1957, %v2026
    %v2028 = vpop.f32.mrb[0].mxu0
    %2029 = vdwg.mxu0
    %v2030 = vmax.f32 %v2027, 0.0
    %vm2031 = vcmask 517120
    %2032 = vst.msk [vmem:[%s10] sm:$0x3] %vm2031, %v2030
    %v2033 = vld [vmem:[%s5] sm:$0xff]
    %v2034 = vld [vmem:[%s5 + $0x8] sm:$0xff]
    %v2035 = vld [vmem:[%s5 + $0x10] sm:$0xff]
    %v2036 = vld [vmem:[%s5 + $0x18] sm:$0xff]
    %v2037 = vld [vmem:[%s5 + $0x20] sm:$0xff]
    %v2038 = vld [vmem:[%s5 + $0x28] sm:$0xff]
    %v2039 = vld [vmem:[%s5 + $0x30] sm:$0xff]
    %v2040 = vld [vmem:[%s5 + $0x38] sm:$0xff]
    %v2041 = vld [vmem:[#allocation7] sm:$0x1]
    %v2043 = vlaneseq
    %v2044 = vshrl.u32 %v2043, 7
    %v2045 = vsub.s32 0, %v2044
    %v2046 = vrot.slane %v2041, %v2045
    %vm2048 = vcmask 523264
    %v2050 = vsel %vm2048, %v2030, 0
    %2052 = vmatprep.subr.mxu0 0.0
    %2053 = vmatpush1.msra.mxu0 %v2033
    %2054 = vmatprep.subr.mxu0 0.0
    %2055 = vmatpush1.msra.mxu0 %v2034
    %2056 = vmatprep.subr.mxu0 0.0
    %2057 = vmatpush1.msra.mxu0 %v2035
    %2058 = vmatprep.subr.mxu0 0.0
    %2059 = vmatpush1.msra.mxu0 %v2036
    %2060 = vmatprep.subr.mxu0 0.0
    %2061 = vmatpush1.msra.mxu0 %v2037
    %2062 = vmatprep.subr.mxu0 0.0
    %2063 = vmatpush1.msra.mxu0 %v2038
    %2064 = vmatprep.subr.mxu0 0.0
    %2065 = vmatpush1.msra.mxu0 %v2039
    %2066 = vmatprep.subr.mxu0 0.0
    %2067 = vmatpush1.msra.mxu0 %v2040
    %2068 = vmatprep.subr.mxu0 0.0
    %2069 = vmatpush1.msra.mxu0 0.0
    %2070 = vmatprep.subr.mxu0 0.0
    %2071 = vmatpush1.msra.mxu0 0.0
    %2072 = vmatprep.subr.mxu0 0.0
    %2073 = vmatpush1.msra.mxu0 0.0
    %2074 = vmatprep.subr.mxu0 0.0
    %2075 = vmatpush1.msra.mxu0 0.0
    %2076 = vmatprep.subr.mxu0 0.0
    %2077 = vmatpush1.msra.mxu0 0.0
    %2078 = vmatprep.subr.mxu0 0.0
    %2079 = vmatpush1.msra.mxu0 0.0
    %2080 = vmatprep.subr.mxu0 0.0
    %2081 = vmatpush1.msra.mxu0 0.0
    %2082 = vmatprep.subr.mxu0 0.0
    %2083 = vmatpush1.msra.mxu0 0.0
    %2084 = vmatprep.subr.mxu0 0.0
    %2085 = vmatpush1.msra.mxu0 0.0
    %2086 = vmatprep.subr.mxu0 0.0
    %2087 = vmatpush1.msra.mxu0 0.0
    %2088 = vmatprep.subr.mxu0 0.0
    %2089 = vmatpush1.msra.mxu0 0.0
    %2090 = vmatprep.subr.mxu0 0.0
    %2091 = vmatpush1.msra.mxu0 0.0
    %2092 = vmatprep.subr.mxu0 0.0
    %2093 = vmatpush1.msra.mxu0 0.0
    %2094 = vmatprep.subr.mxu0 0.0
    %2095 = vmatpush1.msra.mxu0 0.0
    %2096 = vmatprep.subr.mxu0 0.0
    %2097 = vmatpush1.msra.mxu0 0.0
    %2098 = vmatprep.subr.mxu0 0.0
    %2099 = vmatpush1.msra.mxu0 0.0
    %2100 = vmatprep.subr.mxu0 0.0
    %2101 = vmatpush1.msra.mxu0 0.0
    %2102 = vmatprep.subr.mxu0 0.0
    %2103 = vmatpush1.msra.mxu0 0.0
    %2104 = vmatprep.subr.mxu0 0.0
    %2105 = vmatpush1.msra.mxu0 0.0
    %2106 = vmatprep.subr.mxu0 0.0
    %2107 = vmatpush1.msra.mxu0 0.0
    %2108 = vmatprep.subr.mxu0 0.0
    %2109 = vmatpush1.msra.mxu0 0.0
    %2110 = vmatprep.subr.mxu0 0.0
    %2111 = vmatpush1.msra.mxu0 0.0
    %2112 = vmatprep.subr.mxu0 0.0
    %2113 = vmatpush1.msra.mxu0 0.0
    %2114 = vmatprep.subr.mxu0 0.0
    %2115 = vmatpush1.msra.mxu0 0.0
    %2116 = vmatprep.mubr.f32.mxu0 0.0
    %2117 = vmatmul.mubr.f32.gmra.mrb[0].mxu0 %v2050
    %v2118 = vpop.f32.mrb[0].mxu0
    %v2119 = vadd.f32 %v2046, %v2118
    %v2120 = vpop.f32.mrb[0].mxu0
    %2121 = vdwg.mxu0
    %vm2122 = vcmask 9216
    %v2123 = vsel %vm2122, %v2119, -inf
    %2124 = vmax.xlane.f32.xlu0 %v2123
    %v2125 = vpop.xlane.xlu0 %2124
    %v2126 = vsub.f32 %v2119, %v2125
    %v2127 = vmul.f32 %v2126, 1.442695
    %v2128 = vpow.pop %v2127
    %v2129 = vsel %vm2122, %v2128, 0.0
    %2130 = vadd.xlane.f32.xlu0 %v2129
    %v2131 = vpop.xlane.xlu0 %2130
    %v2132 = vlog2.pop %v2131
    %v2133 = vmul.f32 %v2132, 0.6931472
    %v2134 = vadd.f32 %v2125, %v2133
    %v2135 = vsub.f32 %v2119, %v2134
    %2137 = vrot.lane.b32.xlu0 %v2135, 64
    %v2138 = vpop.permute.xlu0 %2137
    %vm2140 = vcmask 534016
    %2141 = vst.msk [vmem:[%s10] sm:$0x3] %vm2140, %v2138
    %v2142 = vld [vmem:[%s1] sm:$0x3f]
    %v2143 = vld [vmem:[#allocation2] sm:$0x7]
    %v2145 = vlaneseq
    %v2146 = vshrl.u32 %v2145, 7
    %v2147 = vsub.s32 0, %v2146
    %v2148 = vrot.slane %v2143, %v2147
    %v2149 = vlaneseq
    %v2150 = vshrl.u32 %v2149, 7
    %v2151 = vsub.s32 1, %v2150
    %v2152 = vrot.slane %v2143, %v2151
    %v2153 = vlaneseq
    %v2154 = vshrl.u32 %v2153, 7
    %v2155 = vsub.s32 2, %v2154
    %v2156 = vrot.slane %v2143, %v2155
    %v2157 = vcombine.low %v2148, %v2152
    %v2159 = vunpack.c.l.s4 1983009808
    %v2160 = vunpack.c.0.s8 %v2159
    %v2161 = vlaneseq
    %v2162 = vshrl.u32 %v2161, 7
    %v2163 = vsub.s32 %v2160, %v2162
    %v2164 = vrot.slane %v2157, %v2163
    %v2166 = vunpack.c.l.s4 1983009808
    %v2167 = vunpack.c.0.s8 %v2166
    %v2168 = vlaneseq
    %v2169 = vshrl.u32 %v2168, 7
    %v2170 = vsub.s32 %v2167, %v2169
    %v2171 = vrot.slane %v2156, %v2170
    %v2172 = vcombine.low %v2164, %v2171
    %v2174 = vmul.f32 %v2142, %v2172
    %v2175 = vld [vmem:[%s7] sm:$0xff]
    %v2176 = vld [vmem:[%s7 + $0x8] sm:$0xff]
    %v2177 = vld [vmem:[%s7 + $0x10] sm:$0xff]
    %v2178 = vld [vmem:[%s7 + $0x18] sm:$0xff]
    %v2179 = vld [vmem:[%s7 + $0x20] sm:$0xff]
    %v2180 = vld [vmem:[%s7 + $0x28] sm:$0xff]
    %v2181 = vld [vmem:[%s7 + $0x30] sm:$0xff]
    %v2182 = vld [vmem:[%s7 + $0x38] sm:$0xff]
    %v2183 = vld [vmem:[%s7 + $0x40] sm:$0xff]
    %v2184 = vld [vmem:[%s7 + $0x48] sm:$0xff]
    %v2185 = vld [vmem:[%s7 + $0x50] sm:$0xff]
    %v2186 = vld [vmem:[%s7 + $0x58] sm:$0xff]
    %v2187 = vld [vmem:[%s7 + $0x60] sm:$0xff]
    %v2188 = vld [vmem:[%s7 + $0x68] sm:$0xff]
    %v2189 = vld [vmem:[%s7 + $0x70] sm:$0xff]
    %v2190 = vld [vmem:[%s7 + $0x78] sm:$0xff]
    %v2191 = vld [vmem:[%s7 + $0x80] sm:$0xff]
    %v2192 = vld [vmem:[%s7 + $0x88] sm:$0xff]
    %v2193 = vld [vmem:[%s7 + $0x90] sm:$0xff]
    %v2194 = vld [vmem:[%s7 + $0x98] sm:$0xff]
    %v2195 = vld [vmem:[%s7 + $0xa0] sm:$0xff]
    %v2196 = vld [vmem:[%s7 + $0xa8] sm:$0xff]
    %v2197 = vld [vmem:[%s7 + $0xb0] sm:$0xff]
    %v2198 = vld [vmem:[%s7 + $0xb8] sm:$0xff]
    %v2199 = vld [vmem:[%s7 + $0xc0] sm:$0xff]
    %v2200 = vld [vmem:[%s7 + $0xc8] sm:$0xff]
    %v2201 = vld [vmem:[%s7 + $0xd0] sm:$0xff]
    %v2202 = vld [vmem:[%s7 + $0xd8] sm:$0xff]
    %v2203 = vld [vmem:[%s7 + $0xe0] sm:$0xff]
    %v2204 = vld [vmem:[%s7 + $0xe8] sm:$0xff]
    %v2205 = vld [vmem:[%s7 + $0xf0] sm:$0xff]
    %v2206 = vld [vmem:[%s7 + $0xf8] sm:$0xff]
    %v2207 = vld [vmem:[%s7 + $0x100] sm:$0xff]
    %v2208 = vld [vmem:[%s7 + $0x108] sm:$0x3f]
    %v2210 = vcombine.high %v2174, %v2174
    %v2212 = vunpack.c.l.s4 1983009808
    %v2213 = vunpack.c.0.s8 %v2212
    %v2214 = vlaneseq
    %v2215 = vshrl.u32 %v2214, 7
    %v2216 = vsub.s32 %v2213, %v2215
    %v2217 = vrot.slane %v2174, %v2216
    %v2219 = vunpack.c.l.s4 1983009808
    %v2220 = vunpack.c.0.s8 %v2219
    %v2221 = vlaneseq
    %v2222 = vshrl.u32 %v2221, 7
    %v2223 = vsub.s32 %v2220, %v2222
    %v2224 = vrot.slane %v2210, %v2223
    %v2225 = vcombine.high %v2217, %v2217
    %vm2228 = vcmask 113664
    %v2229 = vsel %vm2228, %v2224, 0
    %vm2231 = vcmask 1045504
    %v2233 = vsel %vm2231, %v2208, 0
    %2235 = vmatprep.subr.mxu0 0.0
    %2236 = vmatpush1.msra.mxu0 %v2175
    %2237 = vmatprep.subr.mxu0 0.0
    %2238 = vmatpush1.msra.mxu0 %v2176
    %2239 = vmatprep.subr.mxu0 0.0
    %2240 = vmatpush1.msra.mxu0 %v2177
    %2241 = vmatprep.subr.mxu0 0.0
    %2242 = vmatpush1.msra.mxu0 %v2178
    %2243 = vmatprep.subr.mxu0 0.0
    %2244 = vmatpush1.msra.mxu0 %v2179
    %2245 = vmatprep.subr.mxu0 0.0
    %2246 = vmatpush1.msra.mxu0 %v2180
    %2247 = vmatprep.subr.mxu0 0.0
    %2248 = vmatpush1.msra.mxu0 %v2181
    %2249 = vmatprep.subr.mxu0 0.0
    %2250 = vmatpush1.msra.mxu0 %v2182
    %2251 = vmatprep.subr.mxu0 0.0
    %2252 = vmatpush1.msra.mxu0 %v2183
    %2253 = vmatprep.subr.mxu0 0.0
    %2254 = vmatpush1.msra.mxu0 %v2184
    %2255 = vmatprep.subr.mxu0 0.0
    %2256 = vmatpush1.msra.mxu0 %v2185
    %2257 = vmatprep.subr.mxu0 0.0
    %2258 = vmatpush1.msra.mxu0 %v2186
    %2259 = vmatprep.subr.mxu0 0.0
    %2260 = vmatpush1.msra.mxu0 %v2187
    %2261 = vmatprep.subr.mxu0 0.0
    %2262 = vmatpush1.msra.mxu0 %v2188
    %2263 = vmatprep.subr.mxu0 0.0
    %2264 = vmatpush1.msra.mxu0 %v2189
    %2265 = vmatprep.subr.mxu0 0.0
    %2266 = vmatpush1.msra.mxu0 %v2190
    %2267 = vmatprep.subr.mxu0 0.0
    %2268 = vmatpush1.msra.mxu0 %v2191
    %2269 = vmatprep.subr.mxu0 0.0
    %2270 = vmatpush1.msra.mxu0 %v2192
    %2271 = vmatprep.subr.mxu0 0.0
    %2272 = vmatpush1.msra.mxu0 %v2193
    %2273 = vmatprep.subr.mxu0 0.0
    %2274 = vmatpush1.msra.mxu0 %v2194
    %2275 = vmatprep.subr.mxu0 0.0
    %2276 = vmatpush1.msra.mxu0 %v2195
    %2277 = vmatprep.subr.mxu0 0.0
    %2278 = vmatpush1.msra.mxu0 %v2196
    %2279 = vmatprep.subr.mxu0 0.0
    %2280 = vmatpush1.msra.mxu0 %v2197
    %2281 = vmatprep.subr.mxu0 0.0
    %2282 = vmatpush1.msra.mxu0 %v2198
    %2283 = vmatprep.subr.mxu0 0.0
    %2284 = vmatpush1.msra.mxu0 %v2199
    %2285 = vmatprep.subr.mxu0 0.0
    %2286 = vmatpush1.msra.mxu0 %v2200
    %2287 = vmatprep.subr.mxu0 0.0
    %2288 = vmatpush1.msra.mxu0 %v2201
    %2289 = vmatprep.subr.mxu0 0.0
    %2290 = vmatpush1.msra.mxu0 %v2202
    %2291 = vmatprep.subr.mxu0 0.0
    %2292 = vmatpush1.msra.mxu0 %v2203
    %2293 = vmatprep.subr.mxu0 0.0
    %2294 = vmatpush1.msra.mxu0 %v2204
    %2295 = vmatprep.subr.mxu0 0.0
    %2296 = vmatpush1.msra.mxu0 %v2205
    %2297 = vmatprep.subr.mxu0 0.0
    %2298 = vmatpush1.msra.mxu0 %v2206
    %2299 = vmatprep.mubr.f32.mxu0 %v2225
    %2300 = vmatmul.mubr.f32.gmra.mrb[0].mxu0 %v2217
    %v2301 = vpop.f32.mrb[0].mxu0
    %v2302 = vadd.f32 0.0, %v2301
    %v2303 = vpop.f32.mrb[0].mxu0
    %2304 = vdwg.mxu0
    %2305 = vmatprep.subr.mxu0 0.0
    %2306 = vmatpush1.msra.mxu0 %v2207
    %2307 = vmatprep.subr.mxu0 0.0
    %2308 = vmatpush1.msra.mxu0 %v2233
    %2309 = vmatprep.subr.mxu0 0.0
    %2310 = vmatpush1.msra.mxu0 0.0
    %2311 = vmatprep.subr.mxu0 0.0
    %2312 = vmatpush1.msra.mxu0 0.0
    %2313 = vmatprep.subr.mxu0 0.0
    %2314 = vmatpush1.msra.mxu0 0.0
    %2315 = vmatprep.subr.mxu0 0.0
    %2316 = vmatpush1.msra.mxu0 0.0
    %2317 = vmatprep.subr.mxu0 0.0
    %2318 = vmatpush1.msra.mxu0 0.0
    %2319 = vmatprep.subr.mxu0 0.0
    %2320 = vmatpush1.msra.mxu0 0.0
    %2321 = vmatprep.subr.mxu0 0.0
    %2322 = vmatpush1.msra.mxu0 0.0
    %2323 = vmatprep.subr.mxu0 0.0
    %2324 = vmatpush1.msra.mxu0 0.0
    %2325 = vmatprep.subr.mxu0 0.0
    %2326 = vmatpush1.msra.mxu0 0.0
    %2327 = vmatprep.subr.mxu0 0.0
    %2328 = vmatpush1.msra.mxu0 0.0
    %2329 = vmatprep.subr.mxu0 0.0
    %2330 = vmatpush1.msra.mxu0 0.0
    %2331 = vmatprep.subr.mxu0 0.0
    %2332 = vmatpush1.msra.mxu0 0.0
    %2333 = vmatprep.subr.mxu0 0.0
    %2334 = vmatpush1.msra.mxu0 0.0
    %2335 = vmatprep.subr.mxu0 0.0
    %2336 = vmatpush1.msra.mxu0 0.0
    %2337 = vmatprep.subr.mxu0 0.0
    %2338 = vmatpush1.msra.mxu0 0.0
    %2339 = vmatprep.subr.mxu0 0.0
    %2340 = vmatpush1.msra.mxu0 0.0
    %2341 = vmatprep.subr.mxu0 0.0
    %2342 = vmatpush1.msra.mxu0 0.0
    %2343 = vmatprep.subr.mxu0 0.0
    %2344 = vmatpush1.msra.mxu0 0.0
    %2345 = vmatprep.subr.mxu0 0.0
    %2346 = vmatpush1.msra.mxu0 0.0
    %2347 = vmatprep.subr.mxu0 0.0
    %2348 = vmatpush1.msra.mxu0 0.0
    %2349 = vmatprep.subr.mxu0 0.0
    %2350 = vmatpush1.msra.mxu0 0.0
    %2351 = vmatprep.subr.mxu0 0.0
    %2352 = vmatpush1.msra.mxu0 0.0
    %2353 = vmatprep.subr.mxu0 0.0
    %2354 = vmatpush1.msra.mxu0 0.0
    %2355 = vmatprep.subr.mxu0 0.0
    %2356 = vmatpush1.msra.mxu0 0.0
    %2357 = vmatprep.subr.mxu0 0.0
    %2358 = vmatpush1.msra.mxu0 0.0
    %2359 = vmatprep.subr.mxu0 0.0
    %2360 = vmatpush1.msra.mxu0 0.0
    %2361 = vmatprep.subr.mxu0 0.0
    %2362 = vmatpush1.msra.mxu0 0.0
    %2363 = vmatprep.subr.mxu0 0.0
    %2364 = vmatpush1.msra.mxu0 0.0
    %2365 = vmatprep.subr.mxu0 0.0
    %2366 = vmatpush1.msra.mxu0 0.0
    %2367 = vmatprep.subr.mxu0 0.0
    %2368 = vmatpush1.msra.mxu0 0.0
    %2369 = vmatprep.mubr.f32.mxu0 0.0
    %2370 = vmatmul.mubr.f32.gmra.mrb[0].mxu0 %v2229
    %v2371 = vpop.f32.mrb[0].mxu0
    %v2372 = vadd.f32 %v2302, %v2371
    %v2373 = vpop.f32.mrb[0].mxu0
    %2374 = vdwg.mxu0
    %2376 = vrot.lane.b32.xlu0 %v2372, 64
    %v2377 = vpop.permute.xlu0 %2376
    %v2379 = vadd.f32 %v2027, %v2377
    %v2380 = vmax.f32 %v2379, 0.0
    %v2381 = vld [vmem:[%s8] sm:$0xff]
    %v2382 = vld [vmem:[%s8 + $0x8] sm:$0xff]
    %v2383 = vld [vmem:[%s8 + $0x10] sm:$0xff]
    %v2384 = vld [vmem:[%s8 + $0x18] sm:$0xff]
    %v2385 = vld [vmem:[%s8 + $0x20] sm:$0xff]
    %v2386 = vld [vmem:[%s8 + $0x28] sm:$0xff]
    %v2387 = vld [vmem:[%s8 + $0x30] sm:$0xff]
    %v2388 = vld [vmem:[%s8 + $0x38] sm:$0xff]
    %v2389 = vld [vmem:[#allocation9] sm:$0x1]
    %v2391 = vlaneseq
    %v2392 = vshrl.u32 %v2391, 7
    %v2393 = vsub.s32 0, %v2392
    %v2394 = vrot.slane %v2389, %v2393
    %2397 = vrot.lane.b32.xlu0 %v2380, 64
    %v2398 = vpop.permute.xlu0 %2397
    %v2399 = vsel %vm2048, %v2398, 0
    %2401 = vmatprep.subr.mxu0 0.0
    %2402 = vmatpush1.msra.mxu0 %v2381
    %2403 = vmatprep.subr.mxu0 0.0
    %2404 = vmatpush1.msra.mxu0 %v2382
    %2405 = vmatprep.subr.mxu0 0.0
    %2406 = vmatpush1.msra.mxu0 %v2383
    %2407 = vmatprep.subr.mxu0 0.0
    %2408 = vmatpush1.msra.mxu0 %v2384
    %2409 = vmatprep.subr.mxu0 0.0
    %2410 = vmatpush1.msra.mxu0 %v2385
    %2411 = vmatprep.subr.mxu0 0.0
    %2412 = vmatpush1.msra.mxu0 %v2386
    %2413 = vmatprep.subr.mxu0 0.0
    %2414 = vmatpush1.msra.mxu0 %v2387
    %2415 = vmatprep.subr.mxu0 0.0
    %2416 = vmatpush1.msra.mxu0 %v2388
    %2417 = vmatprep.subr.mxu0 0.0
    %2418 = vmatpush1.msra.mxu0 0.0
    %2419 = vmatprep.subr.mxu0 0.0
    %2420 = vmatpush1.msra.mxu0 0.0
    %2421 = vmatprep.subr.mxu0 0.0
    %2422 = vmatpush1.msra.mxu0 0.0
    %2423 = vmatprep.subr.mxu0 0.0
    %2424 = vmatpush1.msra.mxu0 0.0
    %2425 = vmatprep.subr.mxu0 0.0
    %2426 = vmatpush1.msra.mxu0 0.0
    %2427 = vmatprep.subr.mxu0 0.0
    %2428 = vmatpush1.msra.mxu0 0.0
    %2429 = vmatprep.subr.mxu0 0.0
    %2430 = vmatpush1.msra.mxu0 0.0
    %2431 = vmatprep.subr.mxu0 0.0
    %2432 = vmatpush1.msra.mxu0 0.0
    %2433 = vmatprep.subr.mxu0 0.0
    %2434 = vmatpush1.msra.mxu0 0.0
    %2435 = vmatprep.subr.mxu0 0.0
    %2436 = vmatpush1.msra.mxu0 0.0
    %2437 = vmatprep.subr.mxu0 0.0
    %2438 = vmatpush1.msra.mxu0 0.0
    %2439 = vmatprep.subr.mxu0 0.0
    %2440 = vmatpush1.msra.mxu0 0.0
    %2441 = vmatprep.subr.mxu0 0.0
    %2442 = vmatpush1.msra.mxu0 0.0
    %2443 = vmatprep.subr.mxu0 0.0
    %2444 = vmatpush1.msra.mxu0 0.0
    %2445 = vmatprep.subr.mxu0 0.0
    %2446 = vmatpush1.msra.mxu0 0.0
    %2447 = vmatprep.subr.mxu0 0.0
    %2448 = vmatpush1.msra.mxu0 0.0
    %2449 = vmatprep.subr.mxu0 0.0
    %2450 = vmatpush1.msra.mxu0 0.0
    %2451 = vmatprep.subr.mxu0 0.0
    %2452 = vmatpush1.msra.mxu0 0.0
    %2453 = vmatprep.subr.mxu0 0.0
    %2454 = vmatpush1.msra.mxu0 0.0
    %2455 = vmatprep.subr.mxu0 0.0
    %2456 = vmatpush1.msra.mxu0 0.0
    %2457 = vmatprep.subr.mxu0 0.0
    %2458 = vmatpush1.msra.mxu0 0.0
    %2459 = vmatprep.subr.mxu0 0.0
    %2460 = vmatpush1.msra.mxu0 0.0
    %2461 = vmatprep.subr.mxu0 0.0
    %2462 = vmatpush1.msra.mxu0 0.0
    %2463 = vmatprep.subr.mxu0 0.0
    %2464 = vmatpush1.msra.mxu0 0.0
    %2465 = vmatprep.mubr.f32.mxu0 0.0
    %2466 = vmatmul.mubr.f32.gmra.mrb[0].mxu0 %v2399
    %v2467 = vpop.f32.mrb[0].mxu0
    %v2468 = vadd.f32 %v2394, %v2467
    %v2469 = vpop.f32.mrb[0].mxu0
    %2470 = vdwg.mxu0
    %2472 = vrot.lane.b32.xlu0 %v2468, 66
    %v2473 = vpop.permute.xlu0 %2472
    %vm2475 = vcmask 566800
    %2476 = vst.msk [vmem:[%s10] sm:$0x3] %vm2475, %v2473
    // Predicated region
    $region62: #{forward.3} parent=1 // pred_check
      _
    $region63: #{forward.3} parent=1 // pred_check_branch
      %2478 = sbr.rel (0) target = $region65
    $region64: #{forward.3} parent=1 // pred_region
      _
    $region65: #{forward.3} parent=1 // pred_fallthru
      _
    // Predicated region
    $region66: #{forward.3} parent=1 // pred_check
      _
    $region67: #{forward.3} parent=1 // pred_check_branch
      %2480 = sbr.rel (0) target = $region69
    $region68: #{forward.3} parent=1 // pred_region
      _
    $region69: #{forward.3} parent=1 // pred_fallthru
      _
    %2481 = vsyncpa [#allocation3], 1
    %2482 = vsyncpa [#allocation5], 1
    %2483 = vsyncpa [#allocation8], 1

</llo_original>
